<compile_context>
chip_gen: v6e
topology: v6e:2x2x1
jax: 0.10.0
libtpu: 0.0.40
codegen_flags: <defaults>
</compile_context>

<pallas_src>
import functools

import jax
import jax.numpy as jnp
from jax.experimental import pallas as pl
from jax.experimental.pallas import tpu as pltpu

_COMPUTE_DTYPE = jnp.bfloat16          # MXU operand dtype (accumulation in f32)
_NEG_BIG = 1e9                         # additive mask penalty

# Resolved on the first successful compile:
#   True  -> head split/merge via reshape+transpose (preferred, one relayout)
#   False -> slice/stack layout-plumbing fallback (same batched MXU matmuls)
_HEADS_VIA_RESHAPE = None


def _vmem_limit_bytes():
    """~80% of this generation's physical VMEM, conservative fallback otherwise."""
    try:
        cap = int(pltpu.get_tpu_info().vmem_capacity_bytes)
    except Exception:
        return 48 * 1024 * 1024
    return max(32 * 1024 * 1024, min(int(cap * 0.80), 112 * 1024 * 1024))


def _pick_q_tile(N, cap=256):
    """Largest q-tile <= cap that divides N (full N when it already fits)."""
    if N <= cap:
        return N
    for t in range(cap, 7, -1):           # prefer bigger tiles; multiples of 8 ideal
        if N % t == 0:
            return t
    return N


# --------------------------------------------------------------------------
# Fused all-layers kernel.  Grid = (batch, layer); the f32 residual stream for
# the current batch element stays resident in VMEM scratch across layer steps.
# --------------------------------------------------------------------------
def _fused_kernel(x_ref, mask_ref,
                  g1_ref, be1_ref, wqkv_ref, bqkv_ref, wo_ref, bo_ref,
                  g2_ref, be2_ref, w1_ref, bb1_ref, w2_ref, bb2_ref,
                  pool_ref, x_scr, *, num_heads, q_tile, reshape_heads):
    cdt = _COMPUTE_DTYPE
    l = pl.program_id(1)
    last_l = pl.num_programs(1) - 1

    @pl.when(l == 0)                       # new batch element: load residual
    def _():
        x_scr[...] = x_ref[0]

    x = x_scr[...]                         # (N, F) f32 residual stream
    N, F = x.shape
    hd = F // num_heads
    nq = N // q_tile

    # Key-padding mask -> additive bias, computed ONCE per grid step.
    bias = (mask_ref[0] - 1.0) * _NEG_BIG  # (1, N): 0 = keep, -1e9 = drop

    def layer_norm(v, g, b):               # f32 statistics
        mu = jnp.mean(v, axis=-1, keepdims=True)
        var = jnp.mean((v - mu) ** 2, axis=-1, keepdims=True)
        return (v - mu) * jax.lax.rsqrt(var + 1e-5) * g + b

    if reshape_heads:
        def split_heads(t):                # (N, F) -> (H, N, hd)
            return t.reshape(t.shape[0], num_heads, hd).transpose(1, 0, 2)

        def merge_heads(t):                # (H, N, hd) -> (N, F)
            return t.transpose(1, 0, 2).reshape(t.shape[1], F)
    else:
        # Pure layout plumbing (static lane slices + major-axis stack); the
        # matmuls below stay single batched MXU contractions either way.
        def split_heads(t):
            return jnp.stack(
                [t[:, h * hd:(h + 1) * hd] for h in range(num_heads)], axis=0)

        def merge_heads(t):
            return jnp.concatenate([t[h] for h in range(num_heads)], axis=-1)

    # ------------------------------ attention ------------------------------
    h = layer_norm(x, g1_ref[0], be1_ref[0]).astype(cdt)
    qkv = jnp.dot(h, wqkv_ref[0], preferred_element_type=jnp.float32) + bqkv_ref[0]

    # 1/sqrt(hd) is pre-folded into the q-columns of Wqkv / bqkv at init time.
    q = split_heads(qkv[:, 0 * F:1 * F]).astype(cdt)   # (H, N, hd)
    k = split_heads(qkv[:, 1 * F:2 * F]).astype(cdt)
    v = split_heads(qkv[:, 2 * F:3 * F]).astype(cdt)

    # Query-tiled attention: full keys per q-tile bounds the score buffer to
    # (H, Tq, N).  Batched QK^T contracts the last axis of both operands
    # (no explicit .T -> no extra XLU transpose before the MXU).
    ctx_tiles = []
    for t in range(nq):
        qt = q if nq == 1 else q[:, t * q_tile:(t + 1) * q_tile, :]
        s = jnp.einsum('hqd,hkd->hqk', qt, k, preferred_element_type=jnp.float32)
        s = s + bias                                    # broadcast (1, N)
        s = s - jnp.max(s, axis=-1, keepdims=True)
        p = jnp.exp(s)                                  # unnormalized, in [0, 1]
        denom = jnp.sum(p, axis=-1, keepdims=True)      # (H, Tq, 1)
        ctx_t = jnp.einsum('hqk,hkd->hqd', p.astype(cdt), v,
                           preferred_element_type=jnp.float32)
        # Deferred normalization on the small (H, Tq, hd) context.
        ctx_tiles.append(ctx_t * pl.reciprocal(denom, approx=True))
    ctx = ctx_tiles[0] if nq == 1 else jnp.concatenate(ctx_tiles, axis=1)

    attn = merge_heads(ctx).astype(cdt)                 # (N, F)
    attn = jnp.dot(attn, wo_ref[0], preferred_element_type=jnp.float32) + bo_ref[0]
    x = x + attn

    # --------------------------------- MLP ---------------------------------
    h2 = layer_norm(x, g2_ref[0], be2_ref[0]).astype(cdt)
    m = jnp.dot(h2, w1_ref[0], preferred_element_type=jnp.float32) + bb1_ref[0]
    m = jax.nn.gelu(m).astype(cdt)                      # tanh-approx GELU
    m = jnp.dot(m, w2_ref[0], preferred_element_type=jnp.float32) + bb2_ref[0]
    x = x + m

    x_scr[...] = x                                      # carry residual to next layer

    @pl.when(l == last_l)                               # fused avg_pool, only HBM write
    def _():
        pool_ref[0] = jnp.mean(x, axis=0, keepdims=True).astype(pool_ref.dtype)


# --------------------------------------------------------------------------
# Wrapper: one pallas_call for the whole stack of blocks + pooling.
# --------------------------------------------------------------------------
def cross_attention_forward(x, mask, params, *, num_heads, q_tile=None):
    global _HEADS_VIA_RESHAPE
    B, N, F = x.shape
    L = params["wqkv"].shape[0]
    Hm = params["w1"].shape[-1]
    assert F % num_heads == 0
    if q_tile is None:
        q_tile = _pick_q_tile(N)
    assert N % q_tile == 0

    mask3 = mask.astype(jnp.float32).reshape(B, 1, N)

    def lw_spec(per_layer_shape):
        # Layer-streamed weight/bias block: index follows the layer grid axis,
        # so default double-buffering prefetches the NEXT layer's weights while
        # the current layer computes.
        zeros = (0,) * len(per_layer_shape)
        return pl.BlockSpec((1,) + tuple(per_layer_shape),
                            lambda b, l, zeros=zeros: (l,) + zeros)

    in_specs = [
        pl.BlockSpec((1, N, F), lambda b, l: (b, 0, 0)),    # x (fetched once per b)
        pl.BlockSpec((1, 1, N), lambda b, l: (b, 0, 0)),    # mask
        lw_spec((1, F)), lw_spec((1, F)),                   # ln1 gamma / beta
        lw_spec((F, 3 * F)), lw_spec((1, 3 * F)),           # Wqkv / bqkv (scale folded)
        lw_spec((F, F)), lw_spec((1, F)),                   # Wo / bo
        lw_spec((1, F)), lw_spec((1, F)),                   # ln2 gamma / beta
        lw_spec((F, Hm)), lw_spec((1, Hm)),                 # W1 / b1
        lw_spec((Hm, F)), lw_spec((1, F)),                  # W2 / b2
    ]
    out_shape = jax.ShapeDtypeStruct((B, 1, F), jnp.float32)  # pooled only
    out_specs = pl.BlockSpec((1, 1, F), lambda b, l: (b, 0, 0))
    scratch_shapes = [pltpu.VMEM((N, F), jnp.float32)]        # resident residual

    def build(reshape_heads):
        return pl.pallas_call(
            functools.partial(_fused_kernel, num_heads=num_heads,
                              q_tile=q_tile, reshape_heads=reshape_heads),
            out_shape=out_shape,
            grid_spec=pltpu.PrefetchScalarGridSpec(
                num_scalar_prefetch=0,
                grid=(B, L),
                in_specs=in_specs,
                out_specs=out_specs,
                scratch_shapes=scratch_shapes),
            compiler_params=pltpu.CompilerParams(
                dimension_semantics=("parallel", "arbitrary"),
                vmem_limit_bytes=_vmem_limit_bytes()),
        )

    args = (x, mask3,
            params["g1"], params["be1"], params["wqkv"], params["bqkv"],
            params["wo"], params["bo"], params["g2"], params["be2"],
            params["w1"], params["bb1"], params["w2"], params["bb2"])

    candidates = ([True, False] if _HEADS_VIA_RESHAPE is None
                  else [_HEADS_VIA_RESHAPE])
    err = None
    for reshape_heads in candidates:
        try:
            out = build(reshape_heads)(*args)
            _HEADS_VIA_RESHAPE = reshape_heads
            return out[:, 0, :]                 # (B, F)
        except Exception as e:   # Mosaic version rejects the rank-3 reshape/transpose
            err = e
    raise err


# --------------------------------------------------------------------------
# Parameter init: stacked along a leading layer axis; 1/sqrt(hd) folded into
# the q-third of Wqkv / bqkv; matmul weights stored in bf16.
# --------------------------------------------------------------------------
def init_params(key, num_layers, F, num_heads, mlp_ratio=4):
    Hm = mlp_ratio * F
    hd = F // num_heads
    scale = jnp.float32(1.0 / (hd ** 0.5))
    s = 0.02
    wdt = _COMPUTE_DTYPE
    names = ("g1", "be1", "wqkv", "bqkv", "wo", "bo",
             "g2", "be2", "w1", "bb1", "w2", "bb2")
    acc = {n: [] for n in names}
    for lk in jax.random.split(key, num_layers):
        k0, k1, k2, k3 = jax.random.split(lk, 4)
        wqkv = s * jax.random.normal(k0, (F, 3 * F), jnp.float32)
        bqkv = jnp.zeros((1, 3 * F), jnp.float32)
        wqkv = wqkv.at[:, :F].multiply(scale)     # fold attention scale into q
        bqkv = bqkv.at[:, :F].multiply(scale)
        acc["g1"].append(jnp.ones((1, F), jnp.float32))
        acc["be1"].append(jnp.zeros((1, F), jnp.float32))
        acc["wqkv"].append(wqkv.astype(wdt))
        acc["bqkv"].append(bqkv)
        acc["wo"].append((s * jax.random.normal(k1, (F, F), jnp.float32)).astype(wdt))
        acc["bo"].append(jnp.zeros((1, F), jnp.float32))
        acc["g2"].append(jnp.ones((1, F), jnp.float32))
        acc["be2"].append(jnp.zeros((1, F), jnp.float32))
        acc["w1"].append((s * jax.random.normal(k2, (F, Hm), jnp.float32)).astype(wdt))
        acc["bb1"].append(jnp.zeros((1, Hm), jnp.float32))
        acc["w2"].append((s * jax.random.normal(k3, (Hm, F), jnp.float32)).astype(wdt))
        acc["bb2"].append(jnp.zeros((1, F), jnp.float32))
    return {n: jnp.stack(v, axis=0) for n, v in acc.items()}


# --------------------------------------------------------------------------
# Pure-JAX reference (f32 math on the same preprocessed bf16 weights)
# --------------------------------------------------------------------------
def _ref_forward(x, mask, P, *, num_heads):
    B, N, F = x.shape
    hd = F // num_heads
    L = P["wqkv"].shape[0]
    maskb = (mask > 0.5)[:, None, None, :]        # (B,1,1,N)
    f32 = lambda a: a.astype(jnp.float32)

    def ln(v, g, b):
        mu = v.mean(-1, keepdims=True)
        var = ((v - mu) ** 2).mean(-1, keepdims=True)
        return (v - mu) * jax.lax.rsqrt(var + 1e-5) * g + b

    for i in range(L):
        h = ln(x, P["g1"][i], P["be1"][i])
        qkv = h @ f32(P["wqkv"][i]) + P["bqkv"][i]
        q, k, v = jnp.split(qkv, 3, axis=-1)      # scale already folded in
        q = q.reshape(B, N, num_heads, hd).transpose(0, 2, 1, 3)
        k = k.reshape(B, N, num_heads, hd).transpose(0, 2, 1, 3)
        v = v.reshape(B, N, num_heads, hd).transpose(0, 2, 1, 3)
        s = jnp.einsum("bhqd,bhkd->bhqk", q, k)
        # NOTE: fully-masked rows give a uniform softmax over masked keys here
        # (same as the kernel); differs from PyTorch's NaN behavior.
        s = jnp.where(maskb, s, -_NEG_BIG)
        pmat = jax.nn.softmax(s, axis=-1)
        a = jnp.einsum("bhqk,bhkd->bhqd", pmat, v).transpose(0, 2, 1, 3).reshape(B, N, F)
        x = x + (a @ f32(P["wo"][i]) + P["bo"][i])
        h2 = ln(x, P["g2"][i], P["be2"][i])
        m = jax.nn.gelu(h2 @ f32(P["w1"][i]) + P["bb1"][i]) @ f32(P["w2"][i]) + P["bb2"][i]
        x = x + m
    return x.mean(axis=1)                          # avg_pool


if __name__ == "__main__":
    B, N, F = 2, 8, 32
    num_heads = 4
    num_blocks = 3

    key = jax.random.PRNGKey(0)
    kx, kp = jax.random.split(key)
    x = jax.random.normal(kx, (B, N, F), jnp.float32)
    # key-padding mask: batch 0 has the last 2 tokens masked out, batch 1 is full.
    mask = jnp.array(
        [[1, 1, 1, 1, 1, 1, 0, 0],
         [1, 1, 1, 1, 1, 1, 1, 1]], dtype=jnp.float32)

    params = init_params(kp, num_blocks, F, num_heads)

    out = cross_attention_forward(x, mask, params, num_heads=num_heads)
    out = jax.block_until_ready(out)

    ref = _ref_forward(x, mask, params, num_heads=num_heads)
    assert out.shape == (B, F), out.shape
    # bf16 MXU operands + approx reciprocal => re-baselined tolerance vs pure f32.
    max_err = float(jnp.max(jnp.abs(out - ref)))
    assert jnp.allclose(out, ref, atol=3e-2, rtol=3e-2), max_err

    print("KERNEL_OK")
</pallas_src>

<mosaic_0001>
module attributes {stable_mosaic.version = 11 : i64} {
  func.func @_fused_kernel(%arg0: i32, %arg1: i32, %arg2: memref<1x8x32xf32, #tpu.memory_space<vmem>>, %arg3: memref<1x1x8xf32, #tpu.memory_space<vmem>>, %arg4: memref<1x1x32xf32, #tpu.memory_space<vmem>>, %arg5: memref<1x1x32xf32, #tpu.memory_space<vmem>>, %arg6: memref<1x32x96xbf16, #tpu.memory_space<vmem>>, %arg7: memref<1x1x96xf32, #tpu.memory_space<vmem>>, %arg8: memref<1x32x32xbf16, #tpu.memory_space<vmem>>, %arg9: memref<1x1x32xf32, #tpu.memory_space<vmem>>, %arg10: memref<1x1x32xf32, #tpu.memory_space<vmem>>, %arg11: memref<1x1x32xf32, #tpu.memory_space<vmem>>, %arg12: memref<1x32x128xbf16, #tpu.memory_space<vmem>>, %arg13: memref<1x1x128xf32, #tpu.memory_space<vmem>>, %arg14: memref<1x128x32xbf16, #tpu.memory_space<vmem>>, %arg15: memref<1x1x32xf32, #tpu.memory_space<vmem>>, %arg16: memref<1x1x32xf32, #tpu.memory_space<vmem>>, %arg17: memref<8x32xf32, #tpu.memory_space<vmem>>) attributes {dimension_semantics = [#tpu.dimension_semantics<parallel>, #tpu.dimension_semantics<arbitrary>], iteration_bounds = array<i64: 2, 3>, scalar_prefetch = 0 : i64, scratch_operands = 1 : i64, tpu.core_type = #tpu.core_type<tc>, window_params = [{transform_indices = @transform_0, window_bounds = array<i64: 1, 8, 32>}, {transform_indices = @transform_1, window_bounds = array<i64: 1, 1, 8>}, {transform_indices = @transform_2, window_bounds = array<i64: 1, 1, 32>}, {transform_indices = @transform_3, window_bounds = array<i64: 1, 1, 32>}, {transform_indices = @transform_4, window_bounds = array<i64: 1, 32, 96>}, {transform_indices = @transform_5, window_bounds = array<i64: 1, 1, 96>}, {transform_indices = @transform_6, window_bounds = array<i64: 1, 32, 32>}, {transform_indices = @transform_7, window_bounds = array<i64: 1, 1, 32>}, {transform_indices = @transform_8, window_bounds = array<i64: 1, 1, 32>}, {transform_indices = @transform_9, window_bounds = array<i64: 1, 1, 32>}, {transform_indices = @transform_10, window_bounds = array<i64: 1, 32, 128>}, {transform_indices = @transform_11, window_bounds = array<i64: 1, 1, 128>}, {transform_indices = @transform_12, window_bounds = array<i64: 1, 128, 32>}, {transform_indices = @transform_13, window_bounds = array<i64: 1, 1, 32>}, {transform_indices = @transform_14, window_bounds = array<i64: 1, 1, 32>}]} {
    %c0_i32 = arith.constant 0 : i32
    %0 = arith.cmpi eq, %arg1, %c0_i32 : i32
    %1 = arith.extui %0 : i1 to i32
    %c0_i32_0 = arith.constant 0 : i32
    %2 = arith.cmpi ne, %1, %c0_i32_0 : i32
    scf.if %2 {
      %c0_67 = arith.constant 0 : index
      %c0_68 = arith.constant 0 : index
      %c0_69 = arith.constant 0 : index
      %143 = vector.load %arg2[%c0_67, %c0_68, %c0_69] : memref<1x8x32xf32, #tpu.memory_space<vmem>>, vector<1x8x32xf32>
      %144 = vector.shape_cast %143 : vector<1x8x32xf32> to vector<8x32xf32>
      %c0_70 = arith.constant 0 : index
      %c0_71 = arith.constant 0 : index
      %145 = vector.load %arg17[%c0_70, %c0_71] : memref<8x32xf32, #tpu.memory_space<vmem>>, vector<8x32xf32>
      tpu.vector_store %arg17[%c0_70, %c0_71], %144 {strides = array<i32>} : memref<8x32xf32, #tpu.memory_space<vmem>>, vector<8x32xf32>,
    } else {
    }
    %c0 = arith.constant 0 : index
    %c0_1 = arith.constant 0 : index
    %3 = vector.load %arg17[%c0, %c0_1] : memref<8x32xf32, #tpu.memory_space<vmem>>, vector<8x32xf32>
    %c0_2 = arith.constant 0 : index
    %c0_3 = arith.constant 0 : index
    %c0_4 = arith.constant 0 : index
    %4 = vector.load %arg3[%c0_2, %c0_3, %c0_4] : memref<1x1x8xf32, #tpu.memory_space<vmem>>, vector<1x1x8xf32>
    %5 = vector.shape_cast %4 : vector<1x1x8xf32> to vector<1x8xf32>
    %cst = arith.constant 1.000000e+00 : f32
    %6 = vector.broadcast %cst : f32 to vector<1x8xf32>
    %7 = arith.subf %5, %6 : vector<1x8xf32>
    %cst_5 = arith.constant 1.000000e+09 : f32
    %8 = vector.broadcast %cst_5 : f32 to vector<1x8xf32>
    %9 = arith.mulf %7, %8 : vector<1x8xf32>
    %c0_6 = arith.constant 0 : index
    %c0_7 = arith.constant 0 : index
    %c0_8 = arith.constant 0 : index
    %10 = vector.load %arg4[%c0_6, %c0_7, %c0_8] : memref<1x1x32xf32, #tpu.memory_space<vmem>>, vector<1x1x32xf32>
    %11 = vector.shape_cast %10 : vector<1x1x32xf32> to vector<1x32xf32>
    %c0_9 = arith.constant 0 : index
    %c0_10 = arith.constant 0 : index
    %c0_11 = arith.constant 0 : index
    %12 = vector.load %arg5[%c0_9, %c0_10, %c0_11] : memref<1x1x32xf32, #tpu.memory_space<vmem>>, vector<1x1x32xf32>
    %13 = vector.shape_cast %12 : vector<1x1x32xf32> to vector<1x32xf32>
    %cst_12 = arith.constant dense<0.000000e+00> : vector<8xf32>
    %14 = vector.multi_reduction <add>, %3, %cst_12 [1] : vector<8x32xf32> to vector<8xf32>
    %15 = vector.shape_cast %14 : vector<8xf32> to vector<8x1xf32>
    %cst_13 = arith.constant 3.200000e+01 : f32
    %16 = vector.broadcast %cst_13 : f32 to vector<8x1xf32>
    %17 = arith.divf %15, %16 : vector<8x1xf32>
    %18 = vector.broadcast %17 : vector<8x1xf32> to vector<8x32xf32>
    %19 = arith.subf %3, %18 : vector<8x32xf32>
    %20 = arith.mulf %19, %19 : vector<8x32xf32>
    %cst_14 = arith.constant dense<0.000000e+00> : vector<8xf32>
    %21 = vector.multi_reduction <add>, %20, %cst_14 [1] : vector<8x32xf32> to vector<8xf32>
    %22 = vector.shape_cast %21 : vector<8xf32> to vector<8x1xf32>
    %cst_15 = arith.constant 3.200000e+01 : f32
    %23 = vector.broadcast %cst_15 : f32 to vector<8x1xf32>
    %24 = arith.divf %22, %23 : vector<8x1xf32>
    %25 = vector.broadcast %17 : vector<8x1xf32> to vector<8x32xf32>
    %26 = arith.subf %3, %25 : vector<8x32xf32>
    %cst_16 = arith.constant 9.99999974E-6 : f32
    %27 = vector.broadcast %cst_16 : f32 to vector<8x1xf32>
    %28 = arith.addf %24, %27 : vector<8x1xf32>
    %29 = math.rsqrt %28 : vector<8x1xf32>
    %30 = vector.broadcast %29 : vector<8x1xf32> to vector<8x32xf32>
    %31 = arith.mulf %26, %30 : vector<8x32xf32>
    %32 = vector.broadcast %11 : vector<1x32xf32> to vector<8x32xf32>
    %33 = arith.mulf %31, %32 : vector<8x32xf32>
    %34 = vector.broadcast %13 : vector<1x32xf32> to vector<8x32xf32>
    %35 = arith.addf %33, %34 : vector<8x32xf32>
    %36 = arith.truncf %35 : vector<8x32xf32> to vector<8x32xbf16>
    %c0_17 = arith.constant 0 : index
    %c0_18 = arith.constant 0 : index
    %c0_19 = arith.constant 0 : index
    %37 = vector.load %arg6[%c0_17, %c0_18, %c0_19] : memref<1x32x96xbf16, #tpu.memory_space<vmem>>, vector<1x32x96xbf16>
    %38 = vector.shape_cast %37 : vector<1x32x96xbf16> to vector<32x96xbf16>
    %cst_20 = arith.constant dense<0.000000e+00> : vector<8x96xf32>
    %39 = tpu.matmul %36, %38, %cst_20 {dimension_numbers = #tpu.dot_dimension_numbers<[1], [0], [0], [1], [0, 0, 1, 1], [], []>} : vector<8x32xbf16>, vector<32x96xbf16>, vector<8x96xf32> -> vector<8x96xf32>
    %c0_21 = arith.constant 0 : index
    %c0_22 = arith.constant 0 : index
    %c0_23 = arith.constant 0 : index
    %40 = vector.load %arg7[%c0_21, %c0_22, %c0_23] : memref<1x1x96xf32, #tpu.memory_space<vmem>>, vector<1x1x96xf32>
    %41 = vector.shape_cast %40 : vector<1x1x96xf32> to vector<1x96xf32>
    %42 = vector.broadcast %41 : vector<1x96xf32> to vector<8x96xf32>
    %43 = arith.addf %39, %42 : vector<8x96xf32>
    %44 = vector.extract_strided_slice %43 {offsets = [0, 0], sizes = [8, 32], strides = [1, 1]} : vector<8x96xf32> to vector<8x32xf32>
    %45 = vector.shape_cast %44 : vector<8x32xf32> to vector<8x4x8xf32>
    %46 = tpu.transpose %45, [1, 0, 2] : vector<8x4x8xf32> -> vector<4x8x8xf32>
    %47 = arith.truncf %46 : vector<4x8x8xf32> to vector<4x8x8xbf16>
    %48 = vector.extract_strided_slice %43 {offsets = [0, 32], sizes = [8, 32], strides = [1, 1]} : vector<8x96xf32> to vector<8x32xf32>
    %49 = vector.shape_cast %48 : vector<8x32xf32> to vector<8x4x8xf32>
    %50 = tpu.transpose %49, [1, 0, 2] : vector<8x4x8xf32> -> vector<4x8x8xf32>
    %51 = arith.truncf %50 : vector<4x8x8xf32> to vector<4x8x8xbf16>
    %52 = vector.extract_strided_slice %43 {offsets = [0, 64], sizes = [8, 32], strides = [1, 1]} : vector<8x96xf32> to vector<8x32xf32>
    %53 = vector.shape_cast %52 : vector<8x32xf32> to vector<8x4x8xf32>
    %54 = tpu.transpose %53, [1, 0, 2] : vector<8x4x8xf32> -> vector<4x8x8xf32>
    %55 = arith.truncf %54 : vector<4x8x8xf32> to vector<4x8x8xbf16>
    "tpu.trace_start"() <{level = 10 : i32, message = "hqd,hkd->hqk"}> : () -> ()
    %cst_24 = arith.constant dense<0.000000e+00> : vector<4x8x8xf32>
    %56 = tpu.matmul %47, %51, %cst_24 {dimension_numbers = #tpu.dot_dimension_numbers<[2], [2], [1], [1], [0, 0, 0, 1, 1, 1], [0], [0]>} : vector<4x8x8xbf16>, vector<4x8x8xbf16>, vector<4x8x8xf32> -> vector<4x8x8xf32>
    "tpu.trace_stop"() : () -> ()
    %57 = vector.shape_cast %9 : vector<1x8xf32> to vector<1x1x8xf32>
    %58 = vector.broadcast %57 : vector<1x1x8xf32> to vector<4x8x8xf32>
    %59 = arith.addf %56, %58 : vector<4x8x8xf32>
    %cst_25 = arith.constant dense<0xFF800000> : vector<4x8xf32>
    %60 = vector.multi_reduction <maximumf>, %59, %cst_25 [2] : vector<4x8x8xf32> to vector<4x8xf32>
    %61 = vector.shape_cast %60 : vector<4x8xf32> to vector<4x8x1xf32>
    %62 = vector.broadcast %61 : vector<4x8x1xf32> to vector<4x8x8xf32>
    %63 = arith.subf %59, %62 : vector<4x8x8xf32>
    %64 = math.exp %63 : vector<4x8x8xf32>
    %cst_26 = arith.constant dense<0.000000e+00> : vector<4x8xf32>
    %65 = vector.multi_reduction <add>, %64, %cst_26 [2] : vector<4x8x8xf32> to vector<4x8xf32>
    %66 = vector.shape_cast %65 : vector<4x8xf32> to vector<4x8x1xf32>
    %67 = arith.truncf %64 : vector<4x8x8xf32> to vector<4x8x8xbf16>
    "tpu.trace_start"() <{level = 10 : i32, message = "hqk,hkd->hqd"}> : () -> ()
    %cst_27 = arith.constant dense<0.000000e+00> : vector<4x8x8xf32>
    %68 = tpu.matmul %67, %55, %cst_27 {dimension_numbers = #tpu.dot_dimension_numbers<[2], [1], [1], [2], [0, 0, 0, 1, 1, 2], [0], [0]>} : vector<4x8x8xbf16>, vector<4x8x8xbf16>, vector<4x8x8xf32> -> vector<4x8x8xf32>
    "tpu.trace_stop"() : () -> ()
    %69 = tpu.reciprocal %66 {approx = true} : vector<4x8x1xf32> -> vector<4x8x1xf32>
    %70 = vector.broadcast %69 : vector<4x8x1xf32> to vector<4x8x8xf32>
    %71 = arith.mulf %68, %70 : vector<4x8x8xf32>
    %72 = tpu.transpose %71, [1, 0, 2] : vector<4x8x8xf32> -> vector<8x4x8xf32>
    %73 = vector.shape_cast %72 : vector<8x4x8xf32> to vector<8x32xf32>
    %74 = arith.truncf %73 : vector<8x32xf32> to vector<8x32xbf16>
    %c0_28 = arith.constant 0 : index
    %c0_29 = arith.constant 0 : index
    %c0_30 = arith.constant 0 : index
    %75 = vector.load %arg8[%c0_28, %c0_29, %c0_30] : memref<1x32x32xbf16, #tpu.memory_space<vmem>>, vector<1x32x32xbf16>
    %76 = vector.shape_cast %75 : vector<1x32x32xbf16> to vector<32x32xbf16>
    %cst_31 = arith.constant dense<0.000000e+00> : vector<8x32xf32>
    %77 = tpu.matmul %74, %76, %cst_31 {dimension_numbers = #tpu.dot_dimension_numbers<[1], [0], [0], [1], [0, 0, 1, 1], [], []>} : vector<8x32xbf16>, vector<32x32xbf16>, vector<8x32xf32> -> vector<8x32xf32>
    %c0_32 = arith.constant 0 : index
    %c0_33 = arith.constant 0 : index
    %c0_34 = arith.constant 0 : index
    %78 = vector.load %arg9[%c0_32, %c0_33, %c0_34] : memref<1x1x32xf32, #tpu.memory_space<vmem>>, vector<1x1x32xf32>
    %79 = vector.shape_cast %78 : vector<1x1x32xf32> to vector<1x32xf32>
    %80 = vector.broadcast %79 : vector<1x32xf32> to vector<8x32xf32>
    %81 = arith.addf %77, %80 : vector<8x32xf32>
    %82 = arith.addf %3, %81 : vector<8x32xf32>
    %c0_35 = arith.constant 0 : index
    %c0_36 = arith.constant 0 : index
    %c0_37 = arith.constant 0 : index
    %83 = vector.load %arg10[%c0_35, %c0_36, %c0_37] : memref<1x1x32xf32, #tpu.memory_space<vmem>>, vector<1x1x32xf32>
    %84 = vector.shape_cast %83 : vector<1x1x32xf32> to vector<1x32xf32>
    %c0_38 = arith.constant 0 : index
    %c0_39 = arith.constant 0 : index
    %c0_40 = arith.constant 0 : index
    %85 = vector.load %arg11[%c0_38, %c0_39, %c0_40] : memref<1x1x32xf32, #tpu.memory_space<vmem>>, vector<1x1x32xf32>
    %86 = vector.shape_cast %85 : vector<1x1x32xf32> to vector<1x32xf32>
    %cst_41 = arith.constant dense<0.000000e+00> : vector<8xf32>
    %87 = vector.multi_reduction <add>, %82, %cst_41 [1] : vector<8x32xf32> to vector<8xf32>
    %88 = vector.shape_cast %87 : vector<8xf32> to vector<8x1xf32>
    %cst_42 = arith.constant 3.200000e+01 : f32
    %89 = vector.broadcast %cst_42 : f32 to vector<8x1xf32>
    %90 = arith.divf %88, %89 : vector<8x1xf32>
    %91 = vector.broadcast %90 : vector<8x1xf32> to vector<8x32xf32>
    %92 = arith.subf %82, %91 : vector<8x32xf32>
    %93 = arith.mulf %92, %92 : vector<8x32xf32>
    %cst_43 = arith.constant dense<0.000000e+00> : vector<8xf32>
    %94 = vector.multi_reduction <add>, %93, %cst_43 [1] : vector<8x32xf32> to vector<8xf32>
    %95 = vector.shape_cast %94 : vector<8xf32> to vector<8x1xf32>
    %cst_44 = arith.constant 3.200000e+01 : f32
    %96 = vector.broadcast %cst_44 : f32 to vector<8x1xf32>
    %97 = arith.divf %95, %96 : vector<8x1xf32>
    %98 = vector.broadcast %90 : vector<8x1xf32> to vector<8x32xf32>
    %99 = arith.subf %82, %98 : vector<8x32xf32>
    %cst_45 = arith.constant 9.99999974E-6 : f32
    %100 = vector.broadcast %cst_45 : f32 to vector<8x1xf32>
    %101 = arith.addf %97, %100 : vector<8x1xf32>
    %102 = math.rsqrt %101 : vector<8x1xf32>
    %103 = vector.broadcast %102 : vector<8x1xf32> to vector<8x32xf32>
    %104 = arith.mulf %99, %103 : vector<8x32xf32>
    %105 = vector.broadcast %84 : vector<1x32xf32> to vector<8x32xf32>
    %106 = arith.mulf %104, %105 : vector<8x32xf32>
    %107 = vector.broadcast %86 : vector<1x32xf32> to vector<8x32xf32>
    %108 = arith.addf %106, %107 : vector<8x32xf32>
    %109 = arith.truncf %108 : vector<8x32xf32> to vector<8x32xbf16>
    %c0_46 = arith.constant 0 : index
    %c0_47 = arith.constant 0 : index
    %c0_48 = arith.constant 0 : index
    %110 = vector.load %arg12[%c0_46, %c0_47, %c0_48] : memref<1x32x128xbf16, #tpu.memory_space<vmem>>, vector<1x32x128xbf16>
    %111 = vector.shape_cast %110 : vector<1x32x128xbf16> to vector<32x128xbf16>
    %cst_49 = arith.constant dense<0.000000e+00> : vector<8x128xf32>
    %112 = tpu.matmul %109, %111, %cst_49 {dimension_numbers = #tpu.dot_dimension_numbers<[1], [0], [0], [1], [0, 0, 1, 1], [], []>} : vector<8x32xbf16>, vector<32x128xbf16>, vector<8x128xf32> -> vector<8x128xf32>
    %c0_50 = arith.constant 0 : index
    %c0_51 = arith.constant 0 : index
    %c0_52 = arith.constant 0 : index
    %113 = vector.load %arg13[%c0_50, %c0_51, %c0_52] : memref<1x1x128xf32, #tpu.memory_space<vmem>>, vector<1x1x128xf32>
    %114 = vector.shape_cast %113 : vector<1x1x128xf32> to vector<1x128xf32>
    %115 = vector.broadcast %114 : vector<1x128xf32> to vector<8x128xf32>
    %116 = arith.addf %112, %115 : vector<8x128xf32>
    %117 = arith.mulf %116, %116 : vector<8x128xf32>
    %118 = arith.mulf %116, %117 : vector<8x128xf32>
    %cst_53 = arith.constant 4.471500e-02 : f32
    %119 = vector.broadcast %cst_53 : f32 to vector<8x128xf32>
    %120 = arith.mulf %119, %118 : vector<8x128xf32>
    %121 = arith.addf %116, %120 : vector<8x128xf32>
    %cst_54 = arith.constant 0.797884583 : f32
    %122 = vector.broadcast %cst_54 : f32 to vector<8x128xf32>
    %123 = arith.mulf %122, %121 : vector<8x128xf32>
    %124 = math.tanh %123 : vector<8x128xf32>
    %cst_55 = arith.constant 1.000000e+00 : f32
    %125 = vector.broadcast %cst_55 : f32 to vector<8x128xf32>
    %126 = arith.addf %125, %124 : vector<8x128xf32>
    %cst_56 = arith.constant 5.000000e-01 : f32
    %127 = vector.broadcast %cst_56 : f32 to vector<8x128xf32>
    %128 = arith.mulf %127, %126 : vector<8x128xf32>
    %129 = arith.mulf %116, %128 : vector<8x128xf32>
    %130 = arith.truncf %129 : vector<8x128xf32> to vector<8x128xbf16>
    %c0_57 = arith.constant 0 : index
    %c0_58 = arith.constant 0 : index
    %c0_59 = arith.constant 0 : index
    %131 = vector.load %arg14[%c0_57, %c0_58, %c0_59] : memref<1x128x32xbf16, #tpu.memory_space<vmem>>, vector<1x128x32xbf16>
    %132 = vector.shape_cast %131 : vector<1x128x32xbf16> to vector<128x32xbf16>
    %cst_60 = arith.constant dense<0.000000e+00> : vector<8x32xf32>
    %133 = tpu.matmul %130, %132, %cst_60 {dimension_numbers = #tpu.dot_dimension_numbers<[1], [0], [0], [1], [0, 0, 1, 1], [], []>} : vector<8x128xbf16>, vector<128x32xbf16>, vector<8x32xf32> -> vector<8x32xf32>
    %c0_61 = arith.constant 0 : index
    %c0_62 = arith.constant 0 : index
    %c0_63 = arith.constant 0 : index
    %134 = vector.load %arg15[%c0_61, %c0_62, %c0_63] : memref<1x1x32xf32, #tpu.memory_space<vmem>>, vector<1x1x32xf32>
    %135 = vector.shape_cast %134 : vector<1x1x32xf32> to vector<1x32xf32>
    %136 = vector.broadcast %135 : vector<1x32xf32> to vector<8x32xf32>
    %137 = arith.addf %133, %136 : vector<8x32xf32>
    %138 = arith.addf %82, %137 : vector<8x32xf32>
    %c0_64 = arith.constant 0 : index
    %c0_65 = arith.constant 0 : index
    %139 = vector.load %arg17[%c0_64, %c0_65] : memref<8x32xf32, #tpu.memory_space<vmem>>, vector<8x32xf32>
    tpu.vector_store %arg17[%c0_64, %c0_65], %138 {strides = array<i32>} : memref<8x32xf32, #tpu.memory_space<vmem>>, vector<8x32xf32>,
    %c2_i32 = arith.constant 2 : i32
    %140 = arith.cmpi eq, %arg1, %c2_i32 : i32
    %141 = arith.extui %140 : i1 to i32
    %c0_i32_66 = arith.constant 0 : i32
    %142 = arith.cmpi ne, %141, %c0_i32_66 : i32
    scf.if %142 {
      %cst_67 = arith.constant dense<0.000000e+00> : vector<32xf32>
      %143 = vector.multi_reduction <add>, %138, %cst_67 [0] : vector<8x32xf32> to vector<32xf32>
      %144 = vector.shape_cast %143 : vector<32xf32> to vector<1x32xf32>
      %cst_68 = arith.constant 8.000000e+00 : f32
      %145 = vector.broadcast %cst_68 : f32 to vector<1x32xf32>
      %146 = arith.divf %144, %145 : vector<1x32xf32>
      %c0_69 = arith.constant 0 : index
      %c0_70 = arith.constant 0 : index
      %c0_71 = arith.constant 0 : index
      %147 = vector.load %arg16[%c0_69, %c0_70, %c0_71] : memref<1x1x32xf32, #tpu.memory_space<vmem>>, vector<1x1x32xf32>
      %148 = vector.shape_cast %147 : vector<1x1x32xf32> to vector<1x32xf32>
      %149 = vector.shape_cast %146 : vector<1x32xf32> to vector<1x1x32xf32>
      tpu.vector_store %arg16[%c0_69, %c0_70, %c0_71], %149 {strides = array<i32>} : memref<1x1x32xf32, #tpu.memory_space<vmem>>, vector<1x1x32xf32>,
    } else {
    }
    return
  }
  func.func @transform_0(%arg0: i32, %arg1: i32) -> (i32, i32, i32) {
    %c0_i32 = arith.constant 0 : i32
    %c0_i32_0 = arith.constant 0 : i32
    %c0_i32_1 = arith.constant 0 : i32
    return %arg0, %c0_i32, %c0_i32_0 : i32, i32, i32
  }
  func.func @transform_1(%arg0: i32, %arg1: i32) -> (i32, i32, i32) {
    %c0_i32 = arith.constant 0 : i32
    %c0_i32_0 = arith.constant 0 : i32
    %c0_i32_1 = arith.constant 0 : i32
    return %arg0, %c0_i32, %c0_i32_0 : i32, i32, i32
  }
  func.func @transform_2(%arg0: i32, %arg1: i32) -> (i32, i32, i32) {
    %c0_i32 = arith.constant 0 : i32
    %c0_i32_0 = arith.constant 0 : i32
    %c0_i32_1 = arith.constant 0 : i32
    return %arg1, %c0_i32, %c0_i32_0 : i32, i32, i32
  }
  func.func @transform_3(%arg0: i32, %arg1: i32) -> (i32, i32, i32) {
    %c0_i32 = arith.constant 0 : i32
    %c0_i32_0 = arith.constant 0 : i32
    %c0_i32_1 = arith.constant 0 : i32
    return %arg1, %c0_i32, %c0_i32_0 : i32, i32, i32
  }
  func.func @transform_4(%arg0: i32, %arg1: i32) -> (i32, i32, i32) {
    %c0_i32 = arith.constant 0 : i32
    %c0_i32_0 = arith.constant 0 : i32
    %c0_i32_1 = arith.constant 0 : i32
    return %arg1, %c0_i32, %c0_i32_0 : i32, i32, i32
  }
  func.func @transform_5(%arg0: i32, %arg1: i32) -> (i32, i32, i32) {
    %c0_i32 = arith.constant 0 : i32
    %c0_i32_0 = arith.constant 0 : i32
    %c0_i32_1 = arith.constant 0 : i32
    return %arg1, %c0_i32, %c0_i32_0 : i32, i32, i32
  }
  func.func @transform_6(%arg0: i32, %arg1: i32) -> (i32, i32, i32) {
    %c0_i32 = arith.constant 0 : i32
    %c0_i32_0 = arith.constant 0 : i32
    %c0_i32_1 = arith.constant 0 : i32
    return %arg1, %c0_i32, %c0_i32_0 : i32, i32, i32
  }
  func.func @transform_7(%arg0: i32, %arg1: i32) -> (i32, i32, i32) {
    %c0_i32 = arith.constant 0 : i32
    %c0_i32_0 = arith.constant 0 : i32
    %c0_i32_1 = arith.constant 0 : i32
    return %arg1, %c0_i32, %c0_i32_0 : i32, i32, i32
  }
  func.func @transform_8(%arg0: i32, %arg1: i32) -> (i32, i32, i32) {
    %c0_i32 = arith.constant 0 : i32
    %c0_i32_0 = arith.constant 0 : i32
    %c0_i32_1 = arith.constant 0 : i32
    return %arg1, %c0_i32, %c0_i32_0 : i32, i32, i32
  }
  func.func @transform_9(%arg0: i32, %arg1: i32) -> (i32, i32, i32) {
    %c0_i32 = arith.constant 0 : i32
    %c0_i32_0 = arith.constant 0 : i32
    %c0_i32_1 = arith.constant 0 : i32
    return %arg1, %c0_i32, %c0_i32_0 : i32, i32, i32
  }
  func.func @transform_10(%arg0: i32, %arg1: i32) -> (i32, i32, i32) {
    %c0_i32 = arith.constant 0 : i32
    %c0_i32_0 = arith.constant 0 : i32
    %c0_i32_1 = arith.constant 0 : i32
    return %arg1, %c0_i32, %c0_i32_0 : i32, i32, i32
  }
  func.func @transform_11(%arg0: i32, %arg1: i32) -> (i32, i32, i32) {
    %c0_i32 = arith.constant 0 : i32
    %c0_i32_0 = arith.constant 0 : i32
    %c0_i32_1 = arith.constant 0 : i32
    return %arg1, %c0_i32, %c0_i32_0 : i32, i32, i32
  }
  func.func @transform_12(%arg0: i32, %arg1: i32) -> (i32, i32, i32) {
    %c0_i32 = arith.constant 0 : i32
    %c0_i32_0 = arith.constant 0 : i32
    %c0_i32_1 = arith.constant 0 : i32
    return %arg1, %c0_i32, %c0_i32_0 : i32, i32, i32
  }
  func.func @transform_13(%arg0: i32, %arg1: i32) -> (i32, i32, i32) {
    %c0_i32 = arith.constant 0 : i32
    %c0_i32_0 = arith.constant 0 : i32
    %c0_i32_1 = arith.constant 0 : i32
    return %arg1, %c0_i32, %c0_i32_0 : i32, i32, i32
  }
  func.func @transform_14(%arg0: i32, %arg1: i32) -> (i32, i32, i32) {
    %c0_i32 = arith.constant 0 : i32
    %c0_i32_0 = arith.constant 0 : i32
    %c0_i32_1 = arith.constant 0 : i32
    return %arg0, %c0_i32, %c0_i32_0 : i32, i32, i32
  }
}

module attributes {stable_mosaic.version = 11 : i64} {
  func.func @_fused_kernel(%arg0: i32, %arg1: i32, %arg2: memref<1x8x32xf32, #tpu.memory_space<vmem>>, %arg3: memref<1x1x8xf32, #tpu.memory_space<vmem>>, %arg4: memref<1x1x32xf32, #tpu.memory_space<vmem>>, %arg5: memref<1x1x32xf32, #tpu.memory_space<vmem>>, %arg6: memref<1x32x96xbf16, #tpu.memory_space<vmem>>, %arg7: memref<1x1x96xf32, #tpu.memory_space<vmem>>, %arg8: memref<1x32x32xbf16, #tpu.memory_space<vmem>>, %arg9: memref<1x1x32xf32, #tpu.memory_space<vmem>>, %arg10: memref<1x1x32xf32, #tpu.memory_space<vmem>>, %arg11: memref<1x1x32xf32, #tpu.memory_space<vmem>>, %arg12: memref<1x32x128xbf16, #tpu.memory_space<vmem>>, %arg13: memref<1x1x128xf32, #tpu.memory_space<vmem>>, %arg14: memref<1x128x32xbf16, #tpu.memory_space<vmem>>, %arg15: memref<1x1x32xf32, #tpu.memory_space<vmem>>, %arg16: memref<1x1x32xf32, #tpu.memory_space<vmem>>, %arg17: memref<8x32xf32, #tpu.memory_space<vmem>>) attributes {dimension_semantics = [#tpu.dimension_semantics<parallel>, #tpu.dimension_semantics<arbitrary>], iteration_bounds = array<i64: 2, 3>, scalar_prefetch = 0 : i64, scratch_operands = 1 : i64, tpu.core_type = #tpu.core_type<tc>, window_params = [{transform_indices = @transform_0, window_bounds = array<i64: 1, 8, 32>}, {transform_indices = @transform_1, window_bounds = array<i64: 1, 1, 8>}, {transform_indices = @transform_2, window_bounds = array<i64: 1, 1, 32>}, {transform_indices = @transform_3, window_bounds = array<i64: 1, 1, 32>}, {transform_indices = @transform_4, window_bounds = array<i64: 1, 32, 96>}, {transform_indices = @transform_5, window_bounds = array<i64: 1, 1, 96>}, {transform_indices = @transform_6, window_bounds = array<i64: 1, 32, 32>}, {transform_indices = @transform_7, window_bounds = array<i64: 1, 1, 32>}, {transform_indices = @transform_8, window_bounds = array<i64: 1, 1, 32>}, {transform_indices = @transform_9, window_bounds = array<i64: 1, 1, 32>}, {transform_indices = @transform_10, window_bounds = array<i64: 1, 32, 128>}, {transform_indices = @transform_11, window_bounds = array<i64: 1, 1, 128>}, {transform_indices = @transform_12, window_bounds = array<i64: 1, 128, 32>}, {transform_indices = @transform_13, window_bounds = array<i64: 1, 1, 32>}, {transform_indices = @transform_14, window_bounds = array<i64: 1, 1, 32>}]} {
    %c0_i32 = arith.constant 0 : i32
    %0 = arith.cmpi eq, %arg1, %c0_i32 : i32
    %1 = arith.extui %0 : i1 to i32
    %c0_i32_0 = arith.constant 0 : i32
    %2 = arith.cmpi ne, %1, %c0_i32_0 : i32
    scf.if %2 {
      %c0_67 = arith.constant 0 : index
      %c0_68 = arith.constant 0 : index
      %c0_69 = arith.constant 0 : index
      %171 = vector.load %arg2[%c0_67, %c0_68, %c0_69] : memref<1x8x32xf32, #tpu.memory_space<vmem>>, vector<1x8x32xf32>
      %172 = vector.shape_cast %171 : vector<1x8x32xf32> to vector<8x32xf32>
      %c0_70 = arith.constant 0 : index
      %c0_71 = arith.constant 0 : index
      %173 = vector.load %arg17[%c0_70, %c0_71] : memref<8x32xf32, #tpu.memory_space<vmem>>, vector<8x32xf32>
      tpu.vector_store %arg17[%c0_70, %c0_71], %172 {strides = array<i32>} : memref<8x32xf32, #tpu.memory_space<vmem>>, vector<8x32xf32>,
    } else {
    }
    %c0 = arith.constant 0 : index
    %c0_1 = arith.constant 0 : index
    %3 = vector.load %arg17[%c0, %c0_1] : memref<8x32xf32, #tpu.memory_space<vmem>>, vector<8x32xf32>
    %c0_2 = arith.constant 0 : index
    %c0_3 = arith.constant 0 : index
    %c0_4 = arith.constant 0 : index
    %4 = vector.load %arg3[%c0_2, %c0_3, %c0_4] : memref<1x1x8xf32, #tpu.memory_space<vmem>>, vector<1x1x8xf32>
    %5 = vector.shape_cast %4 : vector<1x1x8xf32> to vector<1x8xf32>
    %cst = arith.constant 1.000000e+00 : f32
    %6 = vector.broadcast %cst : f32 to vector<1x8xf32>
    %7 = arith.subf %5, %6 : vector<1x8xf32>
    %cst_5 = arith.constant 1.000000e+09 : f32
    %8 = vector.broadcast %cst_5 : f32 to vector<1x8xf32>
    %9 = arith.mulf %7, %8 : vector<1x8xf32>
    %c0_6 = arith.constant 0 : index
    %c0_7 = arith.constant 0 : index
    %c0_8 = arith.constant 0 : index
    %10 = vector.load %arg4[%c0_6, %c0_7, %c0_8] : memref<1x1x32xf32, #tpu.memory_space<vmem>>, vector<1x1x32xf32>
    %11 = vector.shape_cast %10 : vector<1x1x32xf32> to vector<1x32xf32>
    %c0_9 = arith.constant 0 : index
    %c0_10 = arith.constant 0 : index
    %c0_11 = arith.constant 0 : index
    %12 = vector.load %arg5[%c0_9, %c0_10, %c0_11] : memref<1x1x32xf32, #tpu.memory_space<vmem>>, vector<1x1x32xf32>
    %13 = vector.shape_cast %12 : vector<1x1x32xf32> to vector<1x32xf32>
    %cst_12 = arith.constant dense<0.000000e+00> : vector<8xf32>
    %14 = vector.multi_reduction <add>, %3, %cst_12 [1] : vector<8x32xf32> to vector<8xf32>
    %15 = vector.shape_cast %14 : vector<8xf32> to vector<8x1xf32>
    %cst_13 = arith.constant 3.200000e+01 : f32
    %16 = vector.broadcast %cst_13 : f32 to vector<8x1xf32>
    %17 = arith.divf %15, %16 : vector<8x1xf32>
    %18 = vector.broadcast %17 : vector<8x1xf32> to vector<8x32xf32>
    %19 = arith.subf %3, %18 : vector<8x32xf32>
    %20 = arith.mulf %19, %19 : vector<8x32xf32>
    %cst_14 = arith.constant dense<0.000000e+00> : vector<8xf32>
    %21 = vector.multi_reduction <add>, %20, %cst_14 [1] : vector<8x32xf32> to vector<8xf32>
    %22 = vector.shape_cast %21 : vector<8xf32> to vector<8x1xf32>
    %cst_15 = arith.constant 3.200000e+01 : f32
    %23 = vector.broadcast %cst_15 : f32 to vector<8x1xf32>
    %24 = arith.divf %22, %23 : vector<8x1xf32>
    %25 = vector.broadcast %17 : vector<8x1xf32> to vector<8x32xf32>
    %26 = arith.subf %3, %25 : vector<8x32xf32>
    %cst_16 = arith.constant 9.99999974E-6 : f32
    %27 = vector.broadcast %cst_16 : f32 to vector<8x1xf32>
    %28 = arith.addf %24, %27 : vector<8x1xf32>
    %29 = math.rsqrt %28 : vector<8x1xf32>
    %30 = vector.broadcast %29 : vector<8x1xf32> to vector<8x32xf32>
    %31 = arith.mulf %26, %30 : vector<8x32xf32>
    %32 = vector.broadcast %11 : vector<1x32xf32> to vector<8x32xf32>
    %33 = arith.mulf %31, %32 : vector<8x32xf32>
    %34 = vector.broadcast %13 : vector<1x32xf32> to vector<8x32xf32>
    %35 = arith.addf %33, %34 : vector<8x32xf32>
    %36 = arith.truncf %35 : vector<8x32xf32> to vector<8x32xbf16>
    %c0_17 = arith.constant 0 : index
    %c0_18 = arith.constant 0 : index
    %c0_19 = arith.constant 0 : index
    %37 = vector.load %arg6[%c0_17, %c0_18, %c0_19] : memref<1x32x96xbf16, #tpu.memory_space<vmem>>, vector<1x32x96xbf16>
    %38 = vector.shape_cast %37 : vector<1x32x96xbf16> to vector<32x96xbf16>
    %cst_20 = arith.constant dense<0.000000e+00> : vector<8x96xf32>
    %39 = tpu.matmul %36, %38, %cst_20 {dimension_numbers = #tpu.dot_dimension_numbers<[1], [0], [0], [1], [0, 0, 1, 1], [], []>} : vector<8x32xbf16>, vector<32x96xbf16>, vector<8x96xf32> -> vector<8x96xf32>
    %c0_21 = arith.constant 0 : index
    %c0_22 = arith.constant 0 : index
    %c0_23 = arith.constant 0 : index
    %40 = vector.load %arg7[%c0_21, %c0_22, %c0_23] : memref<1x1x96xf32, #tpu.memory_space<vmem>>, vector<1x1x96xf32>
    %41 = vector.shape_cast %40 : vector<1x1x96xf32> to vector<1x96xf32>
    %42 = vector.broadcast %41 : vector<1x96xf32> to vector<8x96xf32>
    %43 = arith.addf %39, %42 : vector<8x96xf32>
    %44 = vector.extract_strided_slice %43 {offsets = [0, 0], sizes = [8, 32], strides = [1, 1]} : vector<8x96xf32> to vector<8x32xf32>
    %45 = vector.extract_strided_slice %44 {offsets = [0, 0], sizes = [8, 8], strides = [1, 1]} : vector<8x32xf32> to vector<8x8xf32>
    %46 = vector.extract_strided_slice %44 {offsets = [0, 8], sizes = [8, 8], strides = [1, 1]} : vector<8x32xf32> to vector<8x8xf32>
    %47 = vector.extract_strided_slice %44 {offsets = [0, 16], sizes = [8, 8], strides = [1, 1]} : vector<8x32xf32> to vector<8x8xf32>
    %48 = vector.extract_strided_slice %44 {offsets = [0, 24], sizes = [8, 8], strides = [1, 1]} : vector<8x32xf32> to vector<8x8xf32>
    %49 = vector.shape_cast %45 : vector<8x8xf32> to vector<1x8x8xf32>
    %50 = vector.shape_cast %46 : vector<8x8xf32> to vector<1x8x8xf32>
    %51 = vector.shape_cast %47 : vector<8x8xf32> to vector<1x8x8xf32>
    %52 = vector.shape_cast %48 : vector<8x8xf32> to vector<1x8x8xf32>
    %53 = tpu.concatenate %49, %50, %51, %52 in 0 : vector<1x8x8xf32>, vector<1x8x8xf32>, vector<1x8x8xf32>, vector<1x8x8xf32> -> vector<4x8x8xf32>
    %54 = arith.truncf %53 : vector<4x8x8xf32> to vector<4x8x8xbf16>
    %55 = vector.extract_strided_slice %43 {offsets = [0, 32], sizes = [8, 32], strides = [1, 1]} : vector<8x96xf32> to vector<8x32xf32>
    %56 = vector.extract_strided_slice %55 {offsets = [0, 0], sizes = [8, 8], strides = [1, 1]} : vector<8x32xf32> to vector<8x8xf32>
    %57 = vector.extract_strided_slice %55 {offsets = [0, 8], sizes = [8, 8], strides = [1, 1]} : vector<8x32xf32> to vector<8x8xf32>
    %58 = vector.extract_strided_slice %55 {offsets = [0, 16], sizes = [8, 8], strides = [1, 1]} : vector<8x32xf32> to vector<8x8xf32>
    %59 = vector.extract_strided_slice %55 {offsets = [0, 24], sizes = [8, 8], strides = [1, 1]} : vector<8x32xf32> to vector<8x8xf32>
    %60 = vector.shape_cast %56 : vector<8x8xf32> to vector<1x8x8xf32>
    %61 = vector.shape_cast %57 : vector<8x8xf32> to vector<1x8x8xf32>
    %62 = vector.shape_cast %58 : vector<8x8xf32> to vector<1x8x8xf32>
    %63 = vector.shape_cast %59 : vector<8x8xf32> to vector<1x8x8xf32>
    %64 = tpu.concatenate %60, %61, %62, %63 in 0 : vector<1x8x8xf32>, vector<1x8x8xf32>, vector<1x8x8xf32>, vector<1x8x8xf32> -> vector<4x8x8xf32>
    %65 = arith.truncf %64 : vector<4x8x8xf32> to vector<4x8x8xbf16>
    %66 = vector.extract_strided_slice %43 {offsets = [0, 64], sizes = [8, 32], strides = [1, 1]} : vector<8x96xf32> to vector<8x32xf32>
    %67 = vector.extract_strided_slice %66 {offsets = [0, 0], sizes = [8, 8], strides = [1, 1]} : vector<8x32xf32> to vector<8x8xf32>
    %68 = vector.extract_strided_slice %66 {offsets = [0, 8], sizes = [8, 8], strides = [1, 1]} : vector<8x32xf32> to vector<8x8xf32>
    %69 = vector.extract_strided_slice %66 {offsets = [0, 16], sizes = [8, 8], strides = [1, 1]} : vector<8x32xf32> to vector<8x8xf32>
    %70 = vector.extract_strided_slice %66 {offsets = [0, 24], sizes = [8, 8], strides = [1, 1]} : vector<8x32xf32> to vector<8x8xf32>
    %71 = vector.shape_cast %67 : vector<8x8xf32> to vector<1x8x8xf32>
    %72 = vector.shape_cast %68 : vector<8x8xf32> to vector<1x8x8xf32>
    %73 = vector.shape_cast %69 : vector<8x8xf32> to vector<1x8x8xf32>
    %74 = vector.shape_cast %70 : vector<8x8xf32> to vector<1x8x8xf32>
    %75 = tpu.concatenate %71, %72, %73, %74 in 0 : vector<1x8x8xf32>, vector<1x8x8xf32>, vector<1x8x8xf32>, vector<1x8x8xf32> -> vector<4x8x8xf32>
    %76 = arith.truncf %75 : vector<4x8x8xf32> to vector<4x8x8xbf16>
    "tpu.trace_start"() <{level = 10 : i32, message = "hqd,hkd->hqk"}> : () -> ()
    %cst_24 = arith.constant dense<0.000000e+00> : vector<4x8x8xf32>
    %77 = tpu.matmul %54, %65, %cst_24 {dimension_numbers = #tpu.dot_dimension_numbers<[2], [2], [1], [1], [0, 0, 0, 1, 1, 1], [0], [0]>} : vector<4x8x8xbf16>, vector<4x8x8xbf16>, vector<4x8x8xf32> -> vector<4x8x8xf32>
    "tpu.trace_stop"() : () -> ()
    %78 = vector.shape_cast %9 : vector<1x8xf32> to vector<1x1x8xf32>
    %79 = vector.broadcast %78 : vector<1x1x8xf32> to vector<4x8x8xf32>
    %80 = arith.addf %77, %79 : vector<4x8x8xf32>
    %cst_25 = arith.constant dense<0xFF800000> : vector<4x8xf32>
    %81 = vector.multi_reduction <maximumf>, %80, %cst_25 [2] : vector<4x8x8xf32> to vector<4x8xf32>
    %82 = vector.shape_cast %81 : vector<4x8xf32> to vector<4x8x1xf32>
    %83 = vector.broadcast %82 : vector<4x8x1xf32> to vector<4x8x8xf32>
    %84 = arith.subf %80, %83 : vector<4x8x8xf32>
    %85 = math.exp %84 : vector<4x8x8xf32>
    %cst_26 = arith.constant dense<0.000000e+00> : vector<4x8xf32>
    %86 = vector.multi_reduction <add>, %85, %cst_26 [2] : vector<4x8x8xf32> to vector<4x8xf32>
    %87 = vector.shape_cast %86 : vector<4x8xf32> to vector<4x8x1xf32>
    %88 = arith.truncf %85 : vector<4x8x8xf32> to vector<4x8x8xbf16>
    "tpu.trace_start"() <{level = 10 : i32, message = "hqk,hkd->hqd"}> : () -> ()
    %cst_27 = arith.constant dense<0.000000e+00> : vector<4x8x8xf32>
    %89 = tpu.matmul %88, %76, %cst_27 {dimension_numbers = #tpu.dot_dimension_numbers<[2], [1], [1], [2], [0, 0, 0, 1, 1, 2], [0], [0]>} : vector<4x8x8xbf16>, vector<4x8x8xbf16>, vector<4x8x8xf32> -> vector<4x8x8xf32>
    "tpu.trace_stop"() : () -> ()
    %90 = tpu.reciprocal %87 {approx = true} : vector<4x8x1xf32> -> vector<4x8x1xf32>
    %91 = vector.broadcast %90 : vector<4x8x1xf32> to vector<4x8x8xf32>
    %92 = arith.mulf %89, %91 : vector<4x8x8xf32>
    %93 = vector.extract_strided_slice %92 {offsets = [0, 0, 0], sizes = [1, 8, 8], strides = [1, 1, 1]} : vector<4x8x8xf32> to vector<1x8x8xf32>
    %94 = vector.shape_cast %93 : vector<1x8x8xf32> to vector<8x8xf32>
    %95 = vector.extract_strided_slice %92 {offsets = [1, 0, 0], sizes = [1, 8, 8], strides = [1, 1, 1]} : vector<4x8x8xf32> to vector<1x8x8xf32>
    %96 = vector.shape_cast %95 : vector<1x8x8xf32> to vector<8x8xf32>
    %97 = vector.extract_strided_slice %92 {offsets = [2, 0, 0], sizes = [1, 8, 8], strides = [1, 1, 1]} : vector<4x8x8xf32> to vector<1x8x8xf32>
    %98 = vector.shape_cast %97 : vector<1x8x8xf32> to vector<8x8xf32>
    %99 = vector.extract_strided_slice %92 {offsets = [3, 0, 0], sizes = [1, 8, 8], strides = [1, 1, 1]} : vector<4x8x8xf32> to vector<1x8x8xf32>
    %100 = vector.shape_cast %99 : vector<1x8x8xf32> to vector<8x8xf32>
    %101 = tpu.concatenate %94, %96, %98, %100 in 1 : vector<8x8xf32>, vector<8x8xf32>, vector<8x8xf32>, vector<8x8xf32> -> vector<8x32xf32>
    %102 = arith.truncf %101 : vector<8x32xf32> to vector<8x32xbf16>
    %c0_28 = arith.constant 0 : index
    %c0_29 = arith.constant 0 : index
    %c0_30 = arith.constant 0 : index
    %103 = vector.load %arg8[%c0_28, %c0_29, %c0_30] : memref<1x32x32xbf16, #tpu.memory_space<vmem>>, vector<1x32x32xbf16>
    %104 = vector.shape_cast %103 : vector<1x32x32xbf16> to vector<32x32xbf16>
    %cst_31 = arith.constant dense<0.000000e+00> : vector<8x32xf32>
    %105 = tpu.matmul %102, %104, %cst_31 {dimension_numbers = #tpu.dot_dimension_numbers<[1], [0], [0], [1], [0, 0, 1, 1], [], []>} : vector<8x32xbf16>, vector<32x32xbf16>, vector<8x32xf32> -> vector<8x32xf32>
    %c0_32 = arith.constant 0 : index
    %c0_33 = arith.constant 0 : index
    %c0_34 = arith.constant 0 : index
    %106 = vector.load %arg9[%c0_32, %c0_33, %c0_34] : memref<1x1x32xf32, #tpu.memory_space<vmem>>, vector<1x1x32xf32>
    %107 = vector.shape_cast %106 : vector<1x1x32xf32> to vector<1x32xf32>
    %108 = vector.broadcast %107 : vector<1x32xf32> to vector<8x32xf32>
    %109 = arith.addf %105, %108 : vector<8x32xf32>
    %110 = arith.addf %3, %109 : vector<8x32xf32>
    %c0_35 = arith.constant 0 : index
    %c0_36 = arith.constant 0 : index
    %c0_37 = arith.constant 0 : index
    %111 = vector.load %arg10[%c0_35, %c0_36, %c0_37] : memref<1x1x32xf32, #tpu.memory_space<vmem>>, vector<1x1x32xf32>
    %112 = vector.shape_cast %111 : vector<1x1x32xf32> to vector<1x32xf32>
    %c0_38 = arith.constant 0 : index
    %c0_39 = arith.constant 0 : index
    %c0_40 = arith.constant 0 : index
    %113 = vector.load %arg11[%c0_38, %c0_39, %c0_40] : memref<1x1x32xf32, #tpu.memory_space<vmem>>, vector<1x1x32xf32>
    %114 = vector.shape_cast %113 : vector<1x1x32xf32> to vector<1x32xf32>
    %cst_41 = arith.constant dense<0.000000e+00> : vector<8xf32>
    %115 = vector.multi_reduction <add>, %110, %cst_41 [1] : vector<8x32xf32> to vector<8xf32>
    %116 = vector.shape_cast %115 : vector<8xf32> to vector<8x1xf32>
    %cst_42 = arith.constant 3.200000e+01 : f32
    %117 = vector.broadcast %cst_42 : f32 to vector<8x1xf32>
    %118 = arith.divf %116, %117 : vector<8x1xf32>
    %119 = vector.broadcast %118 : vector<8x1xf32> to vector<8x32xf32>
    %120 = arith.subf %110, %119 : vector<8x32xf32>
    %121 = arith.mulf %120, %120 : vector<8x32xf32>
    %cst_43 = arith.constant dense<0.000000e+00> : vector<8xf32>
    %122 = vector.multi_reduction <add>, %121, %cst_43 [1] : vector<8x32xf32> to vector<8xf32>
    %123 = vector.shape_cast %122 : vector<8xf32> to vector<8x1xf32>
    %cst_44 = arith.constant 3.200000e+01 : f32
    %124 = vector.broadcast %cst_44 : f32 to vector<8x1xf32>
    %125 = arith.divf %123, %124 : vector<8x1xf32>
    %126 = vector.broadcast %118 : vector<8x1xf32> to vector<8x32xf32>
    %127 = arith.subf %110, %126 : vector<8x32xf32>
    %cst_45 = arith.constant 9.99999974E-6 : f32
    %128 = vector.broadcast %cst_45 : f32 to vector<8x1xf32>
    %129 = arith.addf %125, %128 : vector<8x1xf32>
    %130 = math.rsqrt %129 : vector<8x1xf32>
    %131 = vector.broadcast %130 : vector<8x1xf32> to vector<8x32xf32>
    %132 = arith.mulf %127, %131 : vector<8x32xf32>
    %133 = vector.broadcast %112 : vector<1x32xf32> to vector<8x32xf32>
    %134 = arith.mulf %132, %133 : vector<8x32xf32>
    %135 = vector.broadcast %114 : vector<1x32xf32> to vector<8x32xf32>
    %136 = arith.addf %134, %135 : vector<8x32xf32>
    %137 = arith.truncf %136 : vector<8x32xf32> to vector<8x32xbf16>
    %c0_46 = arith.constant 0 : index
    %c0_47 = arith.constant 0 : index
    %c0_48 = arith.constant 0 : index
    %138 = vector.load %arg12[%c0_46, %c0_47, %c0_48] : memref<1x32x128xbf16, #tpu.memory_space<vmem>>, vector<1x32x128xbf16>
    %139 = vector.shape_cast %138 : vector<1x32x128xbf16> to vector<32x128xbf16>
    %cst_49 = arith.constant dense<0.000000e+00> : vector<8x128xf32>
    %140 = tpu.matmul %137, %139, %cst_49 {dimension_numbers = #tpu.dot_dimension_numbers<[1], [0], [0], [1], [0, 0, 1, 1], [], []>} : vector<8x32xbf16>, vector<32x128xbf16>, vector<8x128xf32> -> vector<8x128xf32>
    %c0_50 = arith.constant 0 : index
    %c0_51 = arith.constant 0 : index
    %c0_52 = arith.constant 0 : index
    %141 = vector.load %arg13[%c0_50, %c0_51, %c0_52] : memref<1x1x128xf32, #tpu.memory_space<vmem>>, vector<1x1x128xf32>
    %142 = vector.shape_cast %141 : vector<1x1x128xf32> to vector<1x128xf32>
    %143 = vector.broadcast %142 : vector<1x128xf32> to vector<8x128xf32>
    %144 = arith.addf %140, %143 : vector<8x128xf32>
    %145 = arith.mulf %144, %144 : vector<8x128xf32>
    %146 = arith.mulf %144, %145 : vector<8x128xf32>
    %cst_53 = arith.constant 4.471500e-02 : f32
    %147 = vector.broadcast %cst_53 : f32 to vector<8x128xf32>
    %148 = arith.mulf %147, %146 : vector<8x128xf32>
    %149 = arith.addf %144, %148 : vector<8x128xf32>
    %cst_54 = arith.constant 0.797884583 : f32
    %150 = vector.broadcast %cst_54 : f32 to vector<8x128xf32>
    %151 = arith.mulf %150, %149 : vector<8x128xf32>
    %152 = math.tanh %151 : vector<8x128xf32>
    %cst_55 = arith.constant 1.000000e+00 : f32
    %153 = vector.broadcast %cst_55 : f32 to vector<8x128xf32>
    %154 = arith.addf %153, %152 : vector<8x128xf32>
    %cst_56 = arith.constant 5.000000e-01 : f32
    %155 = vector.broadcast %cst_56 : f32 to vector<8x128xf32>
    %156 = arith.mulf %155, %154 : vector<8x128xf32>
    %157 = arith.mulf %144, %156 : vector<8x128xf32>
    %158 = arith.truncf %157 : vector<8x128xf32> to vector<8x128xbf16>
    %c0_57 = arith.constant 0 : index
    %c0_58 = arith.constant 0 : index
    %c0_59 = arith.constant 0 : index
    %159 = vector.load %arg14[%c0_57, %c0_58, %c0_59] : memref<1x128x32xbf16, #tpu.memory_space<vmem>>, vector<1x128x32xbf16>
    %160 = vector.shape_cast %159 : vector<1x128x32xbf16> to vector<128x32xbf16>
    %cst_60 = arith.constant dense<0.000000e+00> : vector<8x32xf32>
    %161 = tpu.matmul %158, %160, %cst_60 {dimension_numbers = #tpu.dot_dimension_numbers<[1], [0], [0], [1], [0, 0, 1, 1], [], []>} : vector<8x128xbf16>, vector<128x32xbf16>, vector<8x32xf32> -> vector<8x32xf32>
    %c0_61 = arith.constant 0 : index
    %c0_62 = arith.constant 0 : index
    %c0_63 = arith.constant 0 : index
    %162 = vector.load %arg15[%c0_61, %c0_62, %c0_63] : memref<1x1x32xf32, #tpu.memory_space<vmem>>, vector<1x1x32xf32>
    %163 = vector.shape_cast %162 : vector<1x1x32xf32> to vector<1x32xf32>
    %164 = vector.broadcast %163 : vector<1x32xf32> to vector<8x32xf32>
    %165 = arith.addf %161, %164 : vector<8x32xf32>
    %166 = arith.addf %110, %165 : vector<8x32xf32>
    %c0_64 = arith.constant 0 : index
    %c0_65 = arith.constant 0 : index
    %167 = vector.load %arg17[%c0_64, %c0_65] : memref<8x32xf32, #tpu.memory_space<vmem>>, vector<8x32xf32>
    tpu.vector_store %arg17[%c0_64, %c0_65], %166 {strides = array<i32>} : memref<8x32xf32, #tpu.memory_space<vmem>>, vector<8x32xf32>,
    %c2_i32 = arith.constant 2 : i32
    %168 = arith.cmpi eq, %arg1, %c2_i32 : i32
    %169 = arith.extui %168 : i1 to i32
    %c0_i32_66 = arith.constant 0 : i32
    %170 = arith.cmpi ne, %169, %c0_i32_66 : i32
    scf.if %170 {
      %cst_67 = arith.constant dense<0.000000e+00> : vector<32xf32>
      %171 = vector.multi_reduction <add>, %166, %cst_67 [0] : vector<8x32xf32> to vector<32xf32>
      %172 = vector.shape_cast %171 : vector<32xf32> to vector<1x32xf32>
      %cst_68 = arith.constant 8.000000e+00 : f32
      %173 = vector.broadcast %cst_68 : f32 to vector<1x32xf32>
      %174 = arith.divf %172, %173 : vector<1x32xf32>
      %c0_69 = arith.constant 0 : index
      %c0_70 = arith.constant 0 : index
      %c0_71 = arith.constant 0 : index
      %175 = vector.load %arg16[%c0_69, %c0_70, %c0_71] : memref<1x1x32xf32, #tpu.memory_space<vmem>>, vector<1x1x32xf32>
      %176 = vector.shape_cast %175 : vector<1x1x32xf32> to vector<1x32xf32>
      %177 = vector.shape_cast %174 : vector<1x32xf32> to vector<1x1x32xf32>
      tpu.vector_store %arg16[%c0_69, %c0_70, %c0_71], %177 {strides = array<i32>} : memref<1x1x32xf32, #tpu.memory_space<vmem>>, vector<1x1x32xf32>,
    } else {
    }
    return
  }
  func.func @transform_0(%arg0: i32, %arg1: i32) -> (i32, i32, i32) {
    %c0_i32 = arith.constant 0 : i32
    %c0_i32_0 = arith.constant 0 : i32
    %c0_i32_1 = arith.constant 0 : i32
    return %arg0, %c0_i32, %c0_i32_0 : i32, i32, i32
  }
  func.func @transform_1(%arg0: i32, %arg1: i32) -> (i32, i32, i32) {
    %c0_i32 = arith.constant 0 : i32
    %c0_i32_0 = arith.constant 0 : i32
    %c0_i32_1 = arith.constant 0 : i32
    return %arg0, %c0_i32, %c0_i32_0 : i32, i32, i32
  }
  func.func @transform_2(%arg0: i32, %arg1: i32) -> (i32, i32, i32) {
    %c0_i32 = arith.constant 0 : i32
    %c0_i32_0 = arith.constant 0 : i32
    %c0_i32_1 = arith.constant 0 : i32
    return %arg1, %c0_i32, %c0_i32_0 : i32, i32, i32
  }
  func.func @transform_3(%arg0: i32, %arg1: i32) -> (i32, i32, i32) {
    %c0_i32 = arith.constant 0 : i32
    %c0_i32_0 = arith.constant 0 : i32
    %c0_i32_1 = arith.constant 0 : i32
    return %arg1, %c0_i32, %c0_i32_0 : i32, i32, i32
  }
  func.func @transform_4(%arg0: i32, %arg1: i32) -> (i32, i32, i32) {
    %c0_i32 = arith.constant 0 : i32
    %c0_i32_0 = arith.constant 0 : i32
    %c0_i32_1 = arith.constant 0 : i32
    return %arg1, %c0_i32, %c0_i32_0 : i32, i32, i32
  }
  func.func @transform_5(%arg0: i32, %arg1: i32) -> (i32, i32, i32) {
    %c0_i32 = arith.constant 0 : i32
    %c0_i32_0 = arith.constant 0 : i32
    %c0_i32_1 = arith.constant 0 : i32
    return %arg1, %c0_i32, %c0_i32_0 : i32, i32, i32
  }
  func.func @transform_6(%arg0: i32, %arg1: i32) -> (i32, i32, i32) {
    %c0_i32 = arith.constant 0 : i32
    %c0_i32_0 = arith.constant 0 : i32
    %c0_i32_1 = arith.constant 0 : i32
    return %arg1, %c0_i32, %c0_i32_0 : i32, i32, i32
  }
  func.func @transform_7(%arg0: i32, %arg1: i32) -> (i32, i32, i32) {
    %c0_i32 = arith.constant 0 : i32
    %c0_i32_0 = arith.constant 0 : i32
    %c0_i32_1 = arith.constant 0 : i32
    return %arg1, %c0_i32, %c0_i32_0 : i32, i32, i32
  }
  func.func @transform_8(%arg0: i32, %arg1: i32) -> (i32, i32, i32) {
    %c0_i32 = arith.constant 0 : i32
    %c0_i32_0 = arith.constant 0 : i32
    %c0_i32_1 = arith.constant 0 : i32
    return %arg1, %c0_i32, %c0_i32_0 : i32, i32, i32
  }
  func.func @transform_9(%arg0: i32, %arg1: i32) -> (i32, i32, i32) {
    %c0_i32 = arith.constant 0 : i32
    %c0_i32_0 = arith.constant 0 : i32
    %c0_i32_1 = arith.constant 0 : i32
    return %arg1, %c0_i32, %c0_i32_0 : i32, i32, i32
  }
  func.func @transform_10(%arg0: i32, %arg1: i32) -> (i32, i32, i32) {
    %c0_i32 = arith.constant 0 : i32
    %c0_i32_0 = arith.constant 0 : i32
    %c0_i32_1 = arith.constant 0 : i32
    return %arg1, %c0_i32, %c0_i32_0 : i32, i32, i32
  }
  func.func @transform_11(%arg0: i32, %arg1: i32) -> (i32, i32, i32) {
    %c0_i32 = arith.constant 0 : i32
    %c0_i32_0 = arith.constant 0 : i32
    %c0_i32_1 = arith.constant 0 : i32
    return %arg1, %c0_i32, %c0_i32_0 : i32, i32, i32
  }
  func.func @transform_12(%arg0: i32, %arg1: i32) -> (i32, i32, i32) {
    %c0_i32 = arith.constant 0 : i32
    %c0_i32_0 = arith.constant 0 : i32
    %c0_i32_1 = arith.constant 0 : i32
    return %arg1, %c0_i32, %c0_i32_0 : i32, i32, i32
  }
  func.func @transform_13(%arg0: i32, %arg1: i32) -> (i32, i32, i32) {
    %c0_i32 = arith.constant 0 : i32
    %c0_i32_0 = arith.constant 0 : i32
    %c0_i32_1 = arith.constant 0 : i32
    return %arg1, %c0_i32, %c0_i32_0 : i32, i32, i32
  }
  func.func @transform_14(%arg0: i32, %arg1: i32) -> (i32, i32, i32) {
    %c0_i32 = arith.constant 0 : i32
    %c0_i32_0 = arith.constant 0 : i32
    %c0_i32_1 = arith.constant 0 : i32
    return %arg0, %c0_i32, %c0_i32_0 : i32, i32, i32
  }
}

</mosaic_0001>

<llo_original>
// kernel: tpu_custom_call.1
$region0: #{tpu_custom_call.1}
  #allocation0 [shape = 'u32[]', space=smem, size = 0x4, offset = 0x4, fixed_abs, tag = 'smem constant byte address 0x4 - core index']
  #allocation1 [shape = 'u32[144,128]{1,0:T(1,128)}', space=vmem, size = 0x12000, scoped, tag = 'internal scratch']
  #allocation2 [shape = 'f32[8,32]{1,0:T(8,128)}', space=vmem, size = 0x1000, scoped, tag = 'scratch operand']
  %s0 = inlined_call_operand.vmem [shape: f32[2,8,32], index: 0, kind: input, shape index: {}]
  %s1 = inlined_call_operand.vmem [shape: f32[2,1,8], index: 1, kind: input, shape index: {}]
  %s2 = inlined_call_operand.vmem [shape: f32[3,1,32], index: 2, kind: input, shape index: {}]
  %s3 = inlined_call_operand.vmem [shape: f32[3,1,32], index: 3, kind: input, shape index: {}]
  %s4 = inlined_call_operand.vmem [shape: bf16[3,32,96], index: 4, kind: input, shape index: {}]
  %s5 = inlined_call_operand.vmem [shape: f32[3,1,96], index: 5, kind: input, shape index: {}]
  %s6 = inlined_call_operand.vmem [shape: bf16[3,32,32], index: 6, kind: input, shape index: {}]
  %s7 = inlined_call_operand.vmem [shape: f32[3,1,32], index: 7, kind: input, shape index: {}]
  %s8 = inlined_call_operand.vmem [shape: f32[3,1,32], index: 8, kind: input, shape index: {}]
  %s9 = inlined_call_operand.vmem [shape: f32[3,1,32], index: 9, kind: input, shape index: {}]
  %s10 = inlined_call_operand.vmem [shape: bf16[3,32,128], index: 10, kind: input, shape index: {}]
  %s11 = inlined_call_operand.vmem [shape: f32[3,1,128], index: 11, kind: input, shape index: {}]
  %s12 = inlined_call_operand.vmem [shape: bf16[3,128,32], index: 12, kind: input, shape index: {}]
  %s13 = inlined_call_operand.vmem [shape: f32[3,1,32], index: 13, kind: input, shape index: {}]
  %s14 = inlined_call_operand.hbm [shape: f32[2,1,32], index: 14, kind: output, shape index: {}]
  %s15 = sld [smem:[#allocation0]]
  $region97: #{tpu_custom_call.1} parent=0
    _
  %s17 = ssub.s32 1, %s15
  %s18 = scalar_select 0, %s17, %s15
  $region1: #{tpu_custom_call.1} parent=0
    #allocation3 [shape = 'u8[1024]{0}', space=vmem, size = 0x400, scoped, tag = 'output window, operand 0']
    #allocation4 [shape = 's32[2]{0}', space=sflag, size = 0x8, scoped, tag = 'scoped memory for tpu_custom_call.1']
    %19 = vsyncpa [#allocation4], 0
    %s20 = scalar_lea.sflag [#allocation4], 1
    %21 = vsyncpa %s20, 0
    loop: start=0, step=1, limit=8
    $region2: #{tpu_custom_call.1} parent=1 // loop_pre_header
      _
    $region3: #{tpu_custom_call.1} parent=1 // loop_header
      %s23 = sphi 0, %s27
      %p24 = scmp.ge.s32.totalorder %s23, 8
      %s30 = sphi 0, %s42
      %s31 = sphi 0, %s38
      %s32 = sphi 0, %s30
      %s33 = sphi 0, %s31
      %s34 = sphi 0, %s32
      %s35 = sphi 0, %s33
      %s45 = sphi 0, %s47
      %s48 = sphi 0, %s45
      %s49 = sphi 0, %s48
      %s65 = sphi 0, %s49
      %s71 = sphi 0, %s73
      %s74 = sphi 0, %s71
      %s75 = sphi 0, %s74
      %s91 = sphi 0, %s75
      %s97 = sphi 0, %s99
      %s100 = sphi 0, %s97
      %s101 = sphi 0, %s100
      %s117 = sphi 0, %s101
      %s123 = sphi 0, %s125
      %s126 = sphi 0, %s123
      %s127 = sphi 0, %s126
      %s143 = sphi 0, %s127
      %s149 = sphi 0, %s151
      %s152 = sphi 0, %s149
      %s153 = sphi 0, %s152
      %s169 = sphi 0, %s153
      %s175 = sphi 0, %s177
      %s178 = sphi 0, %s175
      %s179 = sphi 0, %s178
      %s195 = sphi 0, %s179
      %s201 = sphi 0, %s203
      %s204 = sphi 0, %s201
      %s205 = sphi 0, %s204
      %s221 = sphi 0, %s205
      %s227 = sphi 0, %s229
      %s230 = sphi 0, %s227
      %s231 = sphi 0, %s230
      %s247 = sphi 0, %s231
      %s253 = sphi 0, %s255
      %s256 = sphi 0, %s253
      %s257 = sphi 0, %s256
      %s273 = sphi 0, %s257
      %s279 = sphi 0, %s281
      %s282 = sphi 0, %s279
      %s283 = sphi 0, %s282
      %s299 = sphi 0, %s283
      %s305 = sphi 0, %s307
      %s308 = sphi 0, %s305
      %s309 = sphi 0, %s308
      %s325 = sphi 0, %s309
      %s331 = sphi 0, %s333
      %s334 = sphi 0, %s331
      %s335 = sphi 0, %s334
      %s351 = sphi 0, %s335
      %s357 = sphi 0, %s359
      %s360 = sphi 0, %s357
      %s361 = sphi 0, %s360
      %s377 = sphi 0, %s361
      %s383 = sphi 0, %s385
      %s386 = sphi 0, %s383
      %s387 = sphi 0, %s386
      %s403 = sphi 0, %s387
      %s409 = sphi 0, %s411
      %s412 = sphi 0, %s409
      %s413 = sphi 0, %s412
      %s429 = sphi 0, %s413
    $region4: #{tpu_custom_call.1} parent=1 // loop_header_branch
      %26 = sbr.rel (%p24) target = $region8
    $region5: #{tpu_custom_call.1} parent=1 // loop_body
      %s28 = ssub.s32 %s23, 1
      %s29 = ssub.s32 %s23, 2
      %s36 = sadd.s32 1, %s31
      %p37 = scmp.ge.s32.totalorder %s36, 3
      %s38 = scalar_select %p37, 0, %s36
      %s39 = sadd.s32 1, %s30
      %s40 = scalar_select %p37, %s39, %s30
      %p41 = scmp.ge.s32.totalorder %s40, 2
      %s42 = scalar_select %p41, 0, %s40
      %s43 = ssub.s32 %s30, %s42
      %p44 = scmp.eq.s32.totalorder %s43, 0
      %s46 = sadd.s32 %s45, 1
      %s47 = scalar_select %p44, %s45, %s46
      %p50 = pneg %p44
      %p51 = scmp.eq.s32.totalorder %s23, 5
      %p52 = por %p50, %p51
      %p53 = scmp.ne.s32.totalorder %s45, %s48
      %p54 = scmp.eq.s32.totalorder %s23, 0
      %p55 = por %p53, %p54
      %p56 = scmp.ne.s32.totalorder %s45, %s48
      %p57 = scmp.eq.s32.totalorder %s28, 5
      %p58 = por %p56, %p57
      %p59 = scmp.ne.s32.totalorder %s48, %s49
      %p60 = scmp.eq.s32.totalorder %s28, 0
      %p61 = por %p59, %p60
      %p62 = scmp.ne.s32.totalorder %s48, %s49
      %p63 = scmp.eq.s32.totalorder %s29, 5
      %p64 = por %p62, %p63
      %p66 = scmp.ne.s32.totalorder %s49, %s65
      %p67 = scmp.eq.s32.totalorder %s29, 0
      %p68 = por %p66, %p67
      %s69 = ssub.s32 %s30, %s42
      %p70 = scmp.eq.s32.totalorder %s69, 0
      %s72 = sadd.s32 %s71, 1
      %s73 = scalar_select %p70, %s71, %s72
      %p76 = pneg %p70
      %p77 = scmp.eq.s32.totalorder %s23, 5
      %p78 = por %p76, %p77
      %p79 = scmp.ne.s32.totalorder %s71, %s74
      %p80 = scmp.eq.s32.totalorder %s23, 0
      %p81 = por %p79, %p80
      %p82 = scmp.ne.s32.totalorder %s71, %s74
      %p83 = scmp.eq.s32.totalorder %s28, 5
      %p84 = por %p82, %p83
      %p85 = scmp.ne.s32.totalorder %s74, %s75
      %p86 = scmp.eq.s32.totalorder %s28, 0
      %p87 = por %p85, %p86
      %p88 = scmp.ne.s32.totalorder %s74, %s75
      %p89 = scmp.eq.s32.totalorder %s29, 5
      %p90 = por %p88, %p89
      %p92 = scmp.ne.s32.totalorder %s75, %s91
      %p93 = scmp.eq.s32.totalorder %s29, 0
      %p94 = por %p92, %p93
      %s95 = ssub.s32 %s31, %s38
      %p96 = scmp.eq.s32.totalorder %s95, 0
      %s98 = sadd.s32 %s97, 1
      %s99 = scalar_select %p96, %s97, %s98
      %p102 = pneg %p96
      %p103 = scmp.eq.s32.totalorder %s23, 5
      %p104 = por %p102, %p103
      %p105 = scmp.ne.s32.totalorder %s97, %s100
      %p106 = scmp.eq.s32.totalorder %s23, 0
      %p107 = por %p105, %p106
      %p108 = scmp.ne.s32.totalorder %s97, %s100
      %p109 = scmp.eq.s32.totalorder %s28, 5
      %p110 = por %p108, %p109
      %p111 = scmp.ne.s32.totalorder %s100, %s101
      %p112 = scmp.eq.s32.totalorder %s28, 0
      %p113 = por %p111, %p112
      %p114 = scmp.ne.s32.totalorder %s100, %s101
      %p115 = scmp.eq.s32.totalorder %s29, 5
      %p116 = por %p114, %p115
      %p118 = scmp.ne.s32.totalorder %s101, %s117
      %p119 = scmp.eq.s32.totalorder %s29, 0
      %p120 = por %p118, %p119
      %s121 = ssub.s32 %s31, %s38
      %p122 = scmp.eq.s32.totalorder %s121, 0
      %s124 = sadd.s32 %s123, 1
      %s125 = scalar_select %p122, %s123, %s124
      %p128 = pneg %p122
      %p129 = scmp.eq.s32.totalorder %s23, 5
      %p130 = por %p128, %p129
      %p131 = scmp.ne.s32.totalorder %s123, %s126
      %p132 = scmp.eq.s32.totalorder %s23, 0
      %p133 = por %p131, %p132
      %p134 = scmp.ne.s32.totalorder %s123, %s126
      %p135 = scmp.eq.s32.totalorder %s28, 5
      %p136 = por %p134, %p135
      %p137 = scmp.ne.s32.totalorder %s126, %s127
      %p138 = scmp.eq.s32.totalorder %s28, 0
      %p139 = por %p137, %p138
      %p140 = scmp.ne.s32.totalorder %s126, %s127
      %p141 = scmp.eq.s32.totalorder %s29, 5
      %p142 = por %p140, %p141
      %p144 = scmp.ne.s32.totalorder %s127, %s143
      %p145 = scmp.eq.s32.totalorder %s29, 0
      %p146 = por %p144, %p145
      %s147 = ssub.s32 %s31, %s38
      %p148 = scmp.eq.s32.totalorder %s147, 0
      %s150 = sadd.s32 %s149, 1
      %s151 = scalar_select %p148, %s149, %s150
      %p154 = pneg %p148
      %p155 = scmp.eq.s32.totalorder %s23, 5
      %p156 = por %p154, %p155
      %p157 = scmp.ne.s32.totalorder %s149, %s152
      %p158 = scmp.eq.s32.totalorder %s23, 0
      %p159 = por %p157, %p158
      %p160 = scmp.ne.s32.totalorder %s149, %s152
      %p161 = scmp.eq.s32.totalorder %s28, 5
      %p162 = por %p160, %p161
      %p163 = scmp.ne.s32.totalorder %s152, %s153
      %p164 = scmp.eq.s32.totalorder %s28, 0
      %p165 = por %p163, %p164
      %p166 = scmp.ne.s32.totalorder %s152, %s153
      %p167 = scmp.eq.s32.totalorder %s29, 5
      %p168 = por %p166, %p167
      %p170 = scmp.ne.s32.totalorder %s153, %s169
      %p171 = scmp.eq.s32.totalorder %s29, 0
      %p172 = por %p170, %p171
      %s173 = ssub.s32 %s31, %s38
      %p174 = scmp.eq.s32.totalorder %s173, 0
      %s176 = sadd.s32 %s175, 1
      %s177 = scalar_select %p174, %s175, %s176
      %p180 = pneg %p174
      %p181 = scmp.eq.s32.totalorder %s23, 5
      %p182 = por %p180, %p181
      %p183 = scmp.ne.s32.totalorder %s175, %s178
      %p184 = scmp.eq.s32.totalorder %s23, 0
      %p185 = por %p183, %p184
      %p186 = scmp.ne.s32.totalorder %s175, %s178
      %p187 = scmp.eq.s32.totalorder %s28, 5
      %p188 = por %p186, %p187
      %p189 = scmp.ne.s32.totalorder %s178, %s179
      %p190 = scmp.eq.s32.totalorder %s28, 0
      %p191 = por %p189, %p190
      %p192 = scmp.ne.s32.totalorder %s178, %s179
      %p193 = scmp.eq.s32.totalorder %s29, 5
      %p194 = por %p192, %p193
      %p196 = scmp.ne.s32.totalorder %s179, %s195
      %p197 = scmp.eq.s32.totalorder %s29, 0
      %p198 = por %p196, %p197
      %s199 = ssub.s32 %s31, %s38
      %p200 = scmp.eq.s32.totalorder %s199, 0
      %s202 = sadd.s32 %s201, 1
      %s203 = scalar_select %p200, %s201, %s202
      %p206 = pneg %p200
      %p207 = scmp.eq.s32.totalorder %s23, 5
      %p208 = por %p206, %p207
      %p209 = scmp.ne.s32.totalorder %s201, %s204
      %p210 = scmp.eq.s32.totalorder %s23, 0
      %p211 = por %p209, %p210
      %p212 = scmp.ne.s32.totalorder %s201, %s204
      %p213 = scmp.eq.s32.totalorder %s28, 5
      %p214 = por %p212, %p213
      %p215 = scmp.ne.s32.totalorder %s204, %s205
      %p216 = scmp.eq.s32.totalorder %s28, 0
      %p217 = por %p215, %p216
      %p218 = scmp.ne.s32.totalorder %s204, %s205
      %p219 = scmp.eq.s32.totalorder %s29, 5
      %p220 = por %p218, %p219
      %p222 = scmp.ne.s32.totalorder %s205, %s221
      %p223 = scmp.eq.s32.totalorder %s29, 0
      %p224 = por %p222, %p223
      %s225 = ssub.s32 %s31, %s38
      %p226 = scmp.eq.s32.totalorder %s225, 0
      %s228 = sadd.s32 %s227, 1
      %s229 = scalar_select %p226, %s227, %s228
      %p232 = pneg %p226
      %p233 = scmp.eq.s32.totalorder %s23, 5
      %p234 = por %p232, %p233
      %p235 = scmp.ne.s32.totalorder %s227, %s230
      %p236 = scmp.eq.s32.totalorder %s23, 0
      %p237 = por %p235, %p236
      %p238 = scmp.ne.s32.totalorder %s227, %s230
      %p239 = scmp.eq.s32.totalorder %s28, 5
      %p240 = por %p238, %p239
      %p241 = scmp.ne.s32.totalorder %s230, %s231
      %p242 = scmp.eq.s32.totalorder %s28, 0
      %p243 = por %p241, %p242
      %p244 = scmp.ne.s32.totalorder %s230, %s231
      %p245 = scmp.eq.s32.totalorder %s29, 5
      %p246 = por %p244, %p245
      %p248 = scmp.ne.s32.totalorder %s231, %s247
      %p249 = scmp.eq.s32.totalorder %s29, 0
      %p250 = por %p248, %p249
      %s251 = ssub.s32 %s31, %s38
      %p252 = scmp.eq.s32.totalorder %s251, 0
      %s254 = sadd.s32 %s253, 1
      %s255 = scalar_select %p252, %s253, %s254
      %p258 = pneg %p252
      %p259 = scmp.eq.s32.totalorder %s23, 5
      %p260 = por %p258, %p259
      %p261 = scmp.ne.s32.totalorder %s253, %s256
      %p262 = scmp.eq.s32.totalorder %s23, 0
      %p263 = por %p261, %p262
      %p264 = scmp.ne.s32.totalorder %s253, %s256
      %p265 = scmp.eq.s32.totalorder %s28, 5
      %p266 = por %p264, %p265
      %p267 = scmp.ne.s32.totalorder %s256, %s257
      %p268 = scmp.eq.s32.totalorder %s28, 0
      %p269 = por %p267, %p268
      %p270 = scmp.ne.s32.totalorder %s256, %s257
      %p271 = scmp.eq.s32.totalorder %s29, 5
      %p272 = por %p270, %p271
      %p274 = scmp.ne.s32.totalorder %s257, %s273
      %p275 = scmp.eq.s32.totalorder %s29, 0
      %p276 = por %p274, %p275
      %s277 = ssub.s32 %s31, %s38
      %p278 = scmp.eq.s32.totalorder %s277, 0
      %s280 = sadd.s32 %s279, 1
      %s281 = scalar_select %p278, %s279, %s280
      %p284 = pneg %p278
      %p285 = scmp.eq.s32.totalorder %s23, 5
      %p286 = por %p284, %p285
      %p287 = scmp.ne.s32.totalorder %s279, %s282
      %p288 = scmp.eq.s32.totalorder %s23, 0
      %p289 = por %p287, %p288
      %p290 = scmp.ne.s32.totalorder %s279, %s282
      %p291 = scmp.eq.s32.totalorder %s28, 5
      %p292 = por %p290, %p291
      %p293 = scmp.ne.s32.totalorder %s282, %s283
      %p294 = scmp.eq.s32.totalorder %s28, 0
      %p295 = por %p293, %p294
      %p296 = scmp.ne.s32.totalorder %s282, %s283
      %p297 = scmp.eq.s32.totalorder %s29, 5
      %p298 = por %p296, %p297
      %p300 = scmp.ne.s32.totalorder %s283, %s299
      %p301 = scmp.eq.s32.totalorder %s29, 0
      %p302 = por %p300, %p301
      %s303 = ssub.s32 %s31, %s38
      %p304 = scmp.eq.s32.totalorder %s303, 0
      %s306 = sadd.s32 %s305, 1
      %s307 = scalar_select %p304, %s305, %s306
      %p310 = pneg %p304
      %p311 = scmp.eq.s32.totalorder %s23, 5
      %p312 = por %p310, %p311
      %p313 = scmp.ne.s32.totalorder %s305, %s308
      %p314 = scmp.eq.s32.totalorder %s23, 0
      %p315 = por %p313, %p314
      %p316 = scmp.ne.s32.totalorder %s305, %s308
      %p317 = scmp.eq.s32.totalorder %s28, 5
      %p318 = por %p316, %p317
      %p319 = scmp.ne.s32.totalorder %s308, %s309
      %p320 = scmp.eq.s32.totalorder %s28, 0
      %p321 = por %p319, %p320
      %p322 = scmp.ne.s32.totalorder %s308, %s309
      %p323 = scmp.eq.s32.totalorder %s29, 5
      %p324 = por %p322, %p323
      %p326 = scmp.ne.s32.totalorder %s309, %s325
      %p327 = scmp.eq.s32.totalorder %s29, 0
      %p328 = por %p326, %p327
      %s329 = ssub.s32 %s31, %s38
      %p330 = scmp.eq.s32.totalorder %s329, 0
      %s332 = sadd.s32 %s331, 1
      %s333 = scalar_select %p330, %s331, %s332
      %p336 = pneg %p330
      %p337 = scmp.eq.s32.totalorder %s23, 5
      %p338 = por %p336, %p337
      %p339 = scmp.ne.s32.totalorder %s331, %s334
      %p340 = scmp.eq.s32.totalorder %s23, 0
      %p341 = por %p339, %p340
      %p342 = scmp.ne.s32.totalorder %s331, %s334
      %p343 = scmp.eq.s32.totalorder %s28, 5
      %p344 = por %p342, %p343
      %p345 = scmp.ne.s32.totalorder %s334, %s335
      %p346 = scmp.eq.s32.totalorder %s28, 0
      %p347 = por %p345, %p346
      %p348 = scmp.ne.s32.totalorder %s334, %s335
      %p349 = scmp.eq.s32.totalorder %s29, 5
      %p350 = por %p348, %p349
      %p352 = scmp.ne.s32.totalorder %s335, %s351
      %p353 = scmp.eq.s32.totalorder %s29, 0
      %p354 = por %p352, %p353
      %s355 = ssub.s32 %s31, %s38
      %p356 = scmp.eq.s32.totalorder %s355, 0
      %s358 = sadd.s32 %s357, 1
      %s359 = scalar_select %p356, %s357, %s358
      %p362 = pneg %p356
      %p363 = scmp.eq.s32.totalorder %s23, 5
      %p364 = por %p362, %p363
      %p365 = scmp.ne.s32.totalorder %s357, %s360
      %p366 = scmp.eq.s32.totalorder %s23, 0
      %p367 = por %p365, %p366
      %p368 = scmp.ne.s32.totalorder %s357, %s360
      %p369 = scmp.eq.s32.totalorder %s28, 5
      %p370 = por %p368, %p369
      %p371 = scmp.ne.s32.totalorder %s360, %s361
      %p372 = scmp.eq.s32.totalorder %s28, 0
      %p373 = por %p371, %p372
      %p374 = scmp.ne.s32.totalorder %s360, %s361
      %p375 = scmp.eq.s32.totalorder %s29, 5
      %p376 = por %p374, %p375
      %p378 = scmp.ne.s32.totalorder %s361, %s377
      %p379 = scmp.eq.s32.totalorder %s29, 0
      %p380 = por %p378, %p379
      %s381 = ssub.s32 %s31, %s38
      %p382 = scmp.eq.s32.totalorder %s381, 0
      %s384 = sadd.s32 %s383, 1
      %s385 = scalar_select %p382, %s383, %s384
      %p388 = pneg %p382
      %p389 = scmp.eq.s32.totalorder %s23, 5
      %p390 = por %p388, %p389
      %p391 = scmp.ne.s32.totalorder %s383, %s386
      %p392 = scmp.eq.s32.totalorder %s23, 0
      %p393 = por %p391, %p392
      %p394 = scmp.ne.s32.totalorder %s383, %s386
      %p395 = scmp.eq.s32.totalorder %s28, 5
      %p396 = por %p394, %p395
      %p397 = scmp.ne.s32.totalorder %s386, %s387
      %p398 = scmp.eq.s32.totalorder %s28, 0
      %p399 = por %p397, %p398
      %p400 = scmp.ne.s32.totalorder %s386, %s387
      %p401 = scmp.eq.s32.totalorder %s29, 5
      %p402 = por %p400, %p401
      %p404 = scmp.ne.s32.totalorder %s387, %s403
      %p405 = scmp.eq.s32.totalorder %s29, 0
      %p406 = por %p404, %p405
      %s407 = ssub.s32 %s30, %s42
      %p408 = scmp.eq.s32.totalorder %s407, 0
      %s410 = sadd.s32 %s409, 1
      %s411 = scalar_select %p408, %s409, %s410
      %p414 = pneg %p408
      %p415 = scmp.eq.s32.totalorder %s23, 5
      %p416 = por %p414, %p415
      %p417 = scmp.ne.s32.totalorder %s409, %s412
      %p418 = scmp.eq.s32.totalorder %s23, 0
      %p419 = por %p417, %p418
      %p420 = scmp.ne.s32.totalorder %s409, %s412
      %p421 = scmp.eq.s32.totalorder %s28, 5
      %p422 = por %p420, %p421
      %p423 = scmp.ne.s32.totalorder %s412, %s413
      %p424 = scmp.eq.s32.totalorder %s28, 0
      %p425 = por %p423, %p424
      %p426 = scmp.ne.s32.totalorder %s412, %s413
      %p427 = scmp.eq.s32.totalorder %s29, 5
      %p428 = por %p426, %p427
      %p430 = scmp.ne.s32.totalorder %s413, %s429
      %p431 = scmp.eq.s32.totalorder %s29, 0
      %p432 = por %p430, %p431
      %p433 = scmp.le.s32.totalorder 1, %s23
      %p434 = scmp.lt.s32.totalorder %s23, 7
      %p435 = pnand %p433, %p434
      %p436 = pneg %p435
      // Predicated region
      $region9: #{tpu_custom_call.1} parent=5 // pred_check
        _
      $region10: #{tpu_custom_call.1} parent=5 // pred_check_branch
        %438 = sbr.rel (%p435) target = $region12
      $region11: #{tpu_custom_call.1} parent=5 // pred_region
        %s439 = ssub.s32 %s23, 1
      $region12: #{tpu_custom_call.1} parent=5 // pred_fallthru
        _
      %p440 = scmp.lt.s32.totalorder %s23, 6
      // Predicated region
      $region13: #{tpu_custom_call.1} parent=5 // pred_check
        %p441 = pneg %p440
      $region14: #{tpu_custom_call.1} parent=5 // pred_check_branch
        %443 = sbr.rel (%p441) target = $region16
      $region15: #{tpu_custom_call.1} parent=5 // pred_region
        // Predicated region
        $region17: #{tpu_custom_call.1} parent=15 // pred_check
          %p444 = pneg %p55
        $region18: #{tpu_custom_call.1} parent=15 // pred_check_branch
          %446 = sbr.rel (%p444) target = $region20
        $region19: #{tpu_custom_call.1} parent=15 // pred_region
          %p447 = scmp.lt.s32.totalorder %s30, 1
          %s448 = scalar_select %p447, %s30, 1
          %s449 = smul.addr %s448, 8
          %s450 = scalar_lea.vmem %s0, %s449
        $region20: #{tpu_custom_call.1} parent=15 // pred_fallthru
          _
        // Predicated region
        $region21: #{tpu_custom_call.1} parent=15 // pred_check
          %p451 = pneg %p81
        $region22: #{tpu_custom_call.1} parent=15 // pred_check_branch
          %453 = sbr.rel (%p451) target = $region24
        $region23: #{tpu_custom_call.1} parent=15 // pred_region
          %p454 = scmp.lt.s32.totalorder %s30, 1
          %s455 = scalar_select %p454, %s30, 1
          %s456 = scalar_lea.vmem %s1, %s455
        $region24: #{tpu_custom_call.1} parent=15 // pred_fallthru
          _
        // Predicated region
        $region25: #{tpu_custom_call.1} parent=15 // pred_check
          %p457 = pneg %p107
        $region26: #{tpu_custom_call.1} parent=15 // pred_check_branch
          %459 = sbr.rel (%p457) target = $region28
        $region27: #{tpu_custom_call.1} parent=15 // pred_region
          %p460 = scmp.lt.s32.totalorder %s31, 2
          %s461 = scalar_select %p460, %s31, 2
          %s462 = scalar_lea.vmem %s2, %s461
        $region28: #{tpu_custom_call.1} parent=15 // pred_fallthru
          _
        // Predicated region
        $region29: #{tpu_custom_call.1} parent=15 // pred_check
          %p463 = pneg %p133
        $region30: #{tpu_custom_call.1} parent=15 // pred_check_branch
          %465 = sbr.rel (%p463) target = $region32
        $region31: #{tpu_custom_call.1} parent=15 // pred_region
          %p466 = scmp.lt.s32.totalorder %s31, 2
          %s467 = scalar_select %p466, %s31, 2
          %s468 = scalar_lea.vmem %s3, %s467
        $region32: #{tpu_custom_call.1} parent=15 // pred_fallthru
          _
        // Predicated region
        $region33: #{tpu_custom_call.1} parent=15 // pred_check
          %p469 = pneg %p159
        $region34: #{tpu_custom_call.1} parent=15 // pred_check_branch
          %471 = sbr.rel (%p469) target = $region36
        $region35: #{tpu_custom_call.1} parent=15 // pred_region
          %p472 = scmp.lt.s32.totalorder %s31, 2
          %s473 = scalar_select %p472, %s31, 2
          %s474 = smul.addr %s473, 4
          %s475 = smul.addr %s474, 4
          %s476 = scalar_lea.vmem %s4, %s475
        $region36: #{tpu_custom_call.1} parent=15 // pred_fallthru
          _
        // Predicated region
        $region37: #{tpu_custom_call.1} parent=15 // pred_check
          %p477 = pneg %p185
        $region38: #{tpu_custom_call.1} parent=15 // pred_check_branch
          %479 = sbr.rel (%p477) target = $region40
        $region39: #{tpu_custom_call.1} parent=15 // pred_region
          %p480 = scmp.lt.s32.totalorder %s31, 2
          %s481 = scalar_select %p480, %s31, 2
          %s482 = scalar_lea.vmem %s5, %s481
        $region40: #{tpu_custom_call.1} parent=15 // pred_fallthru
          _
        // Predicated region
        $region41: #{tpu_custom_call.1} parent=15 // pred_check
          %p483 = pneg %p211
        $region42: #{tpu_custom_call.1} parent=15 // pred_check_branch
          %485 = sbr.rel (%p483) target = $region44
        $region43: #{tpu_custom_call.1} parent=15 // pred_region
          %p486 = scmp.lt.s32.totalorder %s31, 2
          %s487 = scalar_select %p486, %s31, 2
          %s488 = smul.addr %s487, 4
          %s489 = smul.addr %s488, 4
          %s490 = scalar_lea.vmem %s6, %s489
        $region44: #{tpu_custom_call.1} parent=15 // pred_fallthru
          _
        // Predicated region
        $region45: #{tpu_custom_call.1} parent=15 // pred_check
          %p491 = pneg %p237
        $region46: #{tpu_custom_call.1} parent=15 // pred_check_branch
          %493 = sbr.rel (%p491) target = $region48
        $region47: #{tpu_custom_call.1} parent=15 // pred_region
          %p494 = scmp.lt.s32.totalorder %s31, 2
          %s495 = scalar_select %p494, %s31, 2
          %s496 = scalar_lea.vmem %s7, %s495
        $region48: #{tpu_custom_call.1} parent=15 // pred_fallthru
          _
        // Predicated region
        $region49: #{tpu_custom_call.1} parent=15 // pred_check
          %p497 = pneg %p263
        $region50: #{tpu_custom_call.1} parent=15 // pred_check_branch
          %499 = sbr.rel (%p497) target = $region52
        $region51: #{tpu_custom_call.1} parent=15 // pred_region
          %p500 = scmp.lt.s32.totalorder %s31, 2
          %s501 = scalar_select %p500, %s31, 2
          %s502 = scalar_lea.vmem %s8, %s501
        $region52: #{tpu_custom_call.1} parent=15 // pred_fallthru
          _
        // Predicated region
        $region53: #{tpu_custom_call.1} parent=15 // pred_check
          %p503 = pneg %p289
        $region54: #{tpu_custom_call.1} parent=15 // pred_check_branch
          %505 = sbr.rel (%p503) target = $region56
        $region55: #{tpu_custom_call.1} parent=15 // pred_region
          %p506 = scmp.lt.s32.totalorder %s31, 2
          %s507 = scalar_select %p506, %s31, 2
          %s508 = scalar_lea.vmem %s9, %s507
        $region56: #{tpu_custom_call.1} parent=15 // pred_fallthru
          _
        // Predicated region
        $region57: #{tpu_custom_call.1} parent=15 // pred_check
          %p509 = pneg %p315
        $region58: #{tpu_custom_call.1} parent=15 // pred_check_branch
          %511 = sbr.rel (%p509) target = $region60
        $region59: #{tpu_custom_call.1} parent=15 // pred_region
          %p512 = scmp.lt.s32.totalorder %s31, 2
          %s513 = scalar_select %p512, %s31, 2
          %s514 = smul.addr %s513, 4
          %s515 = smul.addr %s514, 4
          %s516 = scalar_lea.vmem %s10, %s515
        $region60: #{tpu_custom_call.1} parent=15 // pred_fallthru
          _
        // Predicated region
        $region61: #{tpu_custom_call.1} parent=15 // pred_check
          %p517 = pneg %p341
        $region62: #{tpu_custom_call.1} parent=15 // pred_check_branch
          %519 = sbr.rel (%p517) target = $region64
        $region63: #{tpu_custom_call.1} parent=15 // pred_region
          %p520 = scmp.lt.s32.totalorder %s31, 2
          %s521 = scalar_select %p520, %s31, 2
          %s522 = scalar_lea.vmem %s11, %s521
        $region64: #{tpu_custom_call.1} parent=15 // pred_fallthru
          _
        // Predicated region
        $region65: #{tpu_custom_call.1} parent=15 // pred_check
          %p523 = pneg %p367
        $region66: #{tpu_custom_call.1} parent=15 // pred_check_branch
          %525 = sbr.rel (%p523) target = $region68
        $region67: #{tpu_custom_call.1} parent=15 // pred_region
          %p526 = scmp.lt.s32.totalorder %s31, 2
          %s527 = scalar_select %p526, %s31, 2
          %s528 = smul.addr %s527, 16
          %s529 = smul.addr %s528, 4
          %s530 = scalar_lea.vmem %s12, %s529
        $region68: #{tpu_custom_call.1} parent=15 // pred_fallthru
          _
        // Predicated region
        $region69: #{tpu_custom_call.1} parent=15 // pred_check
          %p531 = pneg %p393
        $region70: #{tpu_custom_call.1} parent=15 // pred_check_branch
          %533 = sbr.rel (%p531) target = $region72
        $region71: #{tpu_custom_call.1} parent=15 // pred_region
          %p534 = scmp.lt.s32.totalorder %s31, 2
          %s535 = scalar_select %p534, %s31, 2
          %s536 = scalar_lea.vmem %s13, %s535
        $region72: #{tpu_custom_call.1} parent=15 // pred_fallthru
          _
      $region16: #{tpu_custom_call.1} parent=5 // pred_fallthru
        _
      %p537 = scmp.le.s32.totalorder 1, %s23
      %p538 = scmp.lt.s32.totalorder %s23, 7
      %p539 = pnand %p537, %p538
      %p540 = pneg %p539
      // Predicated region
      $region73: #{tpu_custom_call.1} parent=5 // pred_check
        _
      $region74: #{tpu_custom_call.1} parent=5 // pred_check_branch
        %542 = sbr.rel (%p539) target = $region76
      $region75: #{tpu_custom_call.1} parent=5 // pred_region
        %s543 = ssub.s32 %s23, 1
        %p544 = scmp.lt.s32.totalorder %s32, 1
        %s545 = scalar_select %p544, %s32, 1
        %s546 = smul.addr %s545, 8
        %s547 = scalar_lea.vmem %s0, %s546
        %p548 = pneg %p61
        %p549 = pneg %p58
        %p550 = scmp.lt.s32.totalorder %s32, 1
        %s551 = scalar_select %p550, %s32, 1
        %s552 = scalar_lea.vmem %s1, %s551
        %p553 = pneg %p87
        %p554 = pneg %p84
        %p555 = scmp.lt.s32.totalorder %s33, 2
        %s556 = scalar_select %p555, %s33, 2
        %s557 = scalar_lea.vmem %s2, %s556
        %p558 = pneg %p113
        %p559 = pneg %p110
        %p560 = scmp.lt.s32.totalorder %s33, 2
        %s561 = scalar_select %p560, %s33, 2
        %s562 = scalar_lea.vmem %s3, %s561
        %p563 = pneg %p139
        %p564 = pneg %p136
        %p565 = scmp.lt.s32.totalorder %s33, 2
        %s566 = scalar_select %p565, %s33, 2
        %s567 = smul.addr %s566, 4
        %s568 = smul.addr %s567, 4
        %s569 = scalar_lea.vmem %s4, %s568
        %p570 = pneg %p165
        %p571 = pneg %p162
        %p572 = scmp.lt.s32.totalorder %s33, 2
        %s573 = scalar_select %p572, %s33, 2
        %s574 = scalar_lea.vmem %s5, %s573
        %p575 = pneg %p191
        %p576 = pneg %p188
        %p577 = scmp.lt.s32.totalorder %s33, 2
        %s578 = scalar_select %p577, %s33, 2
        %s579 = smul.addr %s578, 4
        %s580 = smul.addr %s579, 4
        %s581 = scalar_lea.vmem %s6, %s580
        %p582 = pneg %p217
        %p583 = pneg %p214
        %p584 = scmp.lt.s32.totalorder %s33, 2
        %s585 = scalar_select %p584, %s33, 2
        %s586 = scalar_lea.vmem %s7, %s585
        %p587 = pneg %p243
        %p588 = pneg %p240
        %p589 = scmp.lt.s32.totalorder %s33, 2
        %s590 = scalar_select %p589, %s33, 2
        %s591 = scalar_lea.vmem %s8, %s590
        %p592 = pneg %p269
        %p593 = pneg %p266
        %p594 = scmp.lt.s32.totalorder %s33, 2
        %s595 = scalar_select %p594, %s33, 2
        %s596 = scalar_lea.vmem %s9, %s595
        %p597 = pneg %p295
        %p598 = pneg %p292
        %p599 = scmp.lt.s32.totalorder %s33, 2
        %s600 = scalar_select %p599, %s33, 2
        %s601 = smul.addr %s600, 4
        %s602 = smul.addr %s601, 4
        %s603 = scalar_lea.vmem %s10, %s602
        %p604 = pneg %p321
        %p605 = pneg %p318
        %p606 = scmp.lt.s32.totalorder %s33, 2
        %s607 = scalar_select %p606, %s33, 2
        %s608 = scalar_lea.vmem %s11, %s607
        %p609 = pneg %p347
        %p610 = pneg %p344
        %p611 = scmp.lt.s32.totalorder %s33, 2
        %s612 = scalar_select %p611, %s33, 2
        %s613 = smul.addr %s612, 16
        %s614 = smul.addr %s613, 4
        %s615 = scalar_lea.vmem %s12, %s614
        %p616 = pneg %p373
        %p617 = pneg %p370
        %p618 = scmp.lt.s32.totalorder %s33, 2
        %s619 = scalar_select %p618, %s33, 2
        %s620 = scalar_lea.vmem %s13, %s619
        %p621 = pneg %p399
        %p622 = pneg %p396
        %p623 = pneg %p425
        %p624 = pneg %p422
        %s625 = sand.u32 %s412, 1
        %s626 = scalar_lea.sflag [#allocation4], %s625
        %s627 = sand.u32 %s412, 1
        %s628 = scalar_lea.vmem [#allocation3], %s627
        %p629 = scmp.lt.s32.totalorder %s32, 1
        %s630 = scalar_select %p629, %s32, 1
        %s631 = smul.addr %s630, 8
        %s632 = scalar_lea.vmem %s0, %s631
        %p633 = scmp.lt.s32.totalorder %s32, 1
        %s634 = scalar_select %p633, %s32, 1
        %s635 = scalar_lea.vmem %s1, %s634
        %p636 = scmp.lt.s32.totalorder %s33, 2
        %s637 = scalar_select %p636, %s33, 2
        %s638 = scalar_lea.vmem %s2, %s637
        %p639 = scmp.lt.s32.totalorder %s33, 2
        %s640 = scalar_select %p639, %s33, 2
        %s641 = scalar_lea.vmem %s3, %s640
        %p642 = scmp.lt.s32.totalorder %s33, 2
        %s643 = scalar_select %p642, %s33, 2
        %s644 = smul.addr %s643, 4
        %s645 = smul.addr %s644, 4
        %s646 = scalar_lea.vmem %s4, %s645
        %p647 = scmp.lt.s32.totalorder %s33, 2
        %s648 = scalar_select %p647, %s33, 2
        %s649 = scalar_lea.vmem %s5, %s648
        %p650 = scmp.lt.s32.totalorder %s33, 2
        %s651 = scalar_select %p650, %s33, 2
        %s652 = smul.addr %s651, 4
        %s653 = smul.addr %s652, 4
        %s654 = scalar_lea.vmem %s6, %s653
        %p655 = scmp.lt.s32.totalorder %s33, 2
        %s656 = scalar_select %p655, %s33, 2
        %s657 = scalar_lea.vmem %s7, %s656
        %p658 = scmp.lt.s32.totalorder %s33, 2
        %s659 = scalar_select %p658, %s33, 2
        %s660 = scalar_lea.vmem %s8, %s659
        %p661 = scmp.lt.s32.totalorder %s33, 2
        %s662 = scalar_select %p661, %s33, 2
        %s663 = scalar_lea.vmem %s9, %s662
        %p664 = scmp.lt.s32.totalorder %s33, 2
        %s665 = scalar_select %p664, %s33, 2
        %s666 = smul.addr %s665, 4
        %s667 = smul.addr %s666, 4
        %s668 = scalar_lea.vmem %s10, %s667
        %p669 = scmp.lt.s32.totalorder %s33, 2
        %s670 = scalar_select %p669, %s33, 2
        %s671 = scalar_lea.vmem %s11, %s670
        %p672 = scmp.lt.s32.totalorder %s33, 2
        %s673 = scalar_select %p672, %s33, 2
        %s674 = smul.addr %s673, 16
        %s675 = smul.addr %s674, 4
        %s676 = scalar_lea.vmem %s12, %s675
        %p677 = scmp.lt.s32.totalorder %s33, 2
        %s678 = scalar_select %p677, %s33, 2
        %s679 = scalar_lea.vmem %s13, %s678
        %p681 = scmp.eq.s32.totalorder %s33, 0
        // Predicated region
        $region77: #{tpu_custom_call.1} parent=75 // pred_check
          %p682 = pneg %p681
        $region78: #{tpu_custom_call.1} parent=75 // pred_check_branch
          %684 = sbr.rel (%p682) target = $region80
        $region79: #{tpu_custom_call.1} parent=75 // pred_region
          %v685 = vld [vmem:[%s632] sm:$0xff]
          %vm686 = vcmask 261120
          %687 = vst.msk [vmem:[#allocation2] sm:$0xff] %vm686, %v685
        $region80: #{tpu_custom_call.1} parent=75 // pred_fallthru
          _
        %v688 = vld [vmem:[#allocation2] sm:$0xff]
        %v689 = vld [vmem:[%s635] sm:$0x1]
        %v690 = vsub.f32 %v689, 1.0
        %v691 = vmul.f32 %v690, 1e+09
        %v692 = vld [vmem:[%s638] sm:$0x1]
        %v693 = vld [vmem:[%s641] sm:$0x1]
        %vm694 = vcmask 261120
        %v695 = vsel %vm694, %v688, 0.0
        %696 = vadd.xlane.f32.xlu0 %v695
        %v697 = vpop.xlane.xlu0 %696
        %v698 = vrcp.pop 32.0
        %v699 = vmul.f32 %v697, %v698
        %v700 = vsub.f32 %v688, %v699
        %v701 = vmul.f32 %v700, %v700
        %v702 = vsel %vm694, %v701, 0.0
        %703 = vadd.xlane.f32.xlu0 %v702
        %v704 = vpop.xlane.xlu0 %703
        %v705 = vmul.f32 %v704, %v698
        %v706 = vadd.f32 %v705, 1e-05
        %v707 = vrsqrt.pop %v706
        %v708 = vmul.f32 %v700, %v707
        %v710 = vlaneseq
        %v711 = vshrl.u32 %v710, 7
        %v712 = vsub.s32 0, %v711
        %v713 = vrot.slane %v692, %v712
        %v715 = vmul.f32 %v708, %v713
        %v717 = vlaneseq
        %v718 = vshrl.u32 %v717, 7
        %v719 = vsub.s32 0, %v718
        %v720 = vrot.slane %v693, %v719
        %v722 = vadd.f32 %v715, %v720
        %v723 = vpack.c.bf16 %v722, %v722
        %v724 = vld [vmem:[%s646] sm:$0xf]
        %v725 = vld [vmem:[%s646 + $0x4] sm:$0xf]
        %v726 = vld [vmem:[%s646 + $0x8] sm:$0xf]
        %v727 = vld [vmem:[%s646 + $0xc] sm:$0xf]
        %v728 = vld [vmem:[%s649] sm:$0x1]
        %v730 = vlaneseq
        %v731 = vshrl.u32 %v730, 7
        %v732 = vsub.s32 0, %v731
        %v733 = vrot.slane %v728, %v732
        %v739 = vunpack.c.l.b16 %v724
        %v740 = vunpack.c.l.b16 %v725
        %v741 = vunpack.c.l.b16 %v726
        %v742 = vunpack.c.l.b16 %v727
        %v743 = vpack.c.b16 %v740, %v739
        %v744 = vpack.c.b16 %v742, %v741
        %v748 = vsel %vm694, %v723, 0
        %750 = vmatprep.subr.bf16.mxu0 0
        %751 = vmatpush1.bf16.msra.mxu0 0
        %752 = vmatprep.subr.bf16.mxu0 0
        %753 = vmatpush1.bf16.msra.mxu0 0
        %754 = vmatprep.subr.bf16.mxu0 0
        %755 = vmatpush1.bf16.msra.mxu0 0
        %756 = vmatprep.subr.bf16.mxu0 0
        %757 = vmatpush1.bf16.msra.mxu0 0
        %758 = vmatprep.subr.bf16.mxu0 0
        %759 = vmatpush1.bf16.msra.mxu0 0
        %760 = vmatprep.subr.bf16.mxu0 0
        %761 = vmatpush1.bf16.msra.mxu0 0
        %762 = vmatprep.subr.bf16.mxu0 0
        %763 = vmatpush1.bf16.msra.mxu0 %v744
        %764 = vmatprep.subr.bf16.mxu0 0
        %765 = vmatpush1.bf16.msra.mxu0 %v743
        %766 = vmatprep.subr.bf16.mxu0 0
        %767 = vmatpush2.bf16.msra.mxu0 0
        %768 = vmatprep.subr.bf16.mxu0 0
        %769 = vmatpush2.bf16.msra.mxu0 0
        %770 = vmatprep.subr.bf16.mxu0 0
        %771 = vmatpush2.bf16.msra.mxu0 0
        %772 = vmatprep.subr.bf16.mxu0 0
        %773 = vmatpush2.bf16.msra.mxu0 0
        %774 = vmatprep.subr.bf16.mxu0 0
        %775 = vmatpush2.bf16.msra.mxu0 0
        %776 = vmatprep.subr.bf16.mxu0 0
        %777 = vmatpush2.bf16.msra.mxu0 0
        %778 = vmatprep.subr.bf16.mxu0 0
        %779 = vmatpush2.bf16.msra.mxu0 0
        %780 = vmatprep.subr.bf16.mxu0 0
        %781 = vmatpush2.bf16.msra.mxu0 0
        %782 = vmatprep.mubr.bf16.mxu0 0
        %783 = vmatmul.mubr.bf16.gmra.mxu0 %v748
        %v784 = vpop.f32.mrf.mxu0
        %v785 = vadd.f32 %v733, %v784
        %v786 = vpop.f32.mrf.mxu0
        %v787 = vpop.f32.mrf.mxu0
        %v788 = vpop.f32.mrf.mxu0
        %789 = vdwg.mxu0
        %791 = vrot.lane.b32.xlu0 %v785, 120
        %v792 = vpop.permute.xlu0 %791
        %794 = vrot.lane.b32.xlu0 %v785, 112
        %v795 = vpop.permute.xlu0 %794
        %797 = vrot.lane.b32.xlu0 %v785, 104
        %v798 = vpop.permute.xlu0 %797
        %v800 = vcombine.low %v785, %v795
        %v801 = vcombine.high %v785, %v795
        %v803 = vunpack.c.l.s4 1983009808
        %v804 = vunpack.c.0.s8 %v803
        %v805 = vlaneseq
        %v806 = vshrl.u32 %v805, 7
        %v807 = vsub.s32 %v804, %v806
        %v808 = vrot.slane %v800, %v807
        %v810 = vunpack.c.l.s4 1983009808
        %v811 = vunpack.c.0.s8 %v810
        %v812 = vlaneseq
        %v813 = vshrl.u32 %v812, 7
        %v814 = vsub.s32 %v811, %v813
        %v815 = vrot.slane %v801, %v814
        %v816 = vcombine.low %v792, %v798
        %v817 = vcombine.high %v792, %v798
        %v819 = vunpack.c.l.s4 1983009808
        %v820 = vunpack.c.0.s8 %v819
        %v821 = vlaneseq
        %v822 = vshrl.u32 %v821, 7
        %v823 = vsub.s32 %v820, %v822
        %v824 = vrot.slane %v816, %v823
        %v826 = vunpack.c.l.s4 1983009808
        %v827 = vunpack.c.0.s8 %v826
        %v828 = vlaneseq
        %v829 = vshrl.u32 %v828, 7
        %v830 = vsub.s32 %v827, %v829
        %v831 = vrot.slane %v817, %v830
        %v832 = vcombine.low %v808, %v824
        %v833 = vcombine.high %v808, %v824
        %v835 = vunpack.c.l.s4 1934713408
        %v836 = vunpack.c.0.s8 %v835
        %v837 = vlaneseq
        %v838 = vshrl.u32 %v837, 7
        %v839 = vsub.s32 %v836, %v838
        %v840 = vrot.slane %v832, %v839
        %v842 = vunpack.c.l.s4 1934713408
        %v843 = vunpack.c.0.s8 %v842
        %v844 = vlaneseq
        %v845 = vshrl.u32 %v844, 7
        %v846 = vsub.s32 %v843, %v845
        %v847 = vrot.slane %v833, %v846
        %v848 = vcombine.low %v815, %v831
        %v849 = vcombine.high %v815, %v831
        %v851 = vunpack.c.l.s4 1934713408
        %v852 = vunpack.c.0.s8 %v851
        %v853 = vlaneseq
        %v854 = vshrl.u32 %v853, 7
        %v855 = vsub.s32 %v852, %v854
        %v856 = vrot.slane %v848, %v855
        %v858 = vunpack.c.l.s4 1934713408
        %v859 = vunpack.c.0.s8 %v858
        %v860 = vlaneseq
        %v861 = vshrl.u32 %v860, 7
        %v862 = vsub.s32 %v859, %v861
        %v863 = vrot.slane %v849, %v862
        %v864 = vcombine.high %v840, 0.0
        %v865 = vcombine.high %v847, 0.0
        %v866 = vcombine.high %v856, 0.0
        %v867 = vcombine.high %v863, 0.0
        %v868 = vcombine.low %v840, %v847
        %v870 = vunpack.c.l.s4 1983009808
        %v871 = vunpack.c.0.s8 %v870
        %v872 = vlaneseq
        %v873 = vshrl.u32 %v872, 7
        %v874 = vsub.s32 %v871, %v873
        %v875 = vrot.slane %v868, %v874
        %v876 = vcombine.low %v864, %v865
        %v878 = vunpack.c.l.s4 1983009808
        %v879 = vunpack.c.0.s8 %v878
        %v880 = vlaneseq
        %v881 = vshrl.u32 %v880, 7
        %v882 = vsub.s32 %v879, %v881
        %v883 = vrot.slane %v876, %v882
        %v884 = vcombine.low %v856, %v863
        %v886 = vunpack.c.l.s4 1983009808
        %v887 = vunpack.c.0.s8 %v886
        %v888 = vlaneseq
        %v889 = vshrl.u32 %v888, 7
        %v890 = vsub.s32 %v887, %v889
        %v891 = vrot.slane %v884, %v890
        %v892 = vcombine.low %v866, %v867
        %v894 = vunpack.c.l.s4 1983009808
        %v895 = vunpack.c.0.s8 %v894
        %v896 = vlaneseq
        %v897 = vshrl.u32 %v896, 7
        %v898 = vsub.s32 %v895, %v897
        %v899 = vrot.slane %v892, %v898
        %v900 = vcombine.low %v875, %v883
        %v901 = vcombine.high %v875, %v883
        %v903 = vunpack.c.l.s4 1934713408
        %v904 = vunpack.c.0.s8 %v903
        %v905 = vlaneseq
        %v906 = vshrl.u32 %v905, 7
        %v907 = vsub.s32 %v904, %v906
        %v908 = vrot.slane %v900, %v907
        %v910 = vunpack.c.l.s4 1934713408
        %v911 = vunpack.c.0.s8 %v910
        %v912 = vlaneseq
        %v913 = vshrl.u32 %v912, 7
        %v914 = vsub.s32 %v911, %v913
        %v915 = vrot.slane %v901, %v914
        %v916 = vcombine.low %v891, %v899
        %v917 = vcombine.high %v891, %v899
        %v919 = vunpack.c.l.s4 1934713408
        %v920 = vunpack.c.0.s8 %v919
        %v921 = vlaneseq
        %v922 = vshrl.u32 %v921, 7
        %v923 = vsub.s32 %v920, %v922
        %v924 = vrot.slane %v916, %v923
        %v926 = vunpack.c.l.s4 1934713408
        %v927 = vunpack.c.0.s8 %v926
        %v928 = vlaneseq
        %v929 = vshrl.u32 %v928, 7
        %v930 = vsub.s32 %v927, %v929
        %v931 = vrot.slane %v917, %v930
        %v932 = vcombine.low %v908, %v924
        %v933 = vcombine.high %v908, %v924
        %v934 = vcombine.low %v915, %v931
        %v935 = vcombine.high %v915, %v931
        %v936 = vpack.c.bf16 %v932, %v932
        %v937 = vpack.c.bf16 %v933, %v933
        %v938 = vpack.c.bf16 %v934, %v934
        %v939 = vpack.c.bf16 %v935, %v935
        %940 = vrot.lane.b32.xlu0 %v785, 96
        %v941 = vpop.permute.xlu0 %940
        %942 = vrot.lane.b32.xlu0 %v792, 96
        %v943 = vpop.permute.xlu0 %942
        %944 = vrot.lane.b32.xlu0 %v795, 96
        %v945 = vpop.permute.xlu0 %944
        %946 = vrot.lane.b32.xlu0 %v798, 96
        %v947 = vpop.permute.xlu0 %946
        %v952 = vcombine.low %v941, %v945
        %v953 = vcombine.high %v941, %v945
        %v955 = vunpack.c.l.s4 1983009808
        %v956 = vunpack.c.0.s8 %v955
        %v957 = vlaneseq
        %v958 = vshrl.u32 %v957, 7
        %v959 = vsub.s32 %v956, %v958
        %v960 = vrot.slane %v952, %v959
        %v962 = vunpack.c.l.s4 1983009808
        %v963 = vunpack.c.0.s8 %v962
        %v964 = vlaneseq
        %v965 = vshrl.u32 %v964, 7
        %v966 = vsub.s32 %v963, %v965
        %v967 = vrot.slane %v953, %v966
        %v968 = vcombine.low %v943, %v947
        %v969 = vcombine.high %v943, %v947
        %v971 = vunpack.c.l.s4 1983009808
        %v972 = vunpack.c.0.s8 %v971
        %v973 = vlaneseq
        %v974 = vshrl.u32 %v973, 7
        %v975 = vsub.s32 %v972, %v974
        %v976 = vrot.slane %v968, %v975
        %v978 = vunpack.c.l.s4 1983009808
        %v979 = vunpack.c.0.s8 %v978
        %v980 = vlaneseq
        %v981 = vshrl.u32 %v980, 7
        %v982 = vsub.s32 %v979, %v981
        %v983 = vrot.slane %v969, %v982
        %v984 = vcombine.low %v960, %v976
        %v985 = vcombine.high %v960, %v976
        %v987 = vunpack.c.l.s4 1934713408
        %v988 = vunpack.c.0.s8 %v987
        %v989 = vlaneseq
        %v990 = vshrl.u32 %v989, 7
        %v991 = vsub.s32 %v988, %v990
        %v992 = vrot.slane %v984, %v991
        %v994 = vunpack.c.l.s4 1934713408
        %v995 = vunpack.c.0.s8 %v994
        %v996 = vlaneseq
        %v997 = vshrl.u32 %v996, 7
        %v998 = vsub.s32 %v995, %v997
        %v999 = vrot.slane %v985, %v998
        %v1000 = vcombine.low %v967, %v983
        %v1001 = vcombine.high %v967, %v983
        %v1003 = vunpack.c.l.s4 1934713408
        %v1004 = vunpack.c.0.s8 %v1003
        %v1005 = vlaneseq
        %v1006 = vshrl.u32 %v1005, 7
        %v1007 = vsub.s32 %v1004, %v1006
        %v1008 = vrot.slane %v1000, %v1007
        %v1010 = vunpack.c.l.s4 1934713408
        %v1011 = vunpack.c.0.s8 %v1010
        %v1012 = vlaneseq
        %v1013 = vshrl.u32 %v1012, 7
        %v1014 = vsub.s32 %v1011, %v1013
        %v1015 = vrot.slane %v1001, %v1014
        %v1016 = vcombine.high %v992, 0.0
        %v1017 = vcombine.high %v999, 0.0
        %v1018 = vcombine.high %v1008, 0.0
        %v1019 = vcombine.high %v1015, 0.0
        %v1020 = vcombine.low %v992, %v999
        %v1022 = vunpack.c.l.s4 1983009808
        %v1023 = vunpack.c.0.s8 %v1022
        %v1024 = vlaneseq
        %v1025 = vshrl.u32 %v1024, 7
        %v1026 = vsub.s32 %v1023, %v1025
        %v1027 = vrot.slane %v1020, %v1026
        %v1028 = vcombine.low %v1016, %v1017
        %v1030 = vunpack.c.l.s4 1983009808
        %v1031 = vunpack.c.0.s8 %v1030
        %v1032 = vlaneseq
        %v1033 = vshrl.u32 %v1032, 7
        %v1034 = vsub.s32 %v1031, %v1033
        %v1035 = vrot.slane %v1028, %v1034
        %v1036 = vcombine.low %v1008, %v1015
        %v1038 = vunpack.c.l.s4 1983009808
        %v1039 = vunpack.c.0.s8 %v1038
        %v1040 = vlaneseq
        %v1041 = vshrl.u32 %v1040, 7
        %v1042 = vsub.s32 %v1039, %v1041
        %v1043 = vrot.slane %v1036, %v1042
        %v1044 = vcombine.low %v1018, %v1019
        %v1046 = vunpack.c.l.s4 1983009808
        %v1047 = vunpack.c.0.s8 %v1046
        %v1048 = vlaneseq
        %v1049 = vshrl.u32 %v1048, 7
        %v1050 = vsub.s32 %v1047, %v1049
        %v1051 = vrot.slane %v1044, %v1050
        %v1052 = vcombine.low %v1027, %v1035
        %v1053 = vcombine.high %v1027, %v1035
        %v1055 = vunpack.c.l.s4 1934713408
        %v1056 = vunpack.c.0.s8 %v1055
        %v1057 = vlaneseq
        %v1058 = vshrl.u32 %v1057, 7
        %v1059 = vsub.s32 %v1056, %v1058
        %v1060 = vrot.slane %v1052, %v1059
        %v1062 = vunpack.c.l.s4 1934713408
        %v1063 = vunpack.c.0.s8 %v1062
        %v1064 = vlaneseq
        %v1065 = vshrl.u32 %v1064, 7
        %v1066 = vsub.s32 %v1063, %v1065
        %v1067 = vrot.slane %v1053, %v1066
        %v1068 = vcombine.low %v1043, %v1051
        %v1069 = vcombine.high %v1043, %v1051
        %v1071 = vunpack.c.l.s4 1934713408
        %v1072 = vunpack.c.0.s8 %v1071
        %v1073 = vlaneseq
        %v1074 = vshrl.u32 %v1073, 7
        %v1075 = vsub.s32 %v1072, %v1074
        %v1076 = vrot.slane %v1068, %v1075
        %v1078 = vunpack.c.l.s4 1934713408
        %v1079 = vunpack.c.0.s8 %v1078
        %v1080 = vlaneseq
        %v1081 = vshrl.u32 %v1080, 7
        %v1082 = vsub.s32 %v1079, %v1081
        %v1083 = vrot.slane %v1069, %v1082
        %v1084 = vcombine.low %v1060, %v1076
        %v1085 = vcombine.high %v1060, %v1076
        %v1086 = vcombine.low %v1067, %v1083
        %v1087 = vcombine.high %v1067, %v1083
        %v1088 = vpack.c.bf16 %v1084, %v1084
        %v1089 = vpack.c.bf16 %v1085, %v1085
        %v1090 = vpack.c.bf16 %v1086, %v1086
        %v1091 = vpack.c.bf16 %v1087, %v1087
        %1092 = vrot.lane.b32.xlu0 %v785, 64
        %v1093 = vpop.permute.xlu0 %1092
        %1094 = vrot.lane.b32.xlu0 %v792, 64
        %v1095 = vpop.permute.xlu0 %1094
        %1096 = vrot.lane.b32.xlu0 %v795, 64
        %v1097 = vpop.permute.xlu0 %1096
        %1098 = vrot.lane.b32.xlu0 %v798, 64
        %v1099 = vpop.permute.xlu0 %1098
        %v1104 = vcombine.low %v1093, %v1097
        %v1105 = vcombine.high %v1093, %v1097
        %v1107 = vunpack.c.l.s4 1983009808
        %v1108 = vunpack.c.0.s8 %v1107
        %v1109 = vlaneseq
        %v1110 = vshrl.u32 %v1109, 7
        %v1111 = vsub.s32 %v1108, %v1110
        %v1112 = vrot.slane %v1104, %v1111
        %v1114 = vunpack.c.l.s4 1983009808
        %v1115 = vunpack.c.0.s8 %v1114
        %v1116 = vlaneseq
        %v1117 = vshrl.u32 %v1116, 7
        %v1118 = vsub.s32 %v1115, %v1117
        %v1119 = vrot.slane %v1105, %v1118
        %v1120 = vcombine.low %v1095, %v1099
        %v1121 = vcombine.high %v1095, %v1099
        %v1123 = vunpack.c.l.s4 1983009808
        %v1124 = vunpack.c.0.s8 %v1123
        %v1125 = vlaneseq
        %v1126 = vshrl.u32 %v1125, 7
        %v1127 = vsub.s32 %v1124, %v1126
        %v1128 = vrot.slane %v1120, %v1127
        %v1130 = vunpack.c.l.s4 1983009808
        %v1131 = vunpack.c.0.s8 %v1130
        %v1132 = vlaneseq
        %v1133 = vshrl.u32 %v1132, 7
        %v1134 = vsub.s32 %v1131, %v1133
        %v1135 = vrot.slane %v1121, %v1134
        %v1136 = vcombine.low %v1112, %v1128
        %v1137 = vcombine.high %v1112, %v1128
        %v1139 = vunpack.c.l.s4 1934713408
        %v1140 = vunpack.c.0.s8 %v1139
        %v1141 = vlaneseq
        %v1142 = vshrl.u32 %v1141, 7
        %v1143 = vsub.s32 %v1140, %v1142
        %v1144 = vrot.slane %v1136, %v1143
        %v1146 = vunpack.c.l.s4 1934713408
        %v1147 = vunpack.c.0.s8 %v1146
        %v1148 = vlaneseq
        %v1149 = vshrl.u32 %v1148, 7
        %v1150 = vsub.s32 %v1147, %v1149
        %v1151 = vrot.slane %v1137, %v1150
        %v1152 = vcombine.low %v1119, %v1135
        %v1153 = vcombine.high %v1119, %v1135
        %v1155 = vunpack.c.l.s4 1934713408
        %v1156 = vunpack.c.0.s8 %v1155
        %v1157 = vlaneseq
        %v1158 = vshrl.u32 %v1157, 7
        %v1159 = vsub.s32 %v1156, %v1158
        %v1160 = vrot.slane %v1152, %v1159
        %v1162 = vunpack.c.l.s4 1934713408
        %v1163 = vunpack.c.0.s8 %v1162
        %v1164 = vlaneseq
        %v1165 = vshrl.u32 %v1164, 7
        %v1166 = vsub.s32 %v1163, %v1165
        %v1167 = vrot.slane %v1153, %v1166
        %v1168 = vcombine.high %v1144, 0.0
        %v1169 = vcombine.high %v1151, 0.0
        %v1170 = vcombine.high %v1160, 0.0
        %v1171 = vcombine.high %v1167, 0.0
        %v1172 = vcombine.low %v1144, %v1151
        %v1174 = vunpack.c.l.s4 1983009808
        %v1175 = vunpack.c.0.s8 %v1174
        %v1176 = vlaneseq
        %v1177 = vshrl.u32 %v1176, 7
        %v1178 = vsub.s32 %v1175, %v1177
        %v1179 = vrot.slane %v1172, %v1178
        %v1180 = vcombine.low %v1168, %v1169
        %v1182 = vunpack.c.l.s4 1983009808
        %v1183 = vunpack.c.0.s8 %v1182
        %v1184 = vlaneseq
        %v1185 = vshrl.u32 %v1184, 7
        %v1186 = vsub.s32 %v1183, %v1185
        %v1187 = vrot.slane %v1180, %v1186
        %v1188 = vcombine.low %v1160, %v1167
        %v1190 = vunpack.c.l.s4 1983009808
        %v1191 = vunpack.c.0.s8 %v1190
        %v1192 = vlaneseq
        %v1193 = vshrl.u32 %v1192, 7
        %v1194 = vsub.s32 %v1191, %v1193
        %v1195 = vrot.slane %v1188, %v1194
        %v1196 = vcombine.low %v1170, %v1171
        %v1198 = vunpack.c.l.s4 1983009808
        %v1199 = vunpack.c.0.s8 %v1198
        %v1200 = vlaneseq
        %v1201 = vshrl.u32 %v1200, 7
        %v1202 = vsub.s32 %v1199, %v1201
        %v1203 = vrot.slane %v1196, %v1202
        %v1204 = vcombine.low %v1179, %v1187
        %v1205 = vcombine.high %v1179, %v1187
        %v1207 = vunpack.c.l.s4 1934713408
        %v1208 = vunpack.c.0.s8 %v1207
        %v1209 = vlaneseq
        %v1210 = vshrl.u32 %v1209, 7
        %v1211 = vsub.s32 %v1208, %v1210
        %v1212 = vrot.slane %v1204, %v1211
        %v1214 = vunpack.c.l.s4 1934713408
        %v1215 = vunpack.c.0.s8 %v1214
        %v1216 = vlaneseq
        %v1217 = vshrl.u32 %v1216, 7
        %v1218 = vsub.s32 %v1215, %v1217
        %v1219 = vrot.slane %v1205, %v1218
        %v1220 = vcombine.low %v1195, %v1203
        %v1221 = vcombine.high %v1195, %v1203
        %v1223 = vunpack.c.l.s4 1934713408
        %v1224 = vunpack.c.0.s8 %v1223
        %v1225 = vlaneseq
        %v1226 = vshrl.u32 %v1225, 7
        %v1227 = vsub.s32 %v1224, %v1226
        %v1228 = vrot.slane %v1220, %v1227
        %v1230 = vunpack.c.l.s4 1934713408
        %v1231 = vunpack.c.0.s8 %v1230
        %v1232 = vlaneseq
        %v1233 = vshrl.u32 %v1232, 7
        %v1234 = vsub.s32 %v1231, %v1233
        %v1235 = vrot.slane %v1221, %v1234
        %v1236 = vcombine.low %v1212, %v1228
        %v1237 = vcombine.high %v1212, %v1228
        %v1238 = vcombine.low %v1219, %v1235
        %v1239 = vcombine.high %v1219, %v1235
        %v1240 = vpack.c.bf16 %v1236, %v1236
        %v1241 = vpack.c.bf16 %v1237, %v1237
        %v1242 = vpack.c.bf16 %v1238, %v1238
        %v1243 = vpack.c.bf16 %v1239, %v1239
        %v1245 = vlaneseq
        %v1246 = vshrl.u32 %v1245, 7
        %v1247 = vsub.s32 0, %v1246
        %v1248 = vrot.slane %v691, %v1247
        %vm1250 = vcmask 64512
        %v1252 = vsel %vm1250, %v936, 0
        %v1255 = vsel %vm1250, %v1088, 0
        %1257 = vmatprep.subr.bf16.mxu0 0
        %1258 = vmatpush1.bf16.xpose.msra.mxu0 0
        %1259 = vmatprep.subr.bf16.mxu0 0
        %1260 = vmatpush1.bf16.xpose.msra.mxu0 0
        %1261 = vmatprep.subr.bf16.mxu0 0
        %1262 = vmatpush1.bf16.xpose.msra.mxu0 0
        %1263 = vmatprep.subr.bf16.mxu0 0
        %1264 = vmatpush1.bf16.xpose.msra.mxu0 0
        %1265 = vmatprep.subr.bf16.mxu0 0
        %1266 = vmatpush1.bf16.xpose.msra.mxu0 0
        %1267 = vmatprep.subr.bf16.mxu0 0
        %1268 = vmatpush1.bf16.xpose.msra.mxu0 0
        %1269 = vmatprep.subr.bf16.mxu0 0
        %1270 = vmatpush1.bf16.xpose.msra.mxu0 0
        %1271 = vmatprep.subr.bf16.mxu0 0
        %1272 = vmatpush1.bf16.xpose.msra.mxu0 %v1255
        %1273 = vmatprep.subr.bf16.mxu0 0
        %1274 = vmatpush2.bf16.xpose.msra.mxu0 0
        %1275 = vmatprep.subr.bf16.mxu0 0
        %1276 = vmatpush2.bf16.xpose.msra.mxu0 0
        %1277 = vmatprep.subr.bf16.mxu0 0
        %1278 = vmatpush2.bf16.xpose.msra.mxu0 0
        %1279 = vmatprep.subr.bf16.mxu0 0
        %1280 = vmatpush2.bf16.xpose.msra.mxu0 0
        %1281 = vmatprep.subr.bf16.mxu0 0
        %1282 = vmatpush2.bf16.xpose.msra.mxu0 0
        %1283 = vmatprep.subr.bf16.mxu0 0
        %1284 = vmatpush2.bf16.xpose.msra.mxu0 0
        %1285 = vmatprep.subr.bf16.mxu0 0
        %1286 = vmatpush2.bf16.xpose.msra.mxu0 0
        %1287 = vmatprep.subr.bf16.mxu0 0
        %1288 = vmatpush2.bf16.xpose.msra.mxu0 0
        %1289 = vmatprep.mubr.bf16.mxu0 0
        %1290 = vmatmul.mubr.bf16.gmra.mxu0 %v1252
        %v1291 = vpop.f32.mrf.mxu0
        %v1292 = vadd.f32 %v1248, %v1291
        %v1293 = vpop.f32.mrf.mxu0
        %v1294 = vpop.f32.mrf.mxu0
        %v1295 = vpop.f32.mrf.mxu0
        %1296 = vdwg.mxu0
        %v1298 = vsel %vm1250, %v937, 0
        %v1301 = vsel %vm1250, %v1089, 0
        %1303 = vmatprep.subr.bf16.mxu0 0
        %1304 = vmatpush1.bf16.xpose.msra.mxu0 0
        %1305 = vmatprep.subr.bf16.mxu0 0
        %1306 = vmatpush1.bf16.xpose.msra.mxu0 0
        %1307 = vmatprep.subr.bf16.mxu0 0
        %1308 = vmatpush1.bf16.xpose.msra.mxu0 0
        %1309 = vmatprep.subr.bf16.mxu0 0
        %1310 = vmatpush1.bf16.xpose.msra.mxu0 0
        %1311 = vmatprep.subr.bf16.mxu0 0
        %1312 = vmatpush1.bf16.xpose.msra.mxu0 0
        %1313 = vmatprep.subr.bf16.mxu0 0
        %1314 = vmatpush1.bf16.xpose.msra.mxu0 0
        %1315 = vmatprep.subr.bf16.mxu0 0
        %1316 = vmatpush1.bf16.xpose.msra.mxu0 0
        %1317 = vmatprep.subr.bf16.mxu0 0
        %1318 = vmatpush1.bf16.xpose.msra.mxu0 %v1301
        %1319 = vmatprep.subr.bf16.mxu0 0
        %1320 = vmatpush2.bf16.xpose.msra.mxu0 0
        %1321 = vmatprep.subr.bf16.mxu0 0
        %1322 = vmatpush2.bf16.xpose.msra.mxu0 0
        %1323 = vmatprep.subr.bf16.mxu0 0
        %1324 = vmatpush2.bf16.xpose.msra.mxu0 0
        %1325 = vmatprep.subr.bf16.mxu0 0
        %1326 = vmatpush2.bf16.xpose.msra.mxu0 0
        %1327 = vmatprep.subr.bf16.mxu0 0
        %1328 = vmatpush2.bf16.xpose.msra.mxu0 0
        %1329 = vmatprep.subr.bf16.mxu0 0
        %1330 = vmatpush2.bf16.xpose.msra.mxu0 0
        %1331 = vmatprep.subr.bf16.mxu0 0
        %1332 = vmatpush2.bf16.xpose.msra.mxu0 0
        %1333 = vmatprep.subr.bf16.mxu0 0
        %1334 = vmatpush2.bf16.xpose.msra.mxu0 0
        %1335 = vmatprep.mubr.bf16.mxu0 0
        %1336 = vmatmul.mubr.bf16.gmra.mxu0 %v1298
        %v1337 = vpop.f32.mrf.mxu0
        %v1338 = vadd.f32 %v1248, %v1337
        %v1339 = vpop.f32.mrf.mxu0
        %v1340 = vpop.f32.mrf.mxu0
        %v1341 = vpop.f32.mrf.mxu0
        %1342 = vdwg.mxu0
        %v1344 = vsel %vm1250, %v938, 0
        %v1347 = vsel %vm1250, %v1090, 0
        %1349 = vmatprep.subr.bf16.mxu0 0
        %1350 = vmatpush1.bf16.xpose.msra.mxu0 0
        %1351 = vmatprep.subr.bf16.mxu0 0
        %1352 = vmatpush1.bf16.xpose.msra.mxu0 0
        %1353 = vmatprep.subr.bf16.mxu0 0
        %1354 = vmatpush1.bf16.xpose.msra.mxu0 0
        %1355 = vmatprep.subr.bf16.mxu0 0
        %1356 = vmatpush1.bf16.xpose.msra.mxu0 0
        %1357 = vmatprep.subr.bf16.mxu0 0
        %1358 = vmatpush1.bf16.xpose.msra.mxu0 0
        %1359 = vmatprep.subr.bf16.mxu0 0
        %1360 = vmatpush1.bf16.xpose.msra.mxu0 0
        %1361 = vmatprep.subr.bf16.mxu0 0
        %1362 = vmatpush1.bf16.xpose.msra.mxu0 0
        %1363 = vmatprep.subr.bf16.mxu0 0
        %1364 = vmatpush1.bf16.xpose.msra.mxu0 %v1347
        %1365 = vmatprep.subr.bf16.mxu0 0
        %1366 = vmatpush2.bf16.xpose.msra.mxu0 0
        %1367 = vmatprep.subr.bf16.mxu0 0
        %1368 = vmatpush2.bf16.xpose.msra.mxu0 0
        %1369 = vmatprep.subr.bf16.mxu0 0
        %1370 = vmatpush2.bf16.xpose.msra.mxu0 0
        %1371 = vmatprep.subr.bf16.mxu0 0
        %1372 = vmatpush2.bf16.xpose.msra.mxu0 0
        %1373 = vmatprep.subr.bf16.mxu0 0
        %1374 = vmatpush2.bf16.xpose.msra.mxu0 0
        %1375 = vmatprep.subr.bf16.mxu0 0
        %1376 = vmatpush2.bf16.xpose.msra.mxu0 0
        %1377 = vmatprep.subr.bf16.mxu0 0
        %1378 = vmatpush2.bf16.xpose.msra.mxu0 0
        %1379 = vmatprep.subr.bf16.mxu0 0
        %1380 = vmatpush2.bf16.xpose.msra.mxu0 0
        %1381 = vmatprep.mubr.bf16.mxu0 0
        %1382 = vmatmul.mubr.bf16.gmra.mxu0 %v1344
        %v1383 = vpop.f32.mrf.mxu0
        %v1384 = vadd.f32 %v1248, %v1383
        %v1385 = vpop.f32.mrf.mxu0
        %v1386 = vpop.f32.mrf.mxu0
        %v1387 = vpop.f32.mrf.mxu0
        %1388 = vdwg.mxu0
        %v1390 = vsel %vm1250, %v939, 0
        %v1393 = vsel %vm1250, %v1091, 0
        %1395 = vmatprep.subr.bf16.mxu0 0
        %1396 = vmatpush1.bf16.xpose.msra.mxu0 0
        %1397 = vmatprep.subr.bf16.mxu0 0
        %1398 = vmatpush1.bf16.xpose.msra.mxu0 0
        %1399 = vmatprep.subr.bf16.mxu0 0
        %1400 = vmatpush1.bf16.xpose.msra.mxu0 0
        %1401 = vmatprep.subr.bf16.mxu0 0
        %1402 = vmatpush1.bf16.xpose.msra.mxu0 0
        %1403 = vmatprep.subr.bf16.mxu0 0
        %1404 = vmatpush1.bf16.xpose.msra.mxu0 0
        %1405 = vmatprep.subr.bf16.mxu0 0
        %1406 = vmatpush1.bf16.xpose.msra.mxu0 0
        %1407 = vmatprep.subr.bf16.mxu0 0
        %1408 = vmatpush1.bf16.xpose.msra.mxu0 0
        %1409 = vmatprep.subr.bf16.mxu0 0
        %1410 = vmatpush1.bf16.xpose.msra.mxu0 %v1393
        %1411 = vmatprep.subr.bf16.mxu0 0
        %1412 = vmatpush2.bf16.xpose.msra.mxu0 0
        %1413 = vmatprep.subr.bf16.mxu0 0
        %1414 = vmatpush2.bf16.xpose.msra.mxu0 0
        %1415 = vmatprep.subr.bf16.mxu0 0
        %1416 = vmatpush2.bf16.xpose.msra.mxu0 0
        %1417 = vmatprep.subr.bf16.mxu0 0
        %1418 = vmatpush2.bf16.xpose.msra.mxu0 0
        %1419 = vmatprep.subr.bf16.mxu0 0
        %1420 = vmatpush2.bf16.xpose.msra.mxu0 0
        %1421 = vmatprep.subr.bf16.mxu0 0
        %1422 = vmatpush2.bf16.xpose.msra.mxu0 0
        %1423 = vmatprep.subr.bf16.mxu0 0
        %1424 = vmatpush2.bf16.xpose.msra.mxu0 0
        %1425 = vmatprep.subr.bf16.mxu0 0
        %1426 = vmatpush2.bf16.xpose.msra.mxu0 0
        %1427 = vmatprep.mubr.bf16.mxu0 0
        %1428 = vmatmul.mubr.bf16.gmra.mxu0 %v1390
        %v1429 = vpop.f32.mrf.mxu0
        %v1430 = vadd.f32 %v1248, %v1429
        %v1431 = vpop.f32.mrf.mxu0
        %v1432 = vpop.f32.mrf.mxu0
        %v1433 = vpop.f32.mrf.mxu0
        %1434 = vdwg.mxu0
        %v1435 = vsel %vm1250, %v1292, -inf
        %1436 = vmax.xlane.f32.xlu0 %v1435
        %v1437 = vpop.xlane.xlu0 %1436
        %v1438 = vsel %vm1250, %v1338, -inf
        %1439 = vmax.xlane.f32.xlu0 %v1438
        %v1440 = vpop.xlane.xlu0 %1439
        %v1441 = vsel %vm1250, %v1384, -inf
        %1442 = vmax.xlane.f32.xlu0 %v1441
        %v1443 = vpop.xlane.xlu0 %1442
        %v1444 = vsel %vm1250, %v1430, -inf
        %1445 = vmax.xlane.f32.xlu0 %v1444
        %v1446 = vpop.xlane.xlu0 %1445
        %v1447 = vsub.f32 %v1292, %v1437
        %v1448 = vsub.f32 %v1338, %v1440
        %v1449 = vsub.f32 %v1384, %v1443
        %v1450 = vsub.f32 %v1430, %v1446
        %v1451 = vmul.f32 %v1447, 1.442695
        %v1452 = vpow.pop %v1451
        %v1453 = vmul.f32 %v1448, 1.442695
        %v1454 = vpow.pop %v1453
        %v1455 = vmul.f32 %v1449, 1.442695
        %v1456 = vpow.pop %v1455
        %v1457 = vmul.f32 %v1450, 1.442695
        %v1458 = vpow.pop %v1457
        %v1459 = vsel %vm1250, %v1452, 0.0
        %1460 = vadd.xlane.f32.xlu0 %v1459
        %v1461 = vpop.xlane.xlu0 %1460
        %v1462 = vsel %vm1250, %v1454, 0.0
        %1463 = vadd.xlane.f32.xlu0 %v1462
        %v1464 = vpop.xlane.xlu0 %1463
        %v1465 = vsel %vm1250, %v1456, 0.0
        %1466 = vadd.xlane.f32.xlu0 %v1465
        %v1467 = vpop.xlane.xlu0 %1466
        %v1468 = vsel %vm1250, %v1458, 0.0
        %1469 = vadd.xlane.f32.xlu0 %v1468
        %v1470 = vpop.xlane.xlu0 %1469
        %v1471 = vpack.c.bf16 %v1452, %v1452
        %v1472 = vpack.c.bf16 %v1454, %v1454
        %v1473 = vpack.c.bf16 %v1456, %v1456
        %v1474 = vpack.c.bf16 %v1458, %v1458
        %v1476 = vsel %vm1250, %v1471, 0
        %vm1478 = vcmask 1043456
        %v1480 = vsel %vm1478, %v1240, 0
        %1482 = vmatprep.subr.bf16.mxu0 0
        %1483 = vmatpush1.bf16.msra.mxu0 0
        %1484 = vmatprep.subr.bf16.mxu0 0
        %1485 = vmatpush1.bf16.msra.mxu0 0
        %1486 = vmatprep.subr.bf16.mxu0 0
        %1487 = vmatpush1.bf16.msra.mxu0 0
        %1488 = vmatprep.subr.bf16.mxu0 0
        %1489 = vmatpush1.bf16.msra.mxu0 0
        %1490 = vmatprep.subr.bf16.mxu0 0
        %1491 = vmatpush1.bf16.msra.mxu0 0
        %1492 = vmatprep.subr.bf16.mxu0 0
        %1493 = vmatpush1.bf16.msra.mxu0 0
        %1494 = vmatprep.subr.bf16.mxu0 0
        %1495 = vmatpush1.bf16.msra.mxu0 0
        %1496 = vmatprep.subr.bf16.mxu0 0
        %1497 = vmatpush1.bf16.msra.mxu0 %v1480
        %1498 = vmatprep.subr.bf16.mxu0 0
        %1499 = vmatpush2.bf16.msra.mxu0 0
        %1500 = vmatprep.subr.bf16.mxu0 0
        %1501 = vmatpush2.bf16.msra.mxu0 0
        %1502 = vmatprep.subr.bf16.mxu0 0
        %1503 = vmatpush2.bf16.msra.mxu0 0
        %1504 = vmatprep.subr.bf16.mxu0 0
        %1505 = vmatpush2.bf16.msra.mxu0 0
        %1506 = vmatprep.subr.bf16.mxu0 0
        %1507 = vmatpush2.bf16.msra.mxu0 0
        %1508 = vmatprep.subr.bf16.mxu0 0
        %1509 = vmatpush2.bf16.msra.mxu0 0
        %1510 = vmatprep.subr.bf16.mxu0 0
        %1511 = vmatpush2.bf16.msra.mxu0 0
        %1512 = vmatprep.subr.bf16.mxu0 0
        %1513 = vmatpush2.bf16.msra.mxu0 0
        %1514 = vmatprep.mubr.bf16.mxu0 0
        %1515 = vmatmul.mubr.bf16.gmra.mxu0 %v1476
        %v1516 = vpop.f32.mrf.mxu0
        %v1517 = vadd.f32 0.0, %v1516
        %v1518 = vpop.f32.mrf.mxu0
        %v1519 = vpop.f32.mrf.mxu0
        %v1520 = vpop.f32.mrf.mxu0
        %1521 = vdwg.mxu0
        %v1523 = vsel %vm1250, %v1472, 0
        %v1526 = vsel %vm1478, %v1241, 0
        %1528 = vmatprep.subr.bf16.mxu0 0
        %1529 = vmatpush1.bf16.msra.mxu0 0
        %1530 = vmatprep.subr.bf16.mxu0 0
        %1531 = vmatpush1.bf16.msra.mxu0 0
        %1532 = vmatprep.subr.bf16.mxu0 0
        %1533 = vmatpush1.bf16.msra.mxu0 0
        %1534 = vmatprep.subr.bf16.mxu0 0
        %1535 = vmatpush1.bf16.msra.mxu0 0
        %1536 = vmatprep.subr.bf16.mxu0 0
        %1537 = vmatpush1.bf16.msra.mxu0 0
        %1538 = vmatprep.subr.bf16.mxu0 0
        %1539 = vmatpush1.bf16.msra.mxu0 0
        %1540 = vmatprep.subr.bf16.mxu0 0
        %1541 = vmatpush1.bf16.msra.mxu0 0
        %1542 = vmatprep.subr.bf16.mxu0 0
        %1543 = vmatpush1.bf16.msra.mxu0 %v1526
        %1544 = vmatprep.subr.bf16.mxu0 0
        %1545 = vmatpush2.bf16.msra.mxu0 0
        %1546 = vmatprep.subr.bf16.mxu0 0
        %1547 = vmatpush2.bf16.msra.mxu0 0
        %1548 = vmatprep.subr.bf16.mxu0 0
        %1549 = vmatpush2.bf16.msra.mxu0 0
        %1550 = vmatprep.subr.bf16.mxu0 0
        %1551 = vmatpush2.bf16.msra.mxu0 0
        %1552 = vmatprep.subr.bf16.mxu0 0
        %1553 = vmatpush2.bf16.msra.mxu0 0
        %1554 = vmatprep.subr.bf16.mxu0 0
        %1555 = vmatpush2.bf16.msra.mxu0 0
        %1556 = vmatprep.subr.bf16.mxu0 0
        %1557 = vmatpush2.bf16.msra.mxu0 0
        %1558 = vmatprep.subr.bf16.mxu0 0
        %1559 = vmatpush2.bf16.msra.mxu0 0
        %1560 = vmatprep.mubr.bf16.mxu0 0
        %1561 = vmatmul.mubr.bf16.gmra.mxu0 %v1523
        %v1562 = vpop.f32.mrf.mxu0
        %v1563 = vadd.f32 0.0, %v1562
        %v1564 = vpop.f32.mrf.mxu0
        %v1565 = vpop.f32.mrf.mxu0
        %v1566 = vpop.f32.mrf.mxu0
        %1567 = vdwg.mxu0
        %v1569 = vsel %vm1250, %v1473, 0
        %v1572 = vsel %vm1478, %v1242, 0
        %1574 = vmatprep.subr.bf16.mxu0 0
        %1575 = vmatpush1.bf16.msra.mxu0 0
        %1576 = vmatprep.subr.bf16.mxu0 0
        %1577 = vmatpush1.bf16.msra.mxu0 0
        %1578 = vmatprep.subr.bf16.mxu0 0
        %1579 = vmatpush1.bf16.msra.mxu0 0
        %1580 = vmatprep.subr.bf16.mxu0 0
        %1581 = vmatpush1.bf16.msra.mxu0 0
        %1582 = vmatprep.subr.bf16.mxu0 0
        %1583 = vmatpush1.bf16.msra.mxu0 0
        %1584 = vmatprep.subr.bf16.mxu0 0
        %1585 = vmatpush1.bf16.msra.mxu0 0
        %1586 = vmatprep.subr.bf16.mxu0 0
        %1587 = vmatpush1.bf16.msra.mxu0 0
        %1588 = vmatprep.subr.bf16.mxu0 0
        %1589 = vmatpush1.bf16.msra.mxu0 %v1572
        %1590 = vmatprep.subr.bf16.mxu0 0
        %1591 = vmatpush2.bf16.msra.mxu0 0
        %1592 = vmatprep.subr.bf16.mxu0 0
        %1593 = vmatpush2.bf16.msra.mxu0 0
        %1594 = vmatprep.subr.bf16.mxu0 0
        %1595 = vmatpush2.bf16.msra.mxu0 0
        %1596 = vmatprep.subr.bf16.mxu0 0
        %1597 = vmatpush2.bf16.msra.mxu0 0
        %1598 = vmatprep.subr.bf16.mxu0 0
        %1599 = vmatpush2.bf16.msra.mxu0 0
        %1600 = vmatprep.subr.bf16.mxu0 0
        %1601 = vmatpush2.bf16.msra.mxu0 0
        %1602 = vmatprep.subr.bf16.mxu0 0
        %1603 = vmatpush2.bf16.msra.mxu0 0
        %1604 = vmatprep.subr.bf16.mxu0 0
        %1605 = vmatpush2.bf16.msra.mxu0 0
        %1606 = vmatprep.mubr.bf16.mxu0 0
        %1607 = vmatmul.mubr.bf16.gmra.mxu0 %v1569
        %v1608 = vpop.f32.mrf.mxu0
        %v1609 = vadd.f32 0.0, %v1608
        %v1610 = vpop.f32.mrf.mxu0
        %v1611 = vpop.f32.mrf.mxu0
        %v1612 = vpop.f32.mrf.mxu0
        %1613 = vdwg.mxu0
        %v1615 = vsel %vm1250, %v1474, 0
        %v1618 = vsel %vm1478, %v1243, 0
        %1620 = vmatprep.subr.bf16.mxu0 0
        %1621 = vmatpush1.bf16.msra.mxu0 0
        %1622 = vmatprep.subr.bf16.mxu0 0
        %1623 = vmatpush1.bf16.msra.mxu0 0
        %1624 = vmatprep.subr.bf16.mxu0 0
        %1625 = vmatpush1.bf16.msra.mxu0 0
        %1626 = vmatprep.subr.bf16.mxu0 0
        %1627 = vmatpush1.bf16.msra.mxu0 0
        %1628 = vmatprep.subr.bf16.mxu0 0
        %1629 = vmatpush1.bf16.msra.mxu0 0
        %1630 = vmatprep.subr.bf16.mxu0 0
        %1631 = vmatpush1.bf16.msra.mxu0 0
        %1632 = vmatprep.subr.bf16.mxu0 0
        %1633 = vmatpush1.bf16.msra.mxu0 0
        %1634 = vmatprep.subr.bf16.mxu0 0
        %1635 = vmatpush1.bf16.msra.mxu0 %v1618
        %1636 = vmatprep.subr.bf16.mxu0 0
        %1637 = vmatpush2.bf16.msra.mxu0 0
        %1638 = vmatprep.subr.bf16.mxu0 0
        %1639 = vmatpush2.bf16.msra.mxu0 0
        %1640 = vmatprep.subr.bf16.mxu0 0
        %1641 = vmatpush2.bf16.msra.mxu0 0
        %1642 = vmatprep.subr.bf16.mxu0 0
        %1643 = vmatpush2.bf16.msra.mxu0 0
        %1644 = vmatprep.subr.bf16.mxu0 0
        %1645 = vmatpush2.bf16.msra.mxu0 0
        %1646 = vmatprep.subr.bf16.mxu0 0
        %1647 = vmatpush2.bf16.msra.mxu0 0
        %1648 = vmatprep.subr.bf16.mxu0 0
        %1649 = vmatpush2.bf16.msra.mxu0 0
        %1650 = vmatprep.subr.bf16.mxu0 0
        %1651 = vmatpush2.bf16.msra.mxu0 0
        %1652 = vmatprep.mubr.bf16.mxu0 0
        %1653 = vmatmul.mubr.bf16.gmra.mxu0 %v1615
        %v1654 = vpop.f32.mrf.mxu0
        %v1655 = vadd.f32 0.0, %v1654
        %v1656 = vpop.f32.mrf.mxu0
        %v1657 = vpop.f32.mrf.mxu0
        %v1658 = vpop.f32.mrf.mxu0
        %1659 = vdwg.mxu0
        %v1660 = vrcp.pop %v1461
        %v1661 = vrcp.pop %v1464
        %v1662 = vrcp.pop %v1467
        %v1663 = vrcp.pop %v1470
        %v1664 = vmul.f32 %v1517, %v1660
        %v1665 = vmul.f32 %v1563, %v1661
        %v1666 = vmul.f32 %v1609, %v1662
        %v1667 = vmul.f32 %v1655, %v1663
        %v1668 = vcombine.low %v1664, %v1666
        %v1669 = vcombine.high %v1664, %v1666
        %v1671 = vunpack.c.l.s4 1983009808
        %v1672 = vunpack.c.0.s8 %v1671
        %v1673 = vlaneseq
        %v1674 = vshrl.u32 %v1673, 7
        %v1675 = vsub.s32 %v1672, %v1674
        %v1676 = vrot.slane %v1668, %v1675
        %v1678 = vunpack.c.l.s4 1983009808
        %v1679 = vunpack.c.0.s8 %v1678
        %v1680 = vlaneseq
        %v1681 = vshrl.u32 %v1680, 7
        %v1682 = vsub.s32 %v1679, %v1681
        %v1683 = vrot.slane %v1669, %v1682
        %v1684 = vcombine.low %v1665, %v1667
        %v1685 = vcombine.high %v1665, %v1667
        %v1687 = vunpack.c.l.s4 1983009808
        %v1688 = vunpack.c.0.s8 %v1687
        %v1689 = vlaneseq
        %v1690 = vshrl.u32 %v1689, 7
        %v1691 = vsub.s32 %v1688, %v1690
        %v1692 = vrot.slane %v1684, %v1691
        %v1694 = vunpack.c.l.s4 1983009808
        %v1695 = vunpack.c.0.s8 %v1694
        %v1696 = vlaneseq
        %v1697 = vshrl.u32 %v1696, 7
        %v1698 = vsub.s32 %v1695, %v1697
        %v1699 = vrot.slane %v1685, %v1698
        %v1700 = vcombine.low %v1676, %v1692
        %v1701 = vcombine.high %v1676, %v1692
        %v1703 = vunpack.c.l.s4 1934713408
        %v1704 = vunpack.c.0.s8 %v1703
        %v1705 = vlaneseq
        %v1706 = vshrl.u32 %v1705, 7
        %v1707 = vsub.s32 %v1704, %v1706
        %v1708 = vrot.slane %v1700, %v1707
        %v1710 = vunpack.c.l.s4 1934713408
        %v1711 = vunpack.c.0.s8 %v1710
        %v1712 = vlaneseq
        %v1713 = vshrl.u32 %v1712, 7
        %v1714 = vsub.s32 %v1711, %v1713
        %v1715 = vrot.slane %v1701, %v1714
        %v1716 = vcombine.low %v1683, %v1699
        %v1717 = vcombine.high %v1683, %v1699
        %v1719 = vunpack.c.l.s4 1934713408
        %v1720 = vunpack.c.0.s8 %v1719
        %v1721 = vlaneseq
        %v1722 = vshrl.u32 %v1721, 7
        %v1723 = vsub.s32 %v1720, %v1722
        %v1724 = vrot.slane %v1716, %v1723
        %v1726 = vunpack.c.l.s4 1934713408
        %v1727 = vunpack.c.0.s8 %v1726
        %v1728 = vlaneseq
        %v1729 = vshrl.u32 %v1728, 7
        %v1730 = vsub.s32 %v1727, %v1729
        %v1731 = vrot.slane %v1717, %v1730
        %v1732 = vcombine.high %v1708, 0.0
        %v1733 = vcombine.high %v1715, 0.0
        %v1734 = vcombine.high %v1724, 0.0
        %v1735 = vcombine.high %v1731, 0.0
        %v1736 = vcombine.low %v1708, %v1715
        %v1738 = vunpack.c.l.s4 1983009808
        %v1739 = vunpack.c.0.s8 %v1738
        %v1740 = vlaneseq
        %v1741 = vshrl.u32 %v1740, 7
        %v1742 = vsub.s32 %v1739, %v1741
        %v1743 = vrot.slane %v1736, %v1742
        %v1744 = vcombine.low %v1732, %v1733
        %v1746 = vunpack.c.l.s4 1983009808
        %v1747 = vunpack.c.0.s8 %v1746
        %v1748 = vlaneseq
        %v1749 = vshrl.u32 %v1748, 7
        %v1750 = vsub.s32 %v1747, %v1749
        %v1751 = vrot.slane %v1744, %v1750
        %v1752 = vcombine.low %v1724, %v1731
        %v1754 = vunpack.c.l.s4 1983009808
        %v1755 = vunpack.c.0.s8 %v1754
        %v1756 = vlaneseq
        %v1757 = vshrl.u32 %v1756, 7
        %v1758 = vsub.s32 %v1755, %v1757
        %v1759 = vrot.slane %v1752, %v1758
        %v1760 = vcombine.low %v1734, %v1735
        %v1762 = vunpack.c.l.s4 1983009808
        %v1763 = vunpack.c.0.s8 %v1762
        %v1764 = vlaneseq
        %v1765 = vshrl.u32 %v1764, 7
        %v1766 = vsub.s32 %v1763, %v1765
        %v1767 = vrot.slane %v1760, %v1766
        %v1768 = vcombine.low %v1743, %v1751
        %v1769 = vcombine.high %v1743, %v1751
        %v1771 = vunpack.c.l.s4 1934713408
        %v1772 = vunpack.c.0.s8 %v1771
        %v1773 = vlaneseq
        %v1774 = vshrl.u32 %v1773, 7
        %v1775 = vsub.s32 %v1772, %v1774
        %v1776 = vrot.slane %v1768, %v1775
        %v1778 = vunpack.c.l.s4 1934713408
        %v1779 = vunpack.c.0.s8 %v1778
        %v1780 = vlaneseq
        %v1781 = vshrl.u32 %v1780, 7
        %v1782 = vsub.s32 %v1779, %v1781
        %v1783 = vrot.slane %v1769, %v1782
        %v1784 = vcombine.low %v1759, %v1767
        %v1785 = vcombine.high %v1759, %v1767
        %v1787 = vunpack.c.l.s4 1934713408
        %v1788 = vunpack.c.0.s8 %v1787
        %v1789 = vlaneseq
        %v1790 = vshrl.u32 %v1789, 7
        %v1791 = vsub.s32 %v1788, %v1790
        %v1792 = vrot.slane %v1784, %v1791
        %v1794 = vunpack.c.l.s4 1934713408
        %v1795 = vunpack.c.0.s8 %v1794
        %v1796 = vlaneseq
        %v1797 = vshrl.u32 %v1796, 7
        %v1798 = vsub.s32 %v1795, %v1797
        %v1799 = vrot.slane %v1785, %v1798
        %v1800 = vcombine.low %v1776, %v1792
        %v1801 = vcombine.high %v1776, %v1792
        %v1802 = vcombine.low %v1783, %v1799
        %v1803 = vcombine.high %v1783, %v1799
        %1805 = vrot.lane.b32.xlu0 %v1801, 8
        %v1806 = vpop.permute.xlu0 %1805
        %1809 = vrot.lane.b32.xlu0 %v1802, 16
        %v1810 = vpop.permute.xlu0 %1809
        %1813 = vrot.lane.b32.xlu0 %v1803, 24
        %v1814 = vpop.permute.xlu0 %1813
        %v1816 = vsel %vm1250, %v1800, %v1806
        %vm1817 = vcmask 130048
        %v1818 = vsel %vm1817, %v1816, %v1810
        %vm1819 = vcmask 195584
        %v1820 = vsel %vm1819, %v1818, %v1814
        %v1821 = vpack.c.bf16 %v1820, %v1820
        %v1822 = vld [vmem:[%s654] sm:$0xf]
        %v1823 = vld [vmem:[%s654 + $0x4] sm:$0xf]
        %v1824 = vld [vmem:[%s654 + $0x8] sm:$0xf]
        %v1825 = vld [vmem:[%s654 + $0xc] sm:$0xf]
        %v1826 = vld [vmem:[%s657] sm:$0x1]
        %v1828 = vlaneseq
        %v1829 = vshrl.u32 %v1828, 7
        %v1830 = vsub.s32 0, %v1829
        %v1831 = vrot.slane %v1826, %v1830
        %v1837 = vunpack.c.l.b16 %v1822
        %v1838 = vunpack.c.l.b16 %v1823
        %v1839 = vunpack.c.l.b16 %v1824
        %v1840 = vunpack.c.l.b16 %v1825
        %v1841 = vpack.c.b16 %v1838, %v1837
        %v1842 = vpack.c.b16 %v1840, %v1839
        %v1846 = vsel %vm694, %v1821, 0
        %1848 = vmatprep.subr.bf16.mxu0 0
        %1849 = vmatpush1.bf16.msra.mxu0 0
        %1850 = vmatprep.subr.bf16.mxu0 0
        %1851 = vmatpush1.bf16.msra.mxu0 0
        %1852 = vmatprep.subr.bf16.mxu0 0
        %1853 = vmatpush1.bf16.msra.mxu0 0
        %1854 = vmatprep.subr.bf16.mxu0 0
        %1855 = vmatpush1.bf16.msra.mxu0 0
        %1856 = vmatprep.subr.bf16.mxu0 0
        %1857 = vmatpush1.bf16.msra.mxu0 0
        %1858 = vmatprep.subr.bf16.mxu0 0
        %1859 = vmatpush1.bf16.msra.mxu0 0
        %1860 = vmatprep.subr.bf16.mxu0 0
        %1861 = vmatpush1.bf16.msra.mxu0 %v1842
        %1862 = vmatprep.subr.bf16.mxu0 0
        %1863 = vmatpush1.bf16.msra.mxu0 %v1841
        %1864 = vmatprep.subr.bf16.mxu0 0
        %1865 = vmatpush2.bf16.msra.mxu0 0
        %1866 = vmatprep.subr.bf16.mxu0 0
        %1867 = vmatpush2.bf16.msra.mxu0 0
        %1868 = vmatprep.subr.bf16.mxu0 0
        %1869 = vmatpush2.bf16.msra.mxu0 0
        %1870 = vmatprep.subr.bf16.mxu0 0
        %1871 = vmatpush2.bf16.msra.mxu0 0
        %1872 = vmatprep.subr.bf16.mxu0 0
        %1873 = vmatpush2.bf16.msra.mxu0 0
        %1874 = vmatprep.subr.bf16.mxu0 0
        %1875 = vmatpush2.bf16.msra.mxu0 0
        %1876 = vmatprep.subr.bf16.mxu0 0
        %1877 = vmatpush2.bf16.msra.mxu0 0
        %1878 = vmatprep.subr.bf16.mxu0 0
        %1879 = vmatpush2.bf16.msra.mxu0 0
        %1880 = vmatprep.mubr.bf16.mxu0 0
        %1881 = vmatmul.mubr.bf16.gmra.mxu0 %v1846
        %v1882 = vpop.f32.mrf.mxu0
        %v1883 = vadd.f32 %v1831, %v1882
        %v1884 = vpop.f32.mrf.mxu0
        %v1885 = vpop.f32.mrf.mxu0
        %v1886 = vpop.f32.mrf.mxu0
        %1887 = vdwg.mxu0
        %v1888 = vadd.f32 %v688, %v1883
        %v1889 = vld [vmem:[%s660] sm:$0x1]
        %v1890 = vld [vmem:[%s663] sm:$0x1]
        %v1891 = vsel %vm694, %v1888, 0.0
        %1892 = vadd.xlane.f32.xlu0 %v1891
        %v1893 = vpop.xlane.xlu0 %1892
        %v1894 = vmul.f32 %v1893, %v698
        %v1895 = vsub.f32 %v1888, %v1894
        %v1896 = vmul.f32 %v1895, %v1895
        %v1897 = vsel %vm694, %v1896, 0.0
        %1898 = vadd.xlane.f32.xlu0 %v1897
        %v1899 = vpop.xlane.xlu0 %1898
        %v1900 = vmul.f32 %v1899, %v698
        %v1901 = vadd.f32 %v1900, 1e-05
        %v1902 = vrsqrt.pop %v1901
        %v1903 = vmul.f32 %v1895, %v1902
        %v1905 = vlaneseq
        %v1906 = vshrl.u32 %v1905, 7
        %v1907 = vsub.s32 0, %v1906
        %v1908 = vrot.slane %v1889, %v1907
        %v1910 = vmul.f32 %v1903, %v1908
        %v1912 = vlaneseq
        %v1913 = vshrl.u32 %v1912, 7
        %v1914 = vsub.s32 0, %v1913
        %v1915 = vrot.slane %v1890, %v1914
        %v1917 = vadd.f32 %v1910, %v1915
        %v1918 = vpack.c.bf16 %v1917, %v1917
        %v1919 = vld [vmem:[%s668] sm:$0xf]
        %v1920 = vld [vmem:[%s668 + $0x4] sm:$0xf]
        %v1921 = vld [vmem:[%s668 + $0x8] sm:$0xf]
        %v1922 = vld [vmem:[%s668 + $0xc] sm:$0xf]
        %v1923 = vld [vmem:[%s671] sm:$0x1]
        %v1925 = vlaneseq
        %v1926 = vshrl.u32 %v1925, 7
        %v1927 = vsub.s32 0, %v1926
        %v1928 = vrot.slane %v1923, %v1927
        %v1934 = vunpack.c.l.b16 %v1919
        %v1935 = vunpack.c.l.b16 %v1920
        %v1936 = vunpack.c.l.b16 %v1921
        %v1937 = vunpack.c.l.b16 %v1922
        %v1938 = vpack.c.b16 %v1935, %v1934
        %v1939 = vpack.c.b16 %v1937, %v1936
        %v1943 = vsel %vm694, %v1918, 0
        %1945 = vmatprep.subr.bf16.mxu0 0
        %1946 = vmatpush1.bf16.msra.mxu0 0
        %1947 = vmatprep.subr.bf16.mxu0 0
        %1948 = vmatpush1.bf16.msra.mxu0 0
        %1949 = vmatprep.subr.bf16.mxu0 0
        %1950 = vmatpush1.bf16.msra.mxu0 0
        %1951 = vmatprep.subr.bf16.mxu0 0
        %1952 = vmatpush1.bf16.msra.mxu0 0
        %1953 = vmatprep.subr.bf16.mxu0 0
        %1954 = vmatpush1.bf16.msra.mxu0 0
        %1955 = vmatprep.subr.bf16.mxu0 0
        %1956 = vmatpush1.bf16.msra.mxu0 0
        %1957 = vmatprep.subr.bf16.mxu0 0
        %1958 = vmatpush1.bf16.msra.mxu0 %v1939
        %1959 = vmatprep.subr.bf16.mxu0 0
        %1960 = vmatpush1.bf16.msra.mxu0 %v1938
        %1961 = vmatprep.subr.bf16.mxu0 0
        %1962 = vmatpush2.bf16.msra.mxu0 0
        %1963 = vmatprep.subr.bf16.mxu0 0
        %1964 = vmatpush2.bf16.msra.mxu0 0
        %1965 = vmatprep.subr.bf16.mxu0 0
        %1966 = vmatpush2.bf16.msra.mxu0 0
        %1967 = vmatprep.subr.bf16.mxu0 0
        %1968 = vmatpush2.bf16.msra.mxu0 0
        %1969 = vmatprep.subr.bf16.mxu0 0
        %1970 = vmatpush2.bf16.msra.mxu0 0
        %1971 = vmatprep.subr.bf16.mxu0 0
        %1972 = vmatpush2.bf16.msra.mxu0 0
        %1973 = vmatprep.subr.bf16.mxu0 0
        %1974 = vmatpush2.bf16.msra.mxu0 0
        %1975 = vmatprep.subr.bf16.mxu0 0
        %1976 = vmatpush2.bf16.msra.mxu0 0
        %1977 = vmatprep.mubr.bf16.mxu0 0
        %1978 = vmatmul.mubr.bf16.gmra.mxu0 %v1943
        %v1979 = vpop.f32.mrf.mxu0
        %v1980 = vadd.f32 %v1928, %v1979
        %v1981 = vpop.f32.mrf.mxu0
        %v1982 = vpop.f32.mrf.mxu0
        %v1983 = vpop.f32.mrf.mxu0
        %1984 = vdwg.mxu0
        %v1985 = vmul.f32 %v1980, %v1980
        %v1986 = vmul.f32 %v1980, %v1985
        %v1987 = vmul.f32 %v1986, 0.044715
        %v1988 = vadd.f32 %v1980, %v1987
        %v1989 = vmul.f32 %v1988, 0.7978846
        %v1990 = vtanh.pop %v1989
        %v1991 = vadd.f32 %v1990, 1.0
        %v1992 = vmul.f32 %v1991, 0.5
        %v1993 = vmul.f32 %v1980, %v1992
        %v1994 = vpack.c.bf16 %v1993, %v1993
        %v1995 = vld [vmem:[%s676] sm:$0xf]
        %v1996 = vld [vmem:[%s676 + $0x4] sm:$0xf]
        %v1997 = vld [vmem:[%s676 + $0x8] sm:$0xf]
        %v1998 = vld [vmem:[%s676 + $0xc] sm:$0xf]
        %v1999 = vld [vmem:[%s676 + $0x10] sm:$0xf]
        %v2000 = vld [vmem:[%s676 + $0x14] sm:$0xf]
        %v2001 = vld [vmem:[%s676 + $0x18] sm:$0xf]
        %v2002 = vld [vmem:[%s676 + $0x1c] sm:$0xf]
        %v2003 = vld [vmem:[%s676 + $0x20] sm:$0xf]
        %v2004 = vld [vmem:[%s676 + $0x24] sm:$0xf]
        %v2005 = vld [vmem:[%s676 + $0x28] sm:$0xf]
        %v2006 = vld [vmem:[%s676 + $0x2c] sm:$0xf]
        %v2007 = vld [vmem:[%s676 + $0x30] sm:$0xf]
        %v2008 = vld [vmem:[%s676 + $0x34] sm:$0xf]
        %v2009 = vld [vmem:[%s676 + $0x38] sm:$0xf]
        %v2010 = vld [vmem:[%s676 + $0x3c] sm:$0xf]
        %v2011 = vld [vmem:[%s679] sm:$0x1]
        %v2013 = vlaneseq
        %v2014 = vshrl.u32 %v2013, 7
        %v2015 = vsub.s32 0, %v2014
        %v2016 = vrot.slane %v2011, %v2015
        %v2034 = vunpack.c.l.b16 %v1995
        %v2035 = vunpack.c.l.b16 %v1996
        %v2036 = vunpack.c.l.b16 %v1997
        %v2037 = vunpack.c.l.b16 %v1998
        %v2038 = vunpack.c.l.b16 %v1999
        %v2039 = vunpack.c.l.b16 %v2000
        %v2040 = vunpack.c.l.b16 %v2001
        %v2041 = vunpack.c.l.b16 %v2002
        %v2042 = vunpack.c.l.b16 %v2003
        %v2043 = vunpack.c.l.b16 %v2004
        %v2044 = vunpack.c.l.b16 %v2005
        %v2045 = vunpack.c.l.b16 %v2006
        %v2046 = vunpack.c.l.b16 %v2007
        %v2047 = vunpack.c.l.b16 %v2008
        %v2048 = vunpack.c.l.b16 %v2009
        %v2049 = vunpack.c.l.b16 %v2010
        %v2050 = vpack.c.b16 %v2035, %v2034
        %v2051 = vpack.c.b16 %v2037, %v2036
        %v2052 = vpack.c.b16 %v2039, %v2038
        %v2053 = vpack.c.b16 %v2041, %v2040
        %v2054 = vpack.c.b16 %v2043, %v2042
        %v2055 = vpack.c.b16 %v2045, %v2044
        %v2056 = vpack.c.b16 %v2047, %v2046
        %v2057 = vpack.c.b16 %v2049, %v2048
        %2066 = vmatprep.subr.bf16.mxu0 0
        %2067 = vmatpush1.bf16.msra.mxu0 %v2057
        %2068 = vmatprep.subr.bf16.mxu0 0
        %2069 = vmatpush1.bf16.msra.mxu0 %v2056
        %2070 = vmatprep.subr.bf16.mxu0 0
        %2071 = vmatpush1.bf16.msra.mxu0 %v2055
        %2072 = vmatprep.subr.bf16.mxu0 0
        %2073 = vmatpush1.bf16.msra.mxu0 %v2054
        %2074 = vmatprep.subr.bf16.mxu0 0
        %2075 = vmatpush1.bf16.msra.mxu0 %v2053
        %2076 = vmatprep.subr.bf16.mxu0 0
        %2077 = vmatpush1.bf16.msra.mxu0 %v2052
        %2078 = vmatprep.subr.bf16.mxu0 0
        %2079 = vmatpush1.bf16.msra.mxu0 %v2051
        %2080 = vmatprep.subr.bf16.mxu0 0
        %2081 = vmatpush1.bf16.msra.mxu0 %v2050
        %2082 = vmatprep.subr.bf16.mxu0 0
        %2083 = vmatpush2.bf16.msra.mxu0 0
        %2084 = vmatprep.subr.bf16.mxu0 0
        %2085 = vmatpush2.bf16.msra.mxu0 0
        %2086 = vmatprep.subr.bf16.mxu0 0
        %2087 = vmatpush2.bf16.msra.mxu0 0
        %2088 = vmatprep.subr.bf16.mxu0 0
        %2089 = vmatpush2.bf16.msra.mxu0 0
        %2090 = vmatprep.subr.bf16.mxu0 0
        %2091 = vmatpush2.bf16.msra.mxu0 0
        %2092 = vmatprep.subr.bf16.mxu0 0
        %2093 = vmatpush2.bf16.msra.mxu0 0
        %2094 = vmatprep.subr.bf16.mxu0 0
        %2095 = vmatpush2.bf16.msra.mxu0 0
        %2096 = vmatprep.subr.bf16.mxu0 0
        %2097 = vmatpush2.bf16.msra.mxu0 0
        %2098 = vmatprep.mubr.bf16.mxu0 0
        %2099 = vmatmul.mubr.bf16.gmra.mxu0 %v1994
        %v2100 = vpop.f32.mrf.mxu0
        %v2101 = vadd.f32 %v2016, %v2100
        %v2102 = vpop.f32.mrf.mxu0
        %v2103 = vpop.f32.mrf.mxu0
        %v2104 = vpop.f32.mrf.mxu0
        %2105 = vdwg.mxu0
        %v2106 = vadd.f32 %v1888, %v2101
        %2107 = vst.msk [vmem:[#allocation2] sm:$0xff] %vm694, %v2106
        %p2108 = scmp.eq.s32.totalorder %s33, 2
        // Predicated region
        $region81: #{tpu_custom_call.1} parent=75 // pred_check
          %p2109 = pneg %p2108
        $region82: #{tpu_custom_call.1} parent=75 // pred_check_branch
          %2111 = sbr.rel (%p2109) target = $region84
        $region83: #{tpu_custom_call.1} parent=75 // pred_region
          %v2112 = vsel %vm694, %v2106, 0.0
          %v2113 = vrot.slane %v2112, 4
          %v2114 = vadd.f32 %v2112, %v2113
          %v2115 = vrot.slane %v2114, 2
          %v2116 = vadd.f32 %v2114, %v2115
          %v2117 = vrot.slane %v2116, 1
          %v2118 = vadd.f32 %v2116, %v2117
          %v2119 = vrcp.pop 8.0
          %v2120 = vmul.f32 %v2118, %v2119
          %vm2121 = vcmask 253952
          %2122 = vst.msk [vmem:[%s628] sm:$0x1] %vm2121, %v2120
        $region84: #{tpu_custom_call.1} parent=75 // pred_fallthru
          _
        %s2123 = sand.u32 %s412, 1
        %s2124 = scalar_lea.sflag [#allocation4], %s2123
        %s2125 = sand.u32 %s412, 1
        %s2126 = scalar_lea.vmem [#allocation3], %s2125
        // Predicated region
        $region85: #{tpu_custom_call.1} parent=75 // pred_check
          %p2127 = pneg %p422
        $region86: #{tpu_custom_call.1} parent=75 // pred_check_branch
          %2129 = sbr.rel (%p2127) target = $region88
        $region87: #{tpu_custom_call.1} parent=75 // pred_region
          %s2131 = ssub.s32 16, 16
          %2132 = vsyncadd %s2124, %s2131
          %s2133 = smul.addr %s32, 16
          %s2134 = scalar_lea.hbm %s14, %s2133
          %s2136 = sshll.u32 %s2126, 4
          %s2137 = int_to_ptr.vmem [resolvable:$true] %s2136
          %2139 = dma.vmem_to_hbm [thread:$0]  %s2137, 16, %s2134, %s2124
        $region88: #{tpu_custom_call.1} parent=75 // pred_fallthru
          _
      $region76: #{tpu_custom_call.1} parent=5 // pred_fallthru
        _
      %p2140 = scmp.le.s32.totalorder 2, %s23
      // Predicated region
      $region89: #{tpu_custom_call.1} parent=5 // pred_check
        %p2141 = pneg %p2140
      $region90: #{tpu_custom_call.1} parent=5 // pred_check_branch
        %2143 = sbr.rel (%p2141) target = $region92
      $region91: #{tpu_custom_call.1} parent=5 // pred_region
        %s2144 = ssub.s32 %s23, 2
        // Predicated region
        $region93: #{tpu_custom_call.1} parent=91 // pred_check
          %p2145 = pneg %p428
        $region94: #{tpu_custom_call.1} parent=91 // pred_check_branch
          %2147 = sbr.rel (%p2145) target = $region96
        $region95: #{tpu_custom_call.1} parent=91 // pred_region
          %s2148 = sand.u32 %s413, 1
          %s2149 = scalar_lea.sflag [#allocation4], %s2148
          %s2150 = sand.u32 %s413, 1
          %s2151 = scalar_lea.vmem [#allocation3], %s2150
          %2152 = dma.done %s2149, 16
        $region96: #{tpu_custom_call.1} parent=91 // pred_fallthru
          _
      $region92: #{tpu_custom_call.1} parent=5 // pred_fallthru
        _
    $region6: #{tpu_custom_call.1} parent=1 // loop_footer
      %s27 = sadd.s32 1, %s23
    $region7: #{tpu_custom_call.1} parent=1 // loop_footer_branch
      %22 = sbr.rel target = $region3
    $region8: #{tpu_custom_call.1} parent=1 // loop_exit
      _
    %2153 = vsyncpa [#allocation4], 1
    %s2154 = scalar_lea.sflag [#allocation4], 1
    %2155 = vsyncpa %s2154, 1

// kernel: tpu_custom_call.1
$region0: #{tpu_custom_call.1}
  #allocation0 [shape = 'u32[]', space=smem, size = 0x4, offset = 0x4, fixed_abs, tag = 'smem constant byte address 0x4 - core index']
  #allocation1 [shape = 'u32[144,128]{1,0:T(1,128)}', space=vmem, size = 0x12000, scoped, tag = 'internal scratch']
  #allocation2 [shape = 'f32[8,32]{1,0:T(8,128)}', space=vmem, size = 0x1000, scoped, tag = 'scratch operand']
  %s0 = inlined_call_operand.vmem [shape: f32[2,8,32], index: 0, kind: input, shape index: {}]
  %s1 = inlined_call_operand.vmem [shape: f32[2,1,8], index: 1, kind: input, shape index: {}]
  %s2 = inlined_call_operand.vmem [shape: f32[3,1,32], index: 2, kind: input, shape index: {}]
  %s3 = inlined_call_operand.vmem [shape: f32[3,1,32], index: 3, kind: input, shape index: {}]
  %s4 = inlined_call_operand.vmem [shape: bf16[3,32,96], index: 4, kind: input, shape index: {}]
  %s5 = inlined_call_operand.vmem [shape: f32[3,1,96], index: 5, kind: input, shape index: {}]
  %s6 = inlined_call_operand.vmem [shape: bf16[3,32,32], index: 6, kind: input, shape index: {}]
  %s7 = inlined_call_operand.vmem [shape: f32[3,1,32], index: 7, kind: input, shape index: {}]
  %s8 = inlined_call_operand.vmem [shape: f32[3,1,32], index: 8, kind: input, shape index: {}]
  %s9 = inlined_call_operand.vmem [shape: f32[3,1,32], index: 9, kind: input, shape index: {}]
  %s10 = inlined_call_operand.vmem [shape: bf16[3,32,128], index: 10, kind: input, shape index: {}]
  %s11 = inlined_call_operand.vmem [shape: f32[3,1,128], index: 11, kind: input, shape index: {}]
  %s12 = inlined_call_operand.vmem [shape: bf16[3,128,32], index: 12, kind: input, shape index: {}]
  %s13 = inlined_call_operand.vmem [shape: f32[3,1,32], index: 13, kind: input, shape index: {}]
  %s14 = inlined_call_operand.hbm [shape: f32[2,1,32], index: 14, kind: output, shape index: {}]
  %s15 = sld [smem:[#allocation0]]
  $region97: #{tpu_custom_call.1} parent=0
    _
  %s17 = ssub.s32 1, %s15
  %s18 = scalar_select 0, %s17, %s15
  $region1: #{tpu_custom_call.1} parent=0
    #allocation3 [shape = 'u8[1024]{0}', space=vmem, size = 0x400, scoped, tag = 'output window, operand 0']
    #allocation4 [shape = 's32[2]{0}', space=sflag, size = 0x8, scoped, tag = 'scoped memory for tpu_custom_call.1']
    %19 = vsyncpa [#allocation4], 0
    %s20 = scalar_lea.sflag [#allocation4], 1
    %21 = vsyncpa %s20, 0
    loop: start=0, step=1, limit=8
    $region2: #{tpu_custom_call.1} parent=1 // loop_pre_header
      _
    $region3: #{tpu_custom_call.1} parent=1 // loop_header
      %s23 = sphi 0, %s27
      %p24 = scmp.ge.s32.totalorder %s23, 8
      %s30 = sphi 0, %s42
      %s31 = sphi 0, %s38
      %s32 = sphi 0, %s30
      %s33 = sphi 0, %s31
      %s34 = sphi 0, %s32
      %s35 = sphi 0, %s33
      %s45 = sphi 0, %s47
      %s48 = sphi 0, %s45
      %s49 = sphi 0, %s48
      %s65 = sphi 0, %s49
      %s71 = sphi 0, %s73
      %s74 = sphi 0, %s71
      %s75 = sphi 0, %s74
      %s91 = sphi 0, %s75
      %s97 = sphi 0, %s99
      %s100 = sphi 0, %s97
      %s101 = sphi 0, %s100
      %s117 = sphi 0, %s101
      %s123 = sphi 0, %s125
      %s126 = sphi 0, %s123
      %s127 = sphi 0, %s126
      %s143 = sphi 0, %s127
      %s149 = sphi 0, %s151
      %s152 = sphi 0, %s149
      %s153 = sphi 0, %s152
      %s169 = sphi 0, %s153
      %s175 = sphi 0, %s177
      %s178 = sphi 0, %s175
      %s179 = sphi 0, %s178
      %s195 = sphi 0, %s179
      %s201 = sphi 0, %s203
      %s204 = sphi 0, %s201
      %s205 = sphi 0, %s204
      %s221 = sphi 0, %s205
      %s227 = sphi 0, %s229
      %s230 = sphi 0, %s227
      %s231 = sphi 0, %s230
      %s247 = sphi 0, %s231
      %s253 = sphi 0, %s255
      %s256 = sphi 0, %s253
      %s257 = sphi 0, %s256
      %s273 = sphi 0, %s257
      %s279 = sphi 0, %s281
      %s282 = sphi 0, %s279
      %s283 = sphi 0, %s282
      %s299 = sphi 0, %s283
      %s305 = sphi 0, %s307
      %s308 = sphi 0, %s305
      %s309 = sphi 0, %s308
      %s325 = sphi 0, %s309
      %s331 = sphi 0, %s333
      %s334 = sphi 0, %s331
      %s335 = sphi 0, %s334
      %s351 = sphi 0, %s335
      %s357 = sphi 0, %s359
      %s360 = sphi 0, %s357
      %s361 = sphi 0, %s360
      %s377 = sphi 0, %s361
      %s383 = sphi 0, %s385
      %s386 = sphi 0, %s383
      %s387 = sphi 0, %s386
      %s403 = sphi 0, %s387
      %s409 = sphi 0, %s411
      %s412 = sphi 0, %s409
      %s413 = sphi 0, %s412
      %s429 = sphi 0, %s413
    $region4: #{tpu_custom_call.1} parent=1 // loop_header_branch
      %26 = sbr.rel (%p24) target = $region8
    $region5: #{tpu_custom_call.1} parent=1 // loop_body
      %s28 = ssub.s32 %s23, 1
      %s29 = ssub.s32 %s23, 2
      %s36 = sadd.s32 1, %s31
      %p37 = scmp.ge.s32.totalorder %s36, 3
      %s38 = scalar_select %p37, 0, %s36
      %s39 = sadd.s32 1, %s30
      %s40 = scalar_select %p37, %s39, %s30
      %p41 = scmp.ge.s32.totalorder %s40, 2
      %s42 = scalar_select %p41, 0, %s40
      %s43 = ssub.s32 %s30, %s42
      %p44 = scmp.eq.s32.totalorder %s43, 0
      %s46 = sadd.s32 %s45, 1
      %s47 = scalar_select %p44, %s45, %s46
      %p50 = pneg %p44
      %p51 = scmp.eq.s32.totalorder %s23, 5
      %p52 = por %p50, %p51
      %p53 = scmp.ne.s32.totalorder %s45, %s48
      %p54 = scmp.eq.s32.totalorder %s23, 0
      %p55 = por %p53, %p54
      %p56 = scmp.ne.s32.totalorder %s45, %s48
      %p57 = scmp.eq.s32.totalorder %s28, 5
      %p58 = por %p56, %p57
      %p59 = scmp.ne.s32.totalorder %s48, %s49
      %p60 = scmp.eq.s32.totalorder %s28, 0
      %p61 = por %p59, %p60
      %p62 = scmp.ne.s32.totalorder %s48, %s49
      %p63 = scmp.eq.s32.totalorder %s29, 5
      %p64 = por %p62, %p63
      %p66 = scmp.ne.s32.totalorder %s49, %s65
      %p67 = scmp.eq.s32.totalorder %s29, 0
      %p68 = por %p66, %p67
      %s69 = ssub.s32 %s30, %s42
      %p70 = scmp.eq.s32.totalorder %s69, 0
      %s72 = sadd.s32 %s71, 1
      %s73 = scalar_select %p70, %s71, %s72
      %p76 = pneg %p70
      %p77 = scmp.eq.s32.totalorder %s23, 5
      %p78 = por %p76, %p77
      %p79 = scmp.ne.s32.totalorder %s71, %s74
      %p80 = scmp.eq.s32.totalorder %s23, 0
      %p81 = por %p79, %p80
      %p82 = scmp.ne.s32.totalorder %s71, %s74
      %p83 = scmp.eq.s32.totalorder %s28, 5
      %p84 = por %p82, %p83
      %p85 = scmp.ne.s32.totalorder %s74, %s75
      %p86 = scmp.eq.s32.totalorder %s28, 0
      %p87 = por %p85, %p86
      %p88 = scmp.ne.s32.totalorder %s74, %s75
      %p89 = scmp.eq.s32.totalorder %s29, 5
      %p90 = por %p88, %p89
      %p92 = scmp.ne.s32.totalorder %s75, %s91
      %p93 = scmp.eq.s32.totalorder %s29, 0
      %p94 = por %p92, %p93
      %s95 = ssub.s32 %s31, %s38
      %p96 = scmp.eq.s32.totalorder %s95, 0
      %s98 = sadd.s32 %s97, 1
      %s99 = scalar_select %p96, %s97, %s98
      %p102 = pneg %p96
      %p103 = scmp.eq.s32.totalorder %s23, 5
      %p104 = por %p102, %p103
      %p105 = scmp.ne.s32.totalorder %s97, %s100
      %p106 = scmp.eq.s32.totalorder %s23, 0
      %p107 = por %p105, %p106
      %p108 = scmp.ne.s32.totalorder %s97, %s100
      %p109 = scmp.eq.s32.totalorder %s28, 5
      %p110 = por %p108, %p109
      %p111 = scmp.ne.s32.totalorder %s100, %s101
      %p112 = scmp.eq.s32.totalorder %s28, 0
      %p113 = por %p111, %p112
      %p114 = scmp.ne.s32.totalorder %s100, %s101
      %p115 = scmp.eq.s32.totalorder %s29, 5
      %p116 = por %p114, %p115
      %p118 = scmp.ne.s32.totalorder %s101, %s117
      %p119 = scmp.eq.s32.totalorder %s29, 0
      %p120 = por %p118, %p119
      %s121 = ssub.s32 %s31, %s38
      %p122 = scmp.eq.s32.totalorder %s121, 0
      %s124 = sadd.s32 %s123, 1
      %s125 = scalar_select %p122, %s123, %s124
      %p128 = pneg %p122
      %p129 = scmp.eq.s32.totalorder %s23, 5
      %p130 = por %p128, %p129
      %p131 = scmp.ne.s32.totalorder %s123, %s126
      %p132 = scmp.eq.s32.totalorder %s23, 0
      %p133 = por %p131, %p132
      %p134 = scmp.ne.s32.totalorder %s123, %s126
      %p135 = scmp.eq.s32.totalorder %s28, 5
      %p136 = por %p134, %p135
      %p137 = scmp.ne.s32.totalorder %s126, %s127
      %p138 = scmp.eq.s32.totalorder %s28, 0
      %p139 = por %p137, %p138
      %p140 = scmp.ne.s32.totalorder %s126, %s127
      %p141 = scmp.eq.s32.totalorder %s29, 5
      %p142 = por %p140, %p141
      %p144 = scmp.ne.s32.totalorder %s127, %s143
      %p145 = scmp.eq.s32.totalorder %s29, 0
      %p146 = por %p144, %p145
      %s147 = ssub.s32 %s31, %s38
      %p148 = scmp.eq.s32.totalorder %s147, 0
      %s150 = sadd.s32 %s149, 1
      %s151 = scalar_select %p148, %s149, %s150
      %p154 = pneg %p148
      %p155 = scmp.eq.s32.totalorder %s23, 5
      %p156 = por %p154, %p155
      %p157 = scmp.ne.s32.totalorder %s149, %s152
      %p158 = scmp.eq.s32.totalorder %s23, 0
      %p159 = por %p157, %p158
      %p160 = scmp.ne.s32.totalorder %s149, %s152
      %p161 = scmp.eq.s32.totalorder %s28, 5
      %p162 = por %p160, %p161
      %p163 = scmp.ne.s32.totalorder %s152, %s153
      %p164 = scmp.eq.s32.totalorder %s28, 0
      %p165 = por %p163, %p164
      %p166 = scmp.ne.s32.totalorder %s152, %s153
      %p167 = scmp.eq.s32.totalorder %s29, 5
      %p168 = por %p166, %p167
      %p170 = scmp.ne.s32.totalorder %s153, %s169
      %p171 = scmp.eq.s32.totalorder %s29, 0
      %p172 = por %p170, %p171
      %s173 = ssub.s32 %s31, %s38
      %p174 = scmp.eq.s32.totalorder %s173, 0
      %s176 = sadd.s32 %s175, 1
      %s177 = scalar_select %p174, %s175, %s176
      %p180 = pneg %p174
      %p181 = scmp.eq.s32.totalorder %s23, 5
      %p182 = por %p180, %p181
      %p183 = scmp.ne.s32.totalorder %s175, %s178
      %p184 = scmp.eq.s32.totalorder %s23, 0
      %p185 = por %p183, %p184
      %p186 = scmp.ne.s32.totalorder %s175, %s178
      %p187 = scmp.eq.s32.totalorder %s28, 5
      %p188 = por %p186, %p187
      %p189 = scmp.ne.s32.totalorder %s178, %s179
      %p190 = scmp.eq.s32.totalorder %s28, 0
      %p191 = por %p189, %p190
      %p192 = scmp.ne.s32.totalorder %s178, %s179
      %p193 = scmp.eq.s32.totalorder %s29, 5
      %p194 = por %p192, %p193
      %p196 = scmp.ne.s32.totalorder %s179, %s195
      %p197 = scmp.eq.s32.totalorder %s29, 0
      %p198 = por %p196, %p197
      %s199 = ssub.s32 %s31, %s38
      %p200 = scmp.eq.s32.totalorder %s199, 0
      %s202 = sadd.s32 %s201, 1
      %s203 = scalar_select %p200, %s201, %s202
      %p206 = pneg %p200
      %p207 = scmp.eq.s32.totalorder %s23, 5
      %p208 = por %p206, %p207
      %p209 = scmp.ne.s32.totalorder %s201, %s204
      %p210 = scmp.eq.s32.totalorder %s23, 0
      %p211 = por %p209, %p210
      %p212 = scmp.ne.s32.totalorder %s201, %s204
      %p213 = scmp.eq.s32.totalorder %s28, 5
      %p214 = por %p212, %p213
      %p215 = scmp.ne.s32.totalorder %s204, %s205
      %p216 = scmp.eq.s32.totalorder %s28, 0
      %p217 = por %p215, %p216
      %p218 = scmp.ne.s32.totalorder %s204, %s205
      %p219 = scmp.eq.s32.totalorder %s29, 5
      %p220 = por %p218, %p219
      %p222 = scmp.ne.s32.totalorder %s205, %s221
      %p223 = scmp.eq.s32.totalorder %s29, 0
      %p224 = por %p222, %p223
      %s225 = ssub.s32 %s31, %s38
      %p226 = scmp.eq.s32.totalorder %s225, 0
      %s228 = sadd.s32 %s227, 1
      %s229 = scalar_select %p226, %s227, %s228
      %p232 = pneg %p226
      %p233 = scmp.eq.s32.totalorder %s23, 5
      %p234 = por %p232, %p233
      %p235 = scmp.ne.s32.totalorder %s227, %s230
      %p236 = scmp.eq.s32.totalorder %s23, 0
      %p237 = por %p235, %p236
      %p238 = scmp.ne.s32.totalorder %s227, %s230
      %p239 = scmp.eq.s32.totalorder %s28, 5
      %p240 = por %p238, %p239
      %p241 = scmp.ne.s32.totalorder %s230, %s231
      %p242 = scmp.eq.s32.totalorder %s28, 0
      %p243 = por %p241, %p242
      %p244 = scmp.ne.s32.totalorder %s230, %s231
      %p245 = scmp.eq.s32.totalorder %s29, 5
      %p246 = por %p244, %p245
      %p248 = scmp.ne.s32.totalorder %s231, %s247
      %p249 = scmp.eq.s32.totalorder %s29, 0
      %p250 = por %p248, %p249
      %s251 = ssub.s32 %s31, %s38
      %p252 = scmp.eq.s32.totalorder %s251, 0
      %s254 = sadd.s32 %s253, 1
      %s255 = scalar_select %p252, %s253, %s254
      %p258 = pneg %p252
      %p259 = scmp.eq.s32.totalorder %s23, 5
      %p260 = por %p258, %p259
      %p261 = scmp.ne.s32.totalorder %s253, %s256
      %p262 = scmp.eq.s32.totalorder %s23, 0
      %p263 = por %p261, %p262
      %p264 = scmp.ne.s32.totalorder %s253, %s256
      %p265 = scmp.eq.s32.totalorder %s28, 5
      %p266 = por %p264, %p265
      %p267 = scmp.ne.s32.totalorder %s256, %s257
      %p268 = scmp.eq.s32.totalorder %s28, 0
      %p269 = por %p267, %p268
      %p270 = scmp.ne.s32.totalorder %s256, %s257
      %p271 = scmp.eq.s32.totalorder %s29, 5
      %p272 = por %p270, %p271
      %p274 = scmp.ne.s32.totalorder %s257, %s273
      %p275 = scmp.eq.s32.totalorder %s29, 0
      %p276 = por %p274, %p275
      %s277 = ssub.s32 %s31, %s38
      %p278 = scmp.eq.s32.totalorder %s277, 0
      %s280 = sadd.s32 %s279, 1
      %s281 = scalar_select %p278, %s279, %s280
      %p284 = pneg %p278
      %p285 = scmp.eq.s32.totalorder %s23, 5
      %p286 = por %p284, %p285
      %p287 = scmp.ne.s32.totalorder %s279, %s282
      %p288 = scmp.eq.s32.totalorder %s23, 0
      %p289 = por %p287, %p288
      %p290 = scmp.ne.s32.totalorder %s279, %s282
      %p291 = scmp.eq.s32.totalorder %s28, 5
      %p292 = por %p290, %p291
      %p293 = scmp.ne.s32.totalorder %s282, %s283
      %p294 = scmp.eq.s32.totalorder %s28, 0
      %p295 = por %p293, %p294
      %p296 = scmp.ne.s32.totalorder %s282, %s283
      %p297 = scmp.eq.s32.totalorder %s29, 5
      %p298 = por %p296, %p297
      %p300 = scmp.ne.s32.totalorder %s283, %s299
      %p301 = scmp.eq.s32.totalorder %s29, 0
      %p302 = por %p300, %p301
      %s303 = ssub.s32 %s31, %s38
      %p304 = scmp.eq.s32.totalorder %s303, 0
      %s306 = sadd.s32 %s305, 1
      %s307 = scalar_select %p304, %s305, %s306
      %p310 = pneg %p304
      %p311 = scmp.eq.s32.totalorder %s23, 5
      %p312 = por %p310, %p311
      %p313 = scmp.ne.s32.totalorder %s305, %s308
      %p314 = scmp.eq.s32.totalorder %s23, 0
      %p315 = por %p313, %p314
      %p316 = scmp.ne.s32.totalorder %s305, %s308
      %p317 = scmp.eq.s32.totalorder %s28, 5
      %p318 = por %p316, %p317
      %p319 = scmp.ne.s32.totalorder %s308, %s309
      %p320 = scmp.eq.s32.totalorder %s28, 0
      %p321 = por %p319, %p320
      %p322 = scmp.ne.s32.totalorder %s308, %s309
      %p323 = scmp.eq.s32.totalorder %s29, 5
      %p324 = por %p322, %p323
      %p326 = scmp.ne.s32.totalorder %s309, %s325
      %p327 = scmp.eq.s32.totalorder %s29, 0
      %p328 = por %p326, %p327
      %s329 = ssub.s32 %s31, %s38
      %p330 = scmp.eq.s32.totalorder %s329, 0
      %s332 = sadd.s32 %s331, 1
      %s333 = scalar_select %p330, %s331, %s332
      %p336 = pneg %p330
      %p337 = scmp.eq.s32.totalorder %s23, 5
      %p338 = por %p336, %p337
      %p339 = scmp.ne.s32.totalorder %s331, %s334
      %p340 = scmp.eq.s32.totalorder %s23, 0
      %p341 = por %p339, %p340
      %p342 = scmp.ne.s32.totalorder %s331, %s334
      %p343 = scmp.eq.s32.totalorder %s28, 5
      %p344 = por %p342, %p343
      %p345 = scmp.ne.s32.totalorder %s334, %s335
      %p346 = scmp.eq.s32.totalorder %s28, 0
      %p347 = por %p345, %p346
      %p348 = scmp.ne.s32.totalorder %s334, %s335
      %p349 = scmp.eq.s32.totalorder %s29, 5
      %p350 = por %p348, %p349
      %p352 = scmp.ne.s32.totalorder %s335, %s351
      %p353 = scmp.eq.s32.totalorder %s29, 0
      %p354 = por %p352, %p353
      %s355 = ssub.s32 %s31, %s38
      %p356 = scmp.eq.s32.totalorder %s355, 0
      %s358 = sadd.s32 %s357, 1
      %s359 = scalar_select %p356, %s357, %s358
      %p362 = pneg %p356
      %p363 = scmp.eq.s32.totalorder %s23, 5
      %p364 = por %p362, %p363
      %p365 = scmp.ne.s32.totalorder %s357, %s360
      %p366 = scmp.eq.s32.totalorder %s23, 0
      %p367 = por %p365, %p366
      %p368 = scmp.ne.s32.totalorder %s357, %s360
      %p369 = scmp.eq.s32.totalorder %s28, 5
      %p370 = por %p368, %p369
      %p371 = scmp.ne.s32.totalorder %s360, %s361
      %p372 = scmp.eq.s32.totalorder %s28, 0
      %p373 = por %p371, %p372
      %p374 = scmp.ne.s32.totalorder %s360, %s361
      %p375 = scmp.eq.s32.totalorder %s29, 5
      %p376 = por %p374, %p375
      %p378 = scmp.ne.s32.totalorder %s361, %s377
      %p379 = scmp.eq.s32.totalorder %s29, 0
      %p380 = por %p378, %p379
      %s381 = ssub.s32 %s31, %s38
      %p382 = scmp.eq.s32.totalorder %s381, 0
      %s384 = sadd.s32 %s383, 1
      %s385 = scalar_select %p382, %s383, %s384
      %p388 = pneg %p382
      %p389 = scmp.eq.s32.totalorder %s23, 5
      %p390 = por %p388, %p389
      %p391 = scmp.ne.s32.totalorder %s383, %s386
      %p392 = scmp.eq.s32.totalorder %s23, 0
      %p393 = por %p391, %p392
      %p394 = scmp.ne.s32.totalorder %s383, %s386
      %p395 = scmp.eq.s32.totalorder %s28, 5
      %p396 = por %p394, %p395
      %p397 = scmp.ne.s32.totalorder %s386, %s387
      %p398 = scmp.eq.s32.totalorder %s28, 0
      %p399 = por %p397, %p398
      %p400 = scmp.ne.s32.totalorder %s386, %s387
      %p401 = scmp.eq.s32.totalorder %s29, 5
      %p402 = por %p400, %p401
      %p404 = scmp.ne.s32.totalorder %s387, %s403
      %p405 = scmp.eq.s32.totalorder %s29, 0
      %p406 = por %p404, %p405
      %s407 = ssub.s32 %s30, %s42
      %p408 = scmp.eq.s32.totalorder %s407, 0
      %s410 = sadd.s32 %s409, 1
      %s411 = scalar_select %p408, %s409, %s410
      %p414 = pneg %p408
      %p415 = scmp.eq.s32.totalorder %s23, 5
      %p416 = por %p414, %p415
      %p417 = scmp.ne.s32.totalorder %s409, %s412
      %p418 = scmp.eq.s32.totalorder %s23, 0
      %p419 = por %p417, %p418
      %p420 = scmp.ne.s32.totalorder %s409, %s412
      %p421 = scmp.eq.s32.totalorder %s28, 5
      %p422 = por %p420, %p421
      %p423 = scmp.ne.s32.totalorder %s412, %s413
      %p424 = scmp.eq.s32.totalorder %s28, 0
      %p425 = por %p423, %p424
      %p426 = scmp.ne.s32.totalorder %s412, %s413
      %p427 = scmp.eq.s32.totalorder %s29, 5
      %p428 = por %p426, %p427
      %p430 = scmp.ne.s32.totalorder %s413, %s429
      %p431 = scmp.eq.s32.totalorder %s29, 0
      %p432 = por %p430, %p431
      %p433 = scmp.le.s32.totalorder 1, %s23
      %p434 = scmp.lt.s32.totalorder %s23, 7
      %p435 = pnand %p433, %p434
      %p436 = pneg %p435
      // Predicated region
      $region9: #{tpu_custom_call.1} parent=5 // pred_check
        _
      $region10: #{tpu_custom_call.1} parent=5 // pred_check_branch
        %438 = sbr.rel (%p435) target = $region12
      $region11: #{tpu_custom_call.1} parent=5 // pred_region
        %s439 = ssub.s32 %s23, 1
      $region12: #{tpu_custom_call.1} parent=5 // pred_fallthru
        _
      %p440 = scmp.lt.s32.totalorder %s23, 6
      // Predicated region
      $region13: #{tpu_custom_call.1} parent=5 // pred_check
        %p441 = pneg %p440
      $region14: #{tpu_custom_call.1} parent=5 // pred_check_branch
        %443 = sbr.rel (%p441) target = $region16
      $region15: #{tpu_custom_call.1} parent=5 // pred_region
        // Predicated region
        $region17: #{tpu_custom_call.1} parent=15 // pred_check
          %p444 = pneg %p55
        $region18: #{tpu_custom_call.1} parent=15 // pred_check_branch
          %446 = sbr.rel (%p444) target = $region20
        $region19: #{tpu_custom_call.1} parent=15 // pred_region
          %p447 = scmp.lt.s32.totalorder %s30, 1
          %s448 = scalar_select %p447, %s30, 1
          %s449 = smul.addr %s448, 8
          %s450 = scalar_lea.vmem %s0, %s449
        $region20: #{tpu_custom_call.1} parent=15 // pred_fallthru
          _
        // Predicated region
        $region21: #{tpu_custom_call.1} parent=15 // pred_check
          %p451 = pneg %p81
        $region22: #{tpu_custom_call.1} parent=15 // pred_check_branch
          %453 = sbr.rel (%p451) target = $region24
        $region23: #{tpu_custom_call.1} parent=15 // pred_region
          %p454 = scmp.lt.s32.totalorder %s30, 1
          %s455 = scalar_select %p454, %s30, 1
          %s456 = scalar_lea.vmem %s1, %s455
        $region24: #{tpu_custom_call.1} parent=15 // pred_fallthru
          _
        // Predicated region
        $region25: #{tpu_custom_call.1} parent=15 // pred_check
          %p457 = pneg %p107
        $region26: #{tpu_custom_call.1} parent=15 // pred_check_branch
          %459 = sbr.rel (%p457) target = $region28
        $region27: #{tpu_custom_call.1} parent=15 // pred_region
          %p460 = scmp.lt.s32.totalorder %s31, 2
          %s461 = scalar_select %p460, %s31, 2
          %s462 = scalar_lea.vmem %s2, %s461
        $region28: #{tpu_custom_call.1} parent=15 // pred_fallthru
          _
        // Predicated region
        $region29: #{tpu_custom_call.1} parent=15 // pred_check
          %p463 = pneg %p133
        $region30: #{tpu_custom_call.1} parent=15 // pred_check_branch
          %465 = sbr.rel (%p463) target = $region32
        $region31: #{tpu_custom_call.1} parent=15 // pred_region
          %p466 = scmp.lt.s32.totalorder %s31, 2
          %s467 = scalar_select %p466, %s31, 2
          %s468 = scalar_lea.vmem %s3, %s467
        $region32: #{tpu_custom_call.1} parent=15 // pred_fallthru
          _
        // Predicated region
        $region33: #{tpu_custom_call.1} parent=15 // pred_check
          %p469 = pneg %p159
        $region34: #{tpu_custom_call.1} parent=15 // pred_check_branch
          %471 = sbr.rel (%p469) target = $region36
        $region35: #{tpu_custom_call.1} parent=15 // pred_region
          %p472 = scmp.lt.s32.totalorder %s31, 2
          %s473 = scalar_select %p472, %s31, 2
          %s474 = smul.addr %s473, 4
          %s475 = smul.addr %s474, 4
          %s476 = scalar_lea.vmem %s4, %s475
        $region36: #{tpu_custom_call.1} parent=15 // pred_fallthru
          _
        // Predicated region
        $region37: #{tpu_custom_call.1} parent=15 // pred_check
          %p477 = pneg %p185
        $region38: #{tpu_custom_call.1} parent=15 // pred_check_branch
          %479 = sbr.rel (%p477) target = $region40
        $region39: #{tpu_custom_call.1} parent=15 // pred_region
          %p480 = scmp.lt.s32.totalorder %s31, 2
          %s481 = scalar_select %p480, %s31, 2
          %s482 = scalar_lea.vmem %s5, %s481
        $region40: #{tpu_custom_call.1} parent=15 // pred_fallthru
          _
        // Predicated region
        $region41: #{tpu_custom_call.1} parent=15 // pred_check
          %p483 = pneg %p211
        $region42: #{tpu_custom_call.1} parent=15 // pred_check_branch
          %485 = sbr.rel (%p483) target = $region44
        $region43: #{tpu_custom_call.1} parent=15 // pred_region
          %p486 = scmp.lt.s32.totalorder %s31, 2
          %s487 = scalar_select %p486, %s31, 2
          %s488 = smul.addr %s487, 4
          %s489 = smul.addr %s488, 4
          %s490 = scalar_lea.vmem %s6, %s489
        $region44: #{tpu_custom_call.1} parent=15 // pred_fallthru
          _
        // Predicated region
        $region45: #{tpu_custom_call.1} parent=15 // pred_check
          %p491 = pneg %p237
        $region46: #{tpu_custom_call.1} parent=15 // pred_check_branch
          %493 = sbr.rel (%p491) target = $region48
        $region47: #{tpu_custom_call.1} parent=15 // pred_region
          %p494 = scmp.lt.s32.totalorder %s31, 2
          %s495 = scalar_select %p494, %s31, 2
          %s496 = scalar_lea.vmem %s7, %s495
        $region48: #{tpu_custom_call.1} parent=15 // pred_fallthru
          _
        // Predicated region
        $region49: #{tpu_custom_call.1} parent=15 // pred_check
          %p497 = pneg %p263
        $region50: #{tpu_custom_call.1} parent=15 // pred_check_branch
          %499 = sbr.rel (%p497) target = $region52
        $region51: #{tpu_custom_call.1} parent=15 // pred_region
          %p500 = scmp.lt.s32.totalorder %s31, 2
          %s501 = scalar_select %p500, %s31, 2
          %s502 = scalar_lea.vmem %s8, %s501
        $region52: #{tpu_custom_call.1} parent=15 // pred_fallthru
          _
        // Predicated region
        $region53: #{tpu_custom_call.1} parent=15 // pred_check
          %p503 = pneg %p289
        $region54: #{tpu_custom_call.1} parent=15 // pred_check_branch
          %505 = sbr.rel (%p503) target = $region56
        $region55: #{tpu_custom_call.1} parent=15 // pred_region
          %p506 = scmp.lt.s32.totalorder %s31, 2
          %s507 = scalar_select %p506, %s31, 2
          %s508 = scalar_lea.vmem %s9, %s507
        $region56: #{tpu_custom_call.1} parent=15 // pred_fallthru
          _
        // Predicated region
        $region57: #{tpu_custom_call.1} parent=15 // pred_check
          %p509 = pneg %p315
        $region58: #{tpu_custom_call.1} parent=15 // pred_check_branch
          %511 = sbr.rel (%p509) target = $region60
        $region59: #{tpu_custom_call.1} parent=15 // pred_region
          %p512 = scmp.lt.s32.totalorder %s31, 2
          %s513 = scalar_select %p512, %s31, 2
          %s514 = smul.addr %s513, 4
          %s515 = smul.addr %s514, 4
          %s516 = scalar_lea.vmem %s10, %s515
        $region60: #{tpu_custom_call.1} parent=15 // pred_fallthru
          _
        // Predicated region
        $region61: #{tpu_custom_call.1} parent=15 // pred_check
          %p517 = pneg %p341
        $region62: #{tpu_custom_call.1} parent=15 // pred_check_branch
          %519 = sbr.rel (%p517) target = $region64
        $region63: #{tpu_custom_call.1} parent=15 // pred_region
          %p520 = scmp.lt.s32.totalorder %s31, 2
          %s521 = scalar_select %p520, %s31, 2
          %s522 = scalar_lea.vmem %s11, %s521
        $region64: #{tpu_custom_call.1} parent=15 // pred_fallthru
          _
        // Predicated region
        $region65: #{tpu_custom_call.1} parent=15 // pred_check
          %p523 = pneg %p367
        $region66: #{tpu_custom_call.1} parent=15 // pred_check_branch
          %525 = sbr.rel (%p523) target = $region68
        $region67: #{tpu_custom_call.1} parent=15 // pred_region
          %p526 = scmp.lt.s32.totalorder %s31, 2
          %s527 = scalar_select %p526, %s31, 2
          %s528 = smul.addr %s527, 16
          %s529 = smul.addr %s528, 4
          %s530 = scalar_lea.vmem %s12, %s529
        $region68: #{tpu_custom_call.1} parent=15 // pred_fallthru
          _
        // Predicated region
        $region69: #{tpu_custom_call.1} parent=15 // pred_check
          %p531 = pneg %p393
        $region70: #{tpu_custom_call.1} parent=15 // pred_check_branch
          %533 = sbr.rel (%p531) target = $region72
        $region71: #{tpu_custom_call.1} parent=15 // pred_region
          %p534 = scmp.lt.s32.totalorder %s31, 2
          %s535 = scalar_select %p534, %s31, 2
          %s536 = scalar_lea.vmem %s13, %s535
        $region72: #{tpu_custom_call.1} parent=15 // pred_fallthru
          _
      $region16: #{tpu_custom_call.1} parent=5 // pred_fallthru
        _
      %p537 = scmp.le.s32.totalorder 1, %s23
      %p538 = scmp.lt.s32.totalorder %s23, 7
      %p539 = pnand %p537, %p538
      %p540 = pneg %p539
      // Predicated region
      $region73: #{tpu_custom_call.1} parent=5 // pred_check
        _
      $region74: #{tpu_custom_call.1} parent=5 // pred_check_branch
        %542 = sbr.rel (%p539) target = $region76
      $region75: #{tpu_custom_call.1} parent=5 // pred_region
        %s543 = ssub.s32 %s23, 1
        %p544 = scmp.lt.s32.totalorder %s32, 1
        %s545 = scalar_select %p544, %s32, 1
        %s546 = smul.addr %s545, 8
        %s547 = scalar_lea.vmem %s0, %s546
        %p548 = pneg %p61
        %p549 = pneg %p58
        %p550 = scmp.lt.s32.totalorder %s32, 1
        %s551 = scalar_select %p550, %s32, 1
        %s552 = scalar_lea.vmem %s1, %s551
        %p553 = pneg %p87
        %p554 = pneg %p84
        %p555 = scmp.lt.s32.totalorder %s33, 2
        %s556 = scalar_select %p555, %s33, 2
        %s557 = scalar_lea.vmem %s2, %s556
        %p558 = pneg %p113
        %p559 = pneg %p110
        %p560 = scmp.lt.s32.totalorder %s33, 2
        %s561 = scalar_select %p560, %s33, 2
        %s562 = scalar_lea.vmem %s3, %s561
        %p563 = pneg %p139
        %p564 = pneg %p136
        %p565 = scmp.lt.s32.totalorder %s33, 2
        %s566 = scalar_select %p565, %s33, 2
        %s567 = smul.addr %s566, 4
        %s568 = smul.addr %s567, 4
        %s569 = scalar_lea.vmem %s4, %s568
        %p570 = pneg %p165
        %p571 = pneg %p162
        %p572 = scmp.lt.s32.totalorder %s33, 2
        %s573 = scalar_select %p572, %s33, 2
        %s574 = scalar_lea.vmem %s5, %s573
        %p575 = pneg %p191
        %p576 = pneg %p188
        %p577 = scmp.lt.s32.totalorder %s33, 2
        %s578 = scalar_select %p577, %s33, 2
        %s579 = smul.addr %s578, 4
        %s580 = smul.addr %s579, 4
        %s581 = scalar_lea.vmem %s6, %s580
        %p582 = pneg %p217
        %p583 = pneg %p214
        %p584 = scmp.lt.s32.totalorder %s33, 2
        %s585 = scalar_select %p584, %s33, 2
        %s586 = scalar_lea.vmem %s7, %s585
        %p587 = pneg %p243
        %p588 = pneg %p240
        %p589 = scmp.lt.s32.totalorder %s33, 2
        %s590 = scalar_select %p589, %s33, 2
        %s591 = scalar_lea.vmem %s8, %s590
        %p592 = pneg %p269
        %p593 = pneg %p266
        %p594 = scmp.lt.s32.totalorder %s33, 2
        %s595 = scalar_select %p594, %s33, 2
        %s596 = scalar_lea.vmem %s9, %s595
        %p597 = pneg %p295
        %p598 = pneg %p292
        %p599 = scmp.lt.s32.totalorder %s33, 2
        %s600 = scalar_select %p599, %s33, 2
        %s601 = smul.addr %s600, 4
        %s602 = smul.addr %s601, 4
        %s603 = scalar_lea.vmem %s10, %s602
        %p604 = pneg %p321
        %p605 = pneg %p318
        %p606 = scmp.lt.s32.totalorder %s33, 2
        %s607 = scalar_select %p606, %s33, 2
        %s608 = scalar_lea.vmem %s11, %s607
        %p609 = pneg %p347
        %p610 = pneg %p344
        %p611 = scmp.lt.s32.totalorder %s33, 2
        %s612 = scalar_select %p611, %s33, 2
        %s613 = smul.addr %s612, 16
        %s614 = smul.addr %s613, 4
        %s615 = scalar_lea.vmem %s12, %s614
        %p616 = pneg %p373
        %p617 = pneg %p370
        %p618 = scmp.lt.s32.totalorder %s33, 2
        %s619 = scalar_select %p618, %s33, 2
        %s620 = scalar_lea.vmem %s13, %s619
        %p621 = pneg %p399
        %p622 = pneg %p396
        %p623 = pneg %p425
        %p624 = pneg %p422
        %s625 = sand.u32 %s412, 1
        %s626 = scalar_lea.sflag [#allocation4], %s625
        %s627 = sand.u32 %s412, 1
        %s628 = scalar_lea.vmem [#allocation3], %s627
        %p629 = scmp.lt.s32.totalorder %s32, 1
        %s630 = scalar_select %p629, %s32, 1
        %s631 = smul.addr %s630, 8
        %s632 = scalar_lea.vmem %s0, %s631
        %p633 = scmp.lt.s32.totalorder %s32, 1
        %s634 = scalar_select %p633, %s32, 1
        %s635 = scalar_lea.vmem %s1, %s634
        %p636 = scmp.lt.s32.totalorder %s33, 2
        %s637 = scalar_select %p636, %s33, 2
        %s638 = scalar_lea.vmem %s2, %s637
        %p639 = scmp.lt.s32.totalorder %s33, 2
        %s640 = scalar_select %p639, %s33, 2
        %s641 = scalar_lea.vmem %s3, %s640
        %p642 = scmp.lt.s32.totalorder %s33, 2
        %s643 = scalar_select %p642, %s33, 2
        %s644 = smul.addr %s643, 4
        %s645 = smul.addr %s644, 4
        %s646 = scalar_lea.vmem %s4, %s645
        %p647 = scmp.lt.s32.totalorder %s33, 2
        %s648 = scalar_select %p647, %s33, 2
        %s649 = scalar_lea.vmem %s5, %s648
        %p650 = scmp.lt.s32.totalorder %s33, 2
        %s651 = scalar_select %p650, %s33, 2
        %s652 = smul.addr %s651, 4
        %s653 = smul.addr %s652, 4
        %s654 = scalar_lea.vmem %s6, %s653
        %p655 = scmp.lt.s32.totalorder %s33, 2
        %s656 = scalar_select %p655, %s33, 2
        %s657 = scalar_lea.vmem %s7, %s656
        %p658 = scmp.lt.s32.totalorder %s33, 2
        %s659 = scalar_select %p658, %s33, 2
        %s660 = scalar_lea.vmem %s8, %s659
        %p661 = scmp.lt.s32.totalorder %s33, 2
        %s662 = scalar_select %p661, %s33, 2
        %s663 = scalar_lea.vmem %s9, %s662
        %p664 = scmp.lt.s32.totalorder %s33, 2
        %s665 = scalar_select %p664, %s33, 2
        %s666 = smul.addr %s665, 4
        %s667 = smul.addr %s666, 4
        %s668 = scalar_lea.vmem %s10, %s667
        %p669 = scmp.lt.s32.totalorder %s33, 2
        %s670 = scalar_select %p669, %s33, 2
        %s671 = scalar_lea.vmem %s11, %s670
        %p672 = scmp.lt.s32.totalorder %s33, 2
        %s673 = scalar_select %p672, %s33, 2
        %s674 = smul.addr %s673, 16
        %s675 = smul.addr %s674, 4
        %s676 = scalar_lea.vmem %s12, %s675
        %p677 = scmp.lt.s32.totalorder %s33, 2
        %s678 = scalar_select %p677, %s33, 2
        %s679 = scalar_lea.vmem %s13, %s678
        %p681 = scmp.eq.s32.totalorder %s33, 0
        // Predicated region
        $region77: #{tpu_custom_call.1} parent=75 // pred_check
          %p682 = pneg %p681
        $region78: #{tpu_custom_call.1} parent=75 // pred_check_branch
          %684 = sbr.rel (%p682) target = $region80
        $region79: #{tpu_custom_call.1} parent=75 // pred_region
          %v685 = vld [vmem:[%s632] sm:$0xff]
          %vm686 = vcmask 261120
          %687 = vst.msk [vmem:[#allocation2] sm:$0xff] %vm686, %v685
        $region80: #{tpu_custom_call.1} parent=75 // pred_fallthru
          _
        %v688 = vld [vmem:[#allocation2] sm:$0xff]
        %v689 = vld [vmem:[%s635] sm:$0x1]
        %v690 = vsub.f32 %v689, 1.0
        %v691 = vmul.f32 %v690, 1e+09
        %v692 = vld [vmem:[%s638] sm:$0x1]
        %v693 = vld [vmem:[%s641] sm:$0x1]
        %vm694 = vcmask 261120
        %v695 = vsel %vm694, %v688, 0.0
        %696 = vadd.xlane.f32.xlu0 %v695
        %v697 = vpop.xlane.xlu0 %696
        %v698 = vrcp.pop 32.0
        %v699 = vmul.f32 %v697, %v698
        %v700 = vsub.f32 %v688, %v699
        %v701 = vmul.f32 %v700, %v700
        %v702 = vsel %vm694, %v701, 0.0
        %703 = vadd.xlane.f32.xlu0 %v702
        %v704 = vpop.xlane.xlu0 %703
        %v705 = vmul.f32 %v704, %v698
        %v706 = vadd.f32 %v705, 1e-05
        %v707 = vrsqrt.pop %v706
        %v708 = vmul.f32 %v700, %v707
        %v710 = vlaneseq
        %v711 = vshrl.u32 %v710, 7
        %v712 = vsub.s32 0, %v711
        %v713 = vrot.slane %v692, %v712
        %v715 = vmul.f32 %v708, %v713
        %v717 = vlaneseq
        %v718 = vshrl.u32 %v717, 7
        %v719 = vsub.s32 0, %v718
        %v720 = vrot.slane %v693, %v719
        %v722 = vadd.f32 %v715, %v720
        %v723 = vpack.c.bf16 %v722, %v722
        %v724 = vld [vmem:[%s646] sm:$0xf]
        %v725 = vld [vmem:[%s646 + $0x4] sm:$0xf]
        %v726 = vld [vmem:[%s646 + $0x8] sm:$0xf]
        %v727 = vld [vmem:[%s646 + $0xc] sm:$0xf]
        %v728 = vld [vmem:[%s649] sm:$0x1]
        %v730 = vlaneseq
        %v731 = vshrl.u32 %v730, 7
        %v732 = vsub.s32 0, %v731
        %v733 = vrot.slane %v728, %v732
        %v739 = vunpack.c.l.b16 %v724
        %v740 = vunpack.c.l.b16 %v725
        %v741 = vunpack.c.l.b16 %v726
        %v742 = vunpack.c.l.b16 %v727
        %v743 = vpack.c.b16 %v740, %v739
        %v744 = vpack.c.b16 %v742, %v741
        %v748 = vsel %vm694, %v723, 0
        %750 = vmatprep.subr.bf16.mxu0 0
        %751 = vmatpush1.bf16.msra.mxu0 0
        %752 = vmatprep.subr.bf16.mxu0 0
        %753 = vmatpush1.bf16.msra.mxu0 0
        %754 = vmatprep.subr.bf16.mxu0 0
        %755 = vmatpush1.bf16.msra.mxu0 0
        %756 = vmatprep.subr.bf16.mxu0 0
        %757 = vmatpush1.bf16.msra.mxu0 0
        %758 = vmatprep.subr.bf16.mxu0 0
        %759 = vmatpush1.bf16.msra.mxu0 0
        %760 = vmatprep.subr.bf16.mxu0 0
        %761 = vmatpush1.bf16.msra.mxu0 0
        %762 = vmatprep.subr.bf16.mxu0 0
        %763 = vmatpush1.bf16.msra.mxu0 %v744
        %764 = vmatprep.subr.bf16.mxu0 0
        %765 = vmatpush1.bf16.msra.mxu0 %v743
        %766 = vmatprep.subr.bf16.mxu0 0
        %767 = vmatpush2.bf16.msra.mxu0 0
        %768 = vmatprep.subr.bf16.mxu0 0
        %769 = vmatpush2.bf16.msra.mxu0 0
        %770 = vmatprep.subr.bf16.mxu0 0
        %771 = vmatpush2.bf16.msra.mxu0 0
        %772 = vmatprep.subr.bf16.mxu0 0
        %773 = vmatpush2.bf16.msra.mxu0 0
        %774 = vmatprep.subr.bf16.mxu0 0
        %775 = vmatpush2.bf16.msra.mxu0 0
        %776 = vmatprep.subr.bf16.mxu0 0
        %777 = vmatpush2.bf16.msra.mxu0 0
        %778 = vmatprep.subr.bf16.mxu0 0
        %779 = vmatpush2.bf16.msra.mxu0 0
        %780 = vmatprep.subr.bf16.mxu0 0
        %781 = vmatpush2.bf16.msra.mxu0 0
        %782 = vmatprep.mubr.bf16.mxu0 0
        %783 = vmatmul.mubr.bf16.gmra.mxu0 %v748
        %v784 = vpop.f32.mrf.mxu0
        %v785 = vadd.f32 %v733, %v784
        %v786 = vpop.f32.mrf.mxu0
        %v787 = vpop.f32.mrf.mxu0
        %v788 = vpop.f32.mrf.mxu0
        %789 = vdwg.mxu0
        %791 = vrot.lane.b32.xlu0 %v785, 120
        %v792 = vpop.permute.xlu0 %791
        %794 = vrot.lane.b32.xlu0 %v785, 112
        %v795 = vpop.permute.xlu0 %794
        %797 = vrot.lane.b32.xlu0 %v785, 104
        %v798 = vpop.permute.xlu0 %797
        %v800 = vpack.c.bf16 %v785, %v785
        %v801 = vpack.c.bf16 %v792, %v792
        %v802 = vpack.c.bf16 %v795, %v795
        %v803 = vpack.c.bf16 %v798, %v798
        %v805 = vlaneseq
        %v806 = vshrl.u32 %v805, 7
        %v807 = vsub.s32 0, %v806
        %v808 = vrot.slane %v691, %v807
        %811 = vrot.lane.b32.xlu0 %v800, 96
        %v812 = vpop.permute.xlu0 %811
        %vm813 = vcmask 64512
        %v815 = vsel %vm813, %v800, 0
        %v818 = vsel %vm813, %v812, 0
        %820 = vmatprep.subr.bf16.mxu0 0
        %821 = vmatpush1.bf16.xpose.msra.mxu0 0
        %822 = vmatprep.subr.bf16.mxu0 0
        %823 = vmatpush1.bf16.xpose.msra.mxu0 0
        %824 = vmatprep.subr.bf16.mxu0 0
        %825 = vmatpush1.bf16.xpose.msra.mxu0 0
        %826 = vmatprep.subr.bf16.mxu0 0
        %827 = vmatpush1.bf16.xpose.msra.mxu0 0
        %828 = vmatprep.subr.bf16.mxu0 0
        %829 = vmatpush1.bf16.xpose.msra.mxu0 0
        %830 = vmatprep.subr.bf16.mxu0 0
        %831 = vmatpush1.bf16.xpose.msra.mxu0 0
        %832 = vmatprep.subr.bf16.mxu0 0
        %833 = vmatpush1.bf16.xpose.msra.mxu0 0
        %834 = vmatprep.subr.bf16.mxu0 0
        %835 = vmatpush1.bf16.xpose.msra.mxu0 %v818
        %836 = vmatprep.subr.bf16.mxu0 0
        %837 = vmatpush2.bf16.xpose.msra.mxu0 0
        %838 = vmatprep.subr.bf16.mxu0 0
        %839 = vmatpush2.bf16.xpose.msra.mxu0 0
        %840 = vmatprep.subr.bf16.mxu0 0
        %841 = vmatpush2.bf16.xpose.msra.mxu0 0
        %842 = vmatprep.subr.bf16.mxu0 0
        %843 = vmatpush2.bf16.xpose.msra.mxu0 0
        %844 = vmatprep.subr.bf16.mxu0 0
        %845 = vmatpush2.bf16.xpose.msra.mxu0 0
        %846 = vmatprep.subr.bf16.mxu0 0
        %847 = vmatpush2.bf16.xpose.msra.mxu0 0
        %848 = vmatprep.subr.bf16.mxu0 0
        %849 = vmatpush2.bf16.xpose.msra.mxu0 0
        %850 = vmatprep.subr.bf16.mxu0 0
        %851 = vmatpush2.bf16.xpose.msra.mxu0 0
        %852 = vmatprep.mubr.bf16.mxu0 0
        %853 = vmatmul.mubr.bf16.gmra.mxu0 %v815
        %v854 = vpop.f32.mrf.mxu0
        %v855 = vadd.f32 %v808, %v854
        %v856 = vpop.f32.mrf.mxu0
        %v857 = vpop.f32.mrf.mxu0
        %v858 = vpop.f32.mrf.mxu0
        %859 = vdwg.mxu0
        %861 = vrot.lane.b32.xlu0 %v801, 96
        %v862 = vpop.permute.xlu0 %861
        %v864 = vsel %vm813, %v801, 0
        %v867 = vsel %vm813, %v862, 0
        %869 = vmatprep.subr.bf16.mxu0 0
        %870 = vmatpush1.bf16.xpose.msra.mxu0 0
        %871 = vmatprep.subr.bf16.mxu0 0
        %872 = vmatpush1.bf16.xpose.msra.mxu0 0
        %873 = vmatprep.subr.bf16.mxu0 0
        %874 = vmatpush1.bf16.xpose.msra.mxu0 0
        %875 = vmatprep.subr.bf16.mxu0 0
        %876 = vmatpush1.bf16.xpose.msra.mxu0 0
        %877 = vmatprep.subr.bf16.mxu0 0
        %878 = vmatpush1.bf16.xpose.msra.mxu0 0
        %879 = vmatprep.subr.bf16.mxu0 0
        %880 = vmatpush1.bf16.xpose.msra.mxu0 0
        %881 = vmatprep.subr.bf16.mxu0 0
        %882 = vmatpush1.bf16.xpose.msra.mxu0 0
        %883 = vmatprep.subr.bf16.mxu0 0
        %884 = vmatpush1.bf16.xpose.msra.mxu0 %v867
        %885 = vmatprep.subr.bf16.mxu0 0
        %886 = vmatpush2.bf16.xpose.msra.mxu0 0
        %887 = vmatprep.subr.bf16.mxu0 0
        %888 = vmatpush2.bf16.xpose.msra.mxu0 0
        %889 = vmatprep.subr.bf16.mxu0 0
        %890 = vmatpush2.bf16.xpose.msra.mxu0 0
        %891 = vmatprep.subr.bf16.mxu0 0
        %892 = vmatpush2.bf16.xpose.msra.mxu0 0
        %893 = vmatprep.subr.bf16.mxu0 0
        %894 = vmatpush2.bf16.xpose.msra.mxu0 0
        %895 = vmatprep.subr.bf16.mxu0 0
        %896 = vmatpush2.bf16.xpose.msra.mxu0 0
        %897 = vmatprep.subr.bf16.mxu0 0
        %898 = vmatpush2.bf16.xpose.msra.mxu0 0
        %899 = vmatprep.subr.bf16.mxu0 0
        %900 = vmatpush2.bf16.xpose.msra.mxu0 0
        %901 = vmatprep.mubr.bf16.mxu0 0
        %902 = vmatmul.mubr.bf16.gmra.mxu0 %v864
        %v903 = vpop.f32.mrf.mxu0
        %v904 = vadd.f32 %v808, %v903
        %v905 = vpop.f32.mrf.mxu0
        %v906 = vpop.f32.mrf.mxu0
        %v907 = vpop.f32.mrf.mxu0
        %908 = vdwg.mxu0
        %910 = vrot.lane.b32.xlu0 %v802, 96
        %v911 = vpop.permute.xlu0 %910
        %v913 = vsel %vm813, %v802, 0
        %v916 = vsel %vm813, %v911, 0
        %918 = vmatprep.subr.bf16.mxu0 0
        %919 = vmatpush1.bf16.xpose.msra.mxu0 0
        %920 = vmatprep.subr.bf16.mxu0 0
        %921 = vmatpush1.bf16.xpose.msra.mxu0 0
        %922 = vmatprep.subr.bf16.mxu0 0
        %923 = vmatpush1.bf16.xpose.msra.mxu0 0
        %924 = vmatprep.subr.bf16.mxu0 0
        %925 = vmatpush1.bf16.xpose.msra.mxu0 0
        %926 = vmatprep.subr.bf16.mxu0 0
        %927 = vmatpush1.bf16.xpose.msra.mxu0 0
        %928 = vmatprep.subr.bf16.mxu0 0
        %929 = vmatpush1.bf16.xpose.msra.mxu0 0
        %930 = vmatprep.subr.bf16.mxu0 0
        %931 = vmatpush1.bf16.xpose.msra.mxu0 0
        %932 = vmatprep.subr.bf16.mxu0 0
        %933 = vmatpush1.bf16.xpose.msra.mxu0 %v916
        %934 = vmatprep.subr.bf16.mxu0 0
        %935 = vmatpush2.bf16.xpose.msra.mxu0 0
        %936 = vmatprep.subr.bf16.mxu0 0
        %937 = vmatpush2.bf16.xpose.msra.mxu0 0
        %938 = vmatprep.subr.bf16.mxu0 0
        %939 = vmatpush2.bf16.xpose.msra.mxu0 0
        %940 = vmatprep.subr.bf16.mxu0 0
        %941 = vmatpush2.bf16.xpose.msra.mxu0 0
        %942 = vmatprep.subr.bf16.mxu0 0
        %943 = vmatpush2.bf16.xpose.msra.mxu0 0
        %944 = vmatprep.subr.bf16.mxu0 0
        %945 = vmatpush2.bf16.xpose.msra.mxu0 0
        %946 = vmatprep.subr.bf16.mxu0 0
        %947 = vmatpush2.bf16.xpose.msra.mxu0 0
        %948 = vmatprep.subr.bf16.mxu0 0
        %949 = vmatpush2.bf16.xpose.msra.mxu0 0
        %950 = vmatprep.mubr.bf16.mxu0 0
        %951 = vmatmul.mubr.bf16.gmra.mxu0 %v913
        %v952 = vpop.f32.mrf.mxu0
        %v953 = vadd.f32 %v808, %v952
        %v954 = vpop.f32.mrf.mxu0
        %v955 = vpop.f32.mrf.mxu0
        %v956 = vpop.f32.mrf.mxu0
        %957 = vdwg.mxu0
        %959 = vrot.lane.b32.xlu0 %v803, 96
        %v960 = vpop.permute.xlu0 %959
        %v962 = vsel %vm813, %v803, 0
        %v965 = vsel %vm813, %v960, 0
        %967 = vmatprep.subr.bf16.mxu0 0
        %968 = vmatpush1.bf16.xpose.msra.mxu0 0
        %969 = vmatprep.subr.bf16.mxu0 0
        %970 = vmatpush1.bf16.xpose.msra.mxu0 0
        %971 = vmatprep.subr.bf16.mxu0 0
        %972 = vmatpush1.bf16.xpose.msra.mxu0 0
        %973 = vmatprep.subr.bf16.mxu0 0
        %974 = vmatpush1.bf16.xpose.msra.mxu0 0
        %975 = vmatprep.subr.bf16.mxu0 0
        %976 = vmatpush1.bf16.xpose.msra.mxu0 0
        %977 = vmatprep.subr.bf16.mxu0 0
        %978 = vmatpush1.bf16.xpose.msra.mxu0 0
        %979 = vmatprep.subr.bf16.mxu0 0
        %980 = vmatpush1.bf16.xpose.msra.mxu0 0
        %981 = vmatprep.subr.bf16.mxu0 0
        %982 = vmatpush1.bf16.xpose.msra.mxu0 %v965
        %983 = vmatprep.subr.bf16.mxu0 0
        %984 = vmatpush2.bf16.xpose.msra.mxu0 0
        %985 = vmatprep.subr.bf16.mxu0 0
        %986 = vmatpush2.bf16.xpose.msra.mxu0 0
        %987 = vmatprep.subr.bf16.mxu0 0
        %988 = vmatpush2.bf16.xpose.msra.mxu0 0
        %989 = vmatprep.subr.bf16.mxu0 0
        %990 = vmatpush2.bf16.xpose.msra.mxu0 0
        %991 = vmatprep.subr.bf16.mxu0 0
        %992 = vmatpush2.bf16.xpose.msra.mxu0 0
        %993 = vmatprep.subr.bf16.mxu0 0
        %994 = vmatpush2.bf16.xpose.msra.mxu0 0
        %995 = vmatprep.subr.bf16.mxu0 0
        %996 = vmatpush2.bf16.xpose.msra.mxu0 0
        %997 = vmatprep.subr.bf16.mxu0 0
        %998 = vmatpush2.bf16.xpose.msra.mxu0 0
        %999 = vmatprep.mubr.bf16.mxu0 0
        %1000 = vmatmul.mubr.bf16.gmra.mxu0 %v962
        %v1001 = vpop.f32.mrf.mxu0
        %v1002 = vadd.f32 %v808, %v1001
        %v1003 = vpop.f32.mrf.mxu0
        %v1004 = vpop.f32.mrf.mxu0
        %v1005 = vpop.f32.mrf.mxu0
        %1006 = vdwg.mxu0
        %v1007 = vsel %vm813, %v855, -inf
        %1008 = vmax.xlane.f32.xlu0 %v1007
        %v1009 = vpop.xlane.xlu0 %1008
        %v1010 = vsel %vm813, %v904, -inf
        %1011 = vmax.xlane.f32.xlu0 %v1010
        %v1012 = vpop.xlane.xlu0 %1011
        %v1013 = vsel %vm813, %v953, -inf
        %1014 = vmax.xlane.f32.xlu0 %v1013
        %v1015 = vpop.xlane.xlu0 %1014
        %v1016 = vsel %vm813, %v1002, -inf
        %1017 = vmax.xlane.f32.xlu0 %v1016
        %v1018 = vpop.xlane.xlu0 %1017
        %v1019 = vsub.f32 %v855, %v1009
        %v1020 = vsub.f32 %v904, %v1012
        %v1021 = vsub.f32 %v953, %v1015
        %v1022 = vsub.f32 %v1002, %v1018
        %v1023 = vmul.f32 %v1019, 1.442695
        %v1024 = vpow.pop %v1023
        %v1025 = vmul.f32 %v1020, 1.442695
        %v1026 = vpow.pop %v1025
        %v1027 = vmul.f32 %v1021, 1.442695
        %v1028 = vpow.pop %v1027
        %v1029 = vmul.f32 %v1022, 1.442695
        %v1030 = vpow.pop %v1029
        %v1031 = vsel %vm813, %v1024, 0.0
        %1032 = vadd.xlane.f32.xlu0 %v1031
        %v1033 = vpop.xlane.xlu0 %1032
        %v1034 = vsel %vm813, %v1026, 0.0
        %1035 = vadd.xlane.f32.xlu0 %v1034
        %v1036 = vpop.xlane.xlu0 %1035
        %v1037 = vsel %vm813, %v1028, 0.0
        %1038 = vadd.xlane.f32.xlu0 %v1037
        %v1039 = vpop.xlane.xlu0 %1038
        %v1040 = vsel %vm813, %v1030, 0.0
        %1041 = vadd.xlane.f32.xlu0 %v1040
        %v1042 = vpop.xlane.xlu0 %1041
        %v1043 = vpack.c.bf16 %v1024, %v1024
        %v1044 = vpack.c.bf16 %v1026, %v1026
        %v1045 = vpack.c.bf16 %v1028, %v1028
        %v1046 = vpack.c.bf16 %v1030, %v1030
        %1047 = vrot.lane.b32.xlu0 %v800, 64
        %v1048 = vpop.permute.xlu0 %1047
        %v1050 = vsel %vm813, %v1043, 0
        %vm1052 = vcmask 1043456
        %v1054 = vsel %vm1052, %v1048, 0
        %1056 = vmatprep.subr.bf16.mxu0 0
        %1057 = vmatpush1.bf16.msra.mxu0 0
        %1058 = vmatprep.subr.bf16.mxu0 0
        %1059 = vmatpush1.bf16.msra.mxu0 0
        %1060 = vmatprep.subr.bf16.mxu0 0
        %1061 = vmatpush1.bf16.msra.mxu0 0
        %1062 = vmatprep.subr.bf16.mxu0 0
        %1063 = vmatpush1.bf16.msra.mxu0 0
        %1064 = vmatprep.subr.bf16.mxu0 0
        %1065 = vmatpush1.bf16.msra.mxu0 0
        %1066 = vmatprep.subr.bf16.mxu0 0
        %1067 = vmatpush1.bf16.msra.mxu0 0
        %1068 = vmatprep.subr.bf16.mxu0 0
        %1069 = vmatpush1.bf16.msra.mxu0 0
        %1070 = vmatprep.subr.bf16.mxu0 0
        %1071 = vmatpush1.bf16.msra.mxu0 %v1054
        %1072 = vmatprep.subr.bf16.mxu0 0
        %1073 = vmatpush2.bf16.msra.mxu0 0
        %1074 = vmatprep.subr.bf16.mxu0 0
        %1075 = vmatpush2.bf16.msra.mxu0 0
        %1076 = vmatprep.subr.bf16.mxu0 0
        %1077 = vmatpush2.bf16.msra.mxu0 0
        %1078 = vmatprep.subr.bf16.mxu0 0
        %1079 = vmatpush2.bf16.msra.mxu0 0
        %1080 = vmatprep.subr.bf16.mxu0 0
        %1081 = vmatpush2.bf16.msra.mxu0 0
        %1082 = vmatprep.subr.bf16.mxu0 0
        %1083 = vmatpush2.bf16.msra.mxu0 0
        %1084 = vmatprep.subr.bf16.mxu0 0
        %1085 = vmatpush2.bf16.msra.mxu0 0
        %1086 = vmatprep.subr.bf16.mxu0 0
        %1087 = vmatpush2.bf16.msra.mxu0 0
        %1088 = vmatprep.mubr.bf16.mxu0 0
        %1089 = vmatmul.mubr.bf16.gmra.mxu0 %v1050
        %v1090 = vpop.f32.mrf.mxu0
        %v1091 = vadd.f32 0.0, %v1090
        %v1092 = vpop.f32.mrf.mxu0
        %v1093 = vpop.f32.mrf.mxu0
        %v1094 = vpop.f32.mrf.mxu0
        %1095 = vdwg.mxu0
        %1096 = vrot.lane.b32.xlu0 %v801, 64
        %v1097 = vpop.permute.xlu0 %1096
        %v1099 = vsel %vm813, %v1044, 0
        %v1102 = vsel %vm1052, %v1097, 0
        %1104 = vmatprep.subr.bf16.mxu0 0
        %1105 = vmatpush1.bf16.msra.mxu0 0
        %1106 = vmatprep.subr.bf16.mxu0 0
        %1107 = vmatpush1.bf16.msra.mxu0 0
        %1108 = vmatprep.subr.bf16.mxu0 0
        %1109 = vmatpush1.bf16.msra.mxu0 0
        %1110 = vmatprep.subr.bf16.mxu0 0
        %1111 = vmatpush1.bf16.msra.mxu0 0
        %1112 = vmatprep.subr.bf16.mxu0 0
        %1113 = vmatpush1.bf16.msra.mxu0 0
        %1114 = vmatprep.subr.bf16.mxu0 0
        %1115 = vmatpush1.bf16.msra.mxu0 0
        %1116 = vmatprep.subr.bf16.mxu0 0
        %1117 = vmatpush1.bf16.msra.mxu0 0
        %1118 = vmatprep.subr.bf16.mxu0 0
        %1119 = vmatpush1.bf16.msra.mxu0 %v1102
        %1120 = vmatprep.subr.bf16.mxu0 0
        %1121 = vmatpush2.bf16.msra.mxu0 0
        %1122 = vmatprep.subr.bf16.mxu0 0
        %1123 = vmatpush2.bf16.msra.mxu0 0
        %1124 = vmatprep.subr.bf16.mxu0 0
        %1125 = vmatpush2.bf16.msra.mxu0 0
        %1126 = vmatprep.subr.bf16.mxu0 0
        %1127 = vmatpush2.bf16.msra.mxu0 0
        %1128 = vmatprep.subr.bf16.mxu0 0
        %1129 = vmatpush2.bf16.msra.mxu0 0
        %1130 = vmatprep.subr.bf16.mxu0 0
        %1131 = vmatpush2.bf16.msra.mxu0 0
        %1132 = vmatprep.subr.bf16.mxu0 0
        %1133 = vmatpush2.bf16.msra.mxu0 0
        %1134 = vmatprep.subr.bf16.mxu0 0
        %1135 = vmatpush2.bf16.msra.mxu0 0
        %1136 = vmatprep.mubr.bf16.mxu0 0
        %1137 = vmatmul.mubr.bf16.gmra.mxu0 %v1099
        %v1138 = vpop.f32.mrf.mxu0
        %v1139 = vadd.f32 0.0, %v1138
        %v1140 = vpop.f32.mrf.mxu0
        %v1141 = vpop.f32.mrf.mxu0
        %v1142 = vpop.f32.mrf.mxu0
        %1143 = vdwg.mxu0
        %1144 = vrot.lane.b32.xlu0 %v802, 64
        %v1145 = vpop.permute.xlu0 %1144
        %v1147 = vsel %vm813, %v1045, 0
        %v1150 = vsel %vm1052, %v1145, 0
        %1152 = vmatprep.subr.bf16.mxu0 0
        %1153 = vmatpush1.bf16.msra.mxu0 0
        %1154 = vmatprep.subr.bf16.mxu0 0
        %1155 = vmatpush1.bf16.msra.mxu0 0
        %1156 = vmatprep.subr.bf16.mxu0 0
        %1157 = vmatpush1.bf16.msra.mxu0 0
        %1158 = vmatprep.subr.bf16.mxu0 0
        %1159 = vmatpush1.bf16.msra.mxu0 0
        %1160 = vmatprep.subr.bf16.mxu0 0
        %1161 = vmatpush1.bf16.msra.mxu0 0
        %1162 = vmatprep.subr.bf16.mxu0 0
        %1163 = vmatpush1.bf16.msra.mxu0 0
        %1164 = vmatprep.subr.bf16.mxu0 0
        %1165 = vmatpush1.bf16.msra.mxu0 0
        %1166 = vmatprep.subr.bf16.mxu0 0
        %1167 = vmatpush1.bf16.msra.mxu0 %v1150
        %1168 = vmatprep.subr.bf16.mxu0 0
        %1169 = vmatpush2.bf16.msra.mxu0 0
        %1170 = vmatprep.subr.bf16.mxu0 0
        %1171 = vmatpush2.bf16.msra.mxu0 0
        %1172 = vmatprep.subr.bf16.mxu0 0
        %1173 = vmatpush2.bf16.msra.mxu0 0
        %1174 = vmatprep.subr.bf16.mxu0 0
        %1175 = vmatpush2.bf16.msra.mxu0 0
        %1176 = vmatprep.subr.bf16.mxu0 0
        %1177 = vmatpush2.bf16.msra.mxu0 0
        %1178 = vmatprep.subr.bf16.mxu0 0
        %1179 = vmatpush2.bf16.msra.mxu0 0
        %1180 = vmatprep.subr.bf16.mxu0 0
        %1181 = vmatpush2.bf16.msra.mxu0 0
        %1182 = vmatprep.subr.bf16.mxu0 0
        %1183 = vmatpush2.bf16.msra.mxu0 0
        %1184 = vmatprep.mubr.bf16.mxu0 0
        %1185 = vmatmul.mubr.bf16.gmra.mxu0 %v1147
        %v1186 = vpop.f32.mrf.mxu0
        %v1187 = vadd.f32 0.0, %v1186
        %v1188 = vpop.f32.mrf.mxu0
        %v1189 = vpop.f32.mrf.mxu0
        %v1190 = vpop.f32.mrf.mxu0
        %1191 = vdwg.mxu0
        %1192 = vrot.lane.b32.xlu0 %v803, 64
        %v1193 = vpop.permute.xlu0 %1192
        %v1195 = vsel %vm813, %v1046, 0
        %v1198 = vsel %vm1052, %v1193, 0
        %1200 = vmatprep.subr.bf16.mxu0 0
        %1201 = vmatpush1.bf16.msra.mxu0 0
        %1202 = vmatprep.subr.bf16.mxu0 0
        %1203 = vmatpush1.bf16.msra.mxu0 0
        %1204 = vmatprep.subr.bf16.mxu0 0
        %1205 = vmatpush1.bf16.msra.mxu0 0
        %1206 = vmatprep.subr.bf16.mxu0 0
        %1207 = vmatpush1.bf16.msra.mxu0 0
        %1208 = vmatprep.subr.bf16.mxu0 0
        %1209 = vmatpush1.bf16.msra.mxu0 0
        %1210 = vmatprep.subr.bf16.mxu0 0
        %1211 = vmatpush1.bf16.msra.mxu0 0
        %1212 = vmatprep.subr.bf16.mxu0 0
        %1213 = vmatpush1.bf16.msra.mxu0 0
        %1214 = vmatprep.subr.bf16.mxu0 0
        %1215 = vmatpush1.bf16.msra.mxu0 %v1198
        %1216 = vmatprep.subr.bf16.mxu0 0
        %1217 = vmatpush2.bf16.msra.mxu0 0
        %1218 = vmatprep.subr.bf16.mxu0 0
        %1219 = vmatpush2.bf16.msra.mxu0 0
        %1220 = vmatprep.subr.bf16.mxu0 0
        %1221 = vmatpush2.bf16.msra.mxu0 0
        %1222 = vmatprep.subr.bf16.mxu0 0
        %1223 = vmatpush2.bf16.msra.mxu0 0
        %1224 = vmatprep.subr.bf16.mxu0 0
        %1225 = vmatpush2.bf16.msra.mxu0 0
        %1226 = vmatprep.subr.bf16.mxu0 0
        %1227 = vmatpush2.bf16.msra.mxu0 0
        %1228 = vmatprep.subr.bf16.mxu0 0
        %1229 = vmatpush2.bf16.msra.mxu0 0
        %1230 = vmatprep.subr.bf16.mxu0 0
        %1231 = vmatpush2.bf16.msra.mxu0 0
        %1232 = vmatprep.mubr.bf16.mxu0 0
        %1233 = vmatmul.mubr.bf16.gmra.mxu0 %v1195
        %v1234 = vpop.f32.mrf.mxu0
        %v1235 = vadd.f32 0.0, %v1234
        %v1236 = vpop.f32.mrf.mxu0
        %v1237 = vpop.f32.mrf.mxu0
        %v1238 = vpop.f32.mrf.mxu0
        %1239 = vdwg.mxu0
        %v1240 = vrcp.pop %v1033
        %v1241 = vrcp.pop %v1036
        %v1242 = vrcp.pop %v1039
        %v1243 = vrcp.pop %v1042
        %v1244 = vmul.f32 %v1091, %v1240
        %v1245 = vmul.f32 %v1139, %v1241
        %v1246 = vmul.f32 %v1187, %v1242
        %v1247 = vmul.f32 %v1235, %v1243
        %1249 = vrot.lane.b32.xlu0 %v1245, 8
        %v1250 = vpop.permute.xlu0 %1249
        %1253 = vrot.lane.b32.xlu0 %v1246, 16
        %v1254 = vpop.permute.xlu0 %1253
        %1257 = vrot.lane.b32.xlu0 %v1247, 24
        %v1258 = vpop.permute.xlu0 %1257
        %v1260 = vsel %vm813, %v1244, %v1250
        %vm1261 = vcmask 130048
        %v1262 = vsel %vm1261, %v1260, %v1254
        %vm1263 = vcmask 195584
        %v1264 = vsel %vm1263, %v1262, %v1258
        %v1265 = vpack.c.bf16 %v1264, %v1264
        %v1266 = vld [vmem:[%s654] sm:$0xf]
        %v1267 = vld [vmem:[%s654 + $0x4] sm:$0xf]
        %v1268 = vld [vmem:[%s654 + $0x8] sm:$0xf]
        %v1269 = vld [vmem:[%s654 + $0xc] sm:$0xf]
        %v1270 = vld [vmem:[%s657] sm:$0x1]
        %v1272 = vlaneseq
        %v1273 = vshrl.u32 %v1272, 7
        %v1274 = vsub.s32 0, %v1273
        %v1275 = vrot.slane %v1270, %v1274
        %v1281 = vunpack.c.l.b16 %v1266
        %v1282 = vunpack.c.l.b16 %v1267
        %v1283 = vunpack.c.l.b16 %v1268
        %v1284 = vunpack.c.l.b16 %v1269
        %v1285 = vpack.c.b16 %v1282, %v1281
        %v1286 = vpack.c.b16 %v1284, %v1283
        %v1290 = vsel %vm694, %v1265, 0
        %1292 = vmatprep.subr.bf16.mxu0 0
        %1293 = vmatpush1.bf16.msra.mxu0 0
        %1294 = vmatprep.subr.bf16.mxu0 0
        %1295 = vmatpush1.bf16.msra.mxu0 0
        %1296 = vmatprep.subr.bf16.mxu0 0
        %1297 = vmatpush1.bf16.msra.mxu0 0
        %1298 = vmatprep.subr.bf16.mxu0 0
        %1299 = vmatpush1.bf16.msra.mxu0 0
        %1300 = vmatprep.subr.bf16.mxu0 0
        %1301 = vmatpush1.bf16.msra.mxu0 0
        %1302 = vmatprep.subr.bf16.mxu0 0
        %1303 = vmatpush1.bf16.msra.mxu0 0
        %1304 = vmatprep.subr.bf16.mxu0 0
        %1305 = vmatpush1.bf16.msra.mxu0 %v1286
        %1306 = vmatprep.subr.bf16.mxu0 0
        %1307 = vmatpush1.bf16.msra.mxu0 %v1285
        %1308 = vmatprep.subr.bf16.mxu0 0
        %1309 = vmatpush2.bf16.msra.mxu0 0
        %1310 = vmatprep.subr.bf16.mxu0 0
        %1311 = vmatpush2.bf16.msra.mxu0 0
        %1312 = vmatprep.subr.bf16.mxu0 0
        %1313 = vmatpush2.bf16.msra.mxu0 0
        %1314 = vmatprep.subr.bf16.mxu0 0
        %1315 = vmatpush2.bf16.msra.mxu0 0
        %1316 = vmatprep.subr.bf16.mxu0 0
        %1317 = vmatpush2.bf16.msra.mxu0 0
        %1318 = vmatprep.subr.bf16.mxu0 0
        %1319 = vmatpush2.bf16.msra.mxu0 0
        %1320 = vmatprep.subr.bf16.mxu0 0
        %1321 = vmatpush2.bf16.msra.mxu0 0
        %1322 = vmatprep.subr.bf16.mxu0 0
        %1323 = vmatpush2.bf16.msra.mxu0 0
        %1324 = vmatprep.mubr.bf16.mxu0 0
        %1325 = vmatmul.mubr.bf16.gmra.mxu0 %v1290
        %v1326 = vpop.f32.mrf.mxu0
        %v1327 = vadd.f32 %v1275, %v1326
        %v1328 = vpop.f32.mrf.mxu0
        %v1329 = vpop.f32.mrf.mxu0
        %v1330 = vpop.f32.mrf.mxu0
        %1331 = vdwg.mxu0
        %v1332 = vadd.f32 %v688, %v1327
        %v1333 = vld [vmem:[%s660] sm:$0x1]
        %v1334 = vld [vmem:[%s663] sm:$0x1]
        %v1335 = vsel %vm694, %v1332, 0.0
        %1336 = vadd.xlane.f32.xlu0 %v1335
        %v1337 = vpop.xlane.xlu0 %1336
        %v1338 = vmul.f32 %v1337, %v698
        %v1339 = vsub.f32 %v1332, %v1338
        %v1340 = vmul.f32 %v1339, %v1339
        %v1341 = vsel %vm694, %v1340, 0.0
        %1342 = vadd.xlane.f32.xlu0 %v1341
        %v1343 = vpop.xlane.xlu0 %1342
        %v1344 = vmul.f32 %v1343, %v698
        %v1345 = vadd.f32 %v1344, 1e-05
        %v1346 = vrsqrt.pop %v1345
        %v1347 = vmul.f32 %v1339, %v1346
        %v1349 = vlaneseq
        %v1350 = vshrl.u32 %v1349, 7
        %v1351 = vsub.s32 0, %v1350
        %v1352 = vrot.slane %v1333, %v1351
        %v1354 = vmul.f32 %v1347, %v1352
        %v1356 = vlaneseq
        %v1357 = vshrl.u32 %v1356, 7
        %v1358 = vsub.s32 0, %v1357
        %v1359 = vrot.slane %v1334, %v1358
        %v1361 = vadd.f32 %v1354, %v1359
        %v1362 = vpack.c.bf16 %v1361, %v1361
        %v1363 = vld [vmem:[%s668] sm:$0xf]
        %v1364 = vld [vmem:[%s668 + $0x4] sm:$0xf]
        %v1365 = vld [vmem:[%s668 + $0x8] sm:$0xf]
        %v1366 = vld [vmem:[%s668 + $0xc] sm:$0xf]
        %v1367 = vld [vmem:[%s671] sm:$0x1]
        %v1369 = vlaneseq
        %v1370 = vshrl.u32 %v1369, 7
        %v1371 = vsub.s32 0, %v1370
        %v1372 = vrot.slane %v1367, %v1371
        %v1378 = vunpack.c.l.b16 %v1363
        %v1379 = vunpack.c.l.b16 %v1364
        %v1380 = vunpack.c.l.b16 %v1365
        %v1381 = vunpack.c.l.b16 %v1366
        %v1382 = vpack.c.b16 %v1379, %v1378
        %v1383 = vpack.c.b16 %v1381, %v1380
        %v1387 = vsel %vm694, %v1362, 0
        %1389 = vmatprep.subr.bf16.mxu0 0
        %1390 = vmatpush1.bf16.msra.mxu0 0
        %1391 = vmatprep.subr.bf16.mxu0 0
        %1392 = vmatpush1.bf16.msra.mxu0 0
        %1393 = vmatprep.subr.bf16.mxu0 0
        %1394 = vmatpush1.bf16.msra.mxu0 0
        %1395 = vmatprep.subr.bf16.mxu0 0
        %1396 = vmatpush1.bf16.msra.mxu0 0
        %1397 = vmatprep.subr.bf16.mxu0 0
        %1398 = vmatpush1.bf16.msra.mxu0 0
        %1399 = vmatprep.subr.bf16.mxu0 0
        %1400 = vmatpush1.bf16.msra.mxu0 0
        %1401 = vmatprep.subr.bf16.mxu0 0
        %1402 = vmatpush1.bf16.msra.mxu0 %v1383
        %1403 = vmatprep.subr.bf16.mxu0 0
        %1404 = vmatpush1.bf16.msra.mxu0 %v1382
        %1405 = vmatprep.subr.bf16.mxu0 0
        %1406 = vmatpush2.bf16.msra.mxu0 0
        %1407 = vmatprep.subr.bf16.mxu0 0
        %1408 = vmatpush2.bf16.msra.mxu0 0
        %1409 = vmatprep.subr.bf16.mxu0 0
        %1410 = vmatpush2.bf16.msra.mxu0 0
        %1411 = vmatprep.subr.bf16.mxu0 0
        %1412 = vmatpush2.bf16.msra.mxu0 0
        %1413 = vmatprep.subr.bf16.mxu0 0
        %1414 = vmatpush2.bf16.msra.mxu0 0
        %1415 = vmatprep.subr.bf16.mxu0 0
        %1416 = vmatpush2.bf16.msra.mxu0 0
        %1417 = vmatprep.subr.bf16.mxu0 0
        %1418 = vmatpush2.bf16.msra.mxu0 0
        %1419 = vmatprep.subr.bf16.mxu0 0
        %1420 = vmatpush2.bf16.msra.mxu0 0
        %1421 = vmatprep.mubr.bf16.mxu0 0
        %1422 = vmatmul.mubr.bf16.gmra.mxu0 %v1387
        %v1423 = vpop.f32.mrf.mxu0
        %v1424 = vadd.f32 %v1372, %v1423
        %v1425 = vpop.f32.mrf.mxu0
        %v1426 = vpop.f32.mrf.mxu0
        %v1427 = vpop.f32.mrf.mxu0
        %1428 = vdwg.mxu0
        %v1429 = vmul.f32 %v1424, %v1424
        %v1430 = vmul.f32 %v1424, %v1429
        %v1431 = vmul.f32 %v1430, 0.044715
        %v1432 = vadd.f32 %v1424, %v1431
        %v1433 = vmul.f32 %v1432, 0.7978846
        %v1434 = vtanh.pop %v1433
        %v1435 = vadd.f32 %v1434, 1.0
        %v1436 = vmul.f32 %v1435, 0.5
        %v1437 = vmul.f32 %v1424, %v1436
        %v1438 = vpack.c.bf16 %v1437, %v1437
        %v1439 = vld [vmem:[%s676] sm:$0xf]
        %v1440 = vld [vmem:[%s676 + $0x4] sm:$0xf]
        %v1441 = vld [vmem:[%s676 + $0x8] sm:$0xf]
        %v1442 = vld [vmem:[%s676 + $0xc] sm:$0xf]
        %v1443 = vld [vmem:[%s676 + $0x10] sm:$0xf]
        %v1444 = vld [vmem:[%s676 + $0x14] sm:$0xf]
        %v1445 = vld [vmem:[%s676 + $0x18] sm:$0xf]
        %v1446 = vld [vmem:[%s676 + $0x1c] sm:$0xf]
        %v1447 = vld [vmem:[%s676 + $0x20] sm:$0xf]
        %v1448 = vld [vmem:[%s676 + $0x24] sm:$0xf]
        %v1449 = vld [vmem:[%s676 + $0x28] sm:$0xf]
        %v1450 = vld [vmem:[%s676 + $0x2c] sm:$0xf]
        %v1451 = vld [vmem:[%s676 + $0x30] sm:$0xf]
        %v1452 = vld [vmem:[%s676 + $0x34] sm:$0xf]
        %v1453 = vld [vmem:[%s676 + $0x38] sm:$0xf]
        %v1454 = vld [vmem:[%s676 + $0x3c] sm:$0xf]
        %v1455 = vld [vmem:[%s679] sm:$0x1]
        %v1457 = vlaneseq
        %v1458 = vshrl.u32 %v1457, 7
        %v1459 = vsub.s32 0, %v1458
        %v1460 = vrot.slane %v1455, %v1459
        %v1478 = vunpack.c.l.b16 %v1439
        %v1479 = vunpack.c.l.b16 %v1440
        %v1480 = vunpack.c.l.b16 %v1441
        %v1481 = vunpack.c.l.b16 %v1442
        %v1482 = vunpack.c.l.b16 %v1443
        %v1483 = vunpack.c.l.b16 %v1444
        %v1484 = vunpack.c.l.b16 %v1445
        %v1485 = vunpack.c.l.b16 %v1446
        %v1486 = vunpack.c.l.b16 %v1447
        %v1487 = vunpack.c.l.b16 %v1448
        %v1488 = vunpack.c.l.b16 %v1449
        %v1489 = vunpack.c.l.b16 %v1450
        %v1490 = vunpack.c.l.b16 %v1451
        %v1491 = vunpack.c.l.b16 %v1452
        %v1492 = vunpack.c.l.b16 %v1453
        %v1493 = vunpack.c.l.b16 %v1454
        %v1494 = vpack.c.b16 %v1479, %v1478
        %v1495 = vpack.c.b16 %v1481, %v1480
        %v1496 = vpack.c.b16 %v1483, %v1482
        %v1497 = vpack.c.b16 %v1485, %v1484
        %v1498 = vpack.c.b16 %v1487, %v1486
        %v1499 = vpack.c.b16 %v1489, %v1488
        %v1500 = vpack.c.b16 %v1491, %v1490
        %v1501 = vpack.c.b16 %v1493, %v1492
        %1510 = vmatprep.subr.bf16.mxu0 0
        %1511 = vmatpush1.bf16.msra.mxu0 %v1501
        %1512 = vmatprep.subr.bf16.mxu0 0
        %1513 = vmatpush1.bf16.msra.mxu0 %v1500
        %1514 = vmatprep.subr.bf16.mxu0 0
        %1515 = vmatpush1.bf16.msra.mxu0 %v1499
        %1516 = vmatprep.subr.bf16.mxu0 0
        %1517 = vmatpush1.bf16.msra.mxu0 %v1498
        %1518 = vmatprep.subr.bf16.mxu0 0
        %1519 = vmatpush1.bf16.msra.mxu0 %v1497
        %1520 = vmatprep.subr.bf16.mxu0 0
        %1521 = vmatpush1.bf16.msra.mxu0 %v1496
        %1522 = vmatprep.subr.bf16.mxu0 0
        %1523 = vmatpush1.bf16.msra.mxu0 %v1495
        %1524 = vmatprep.subr.bf16.mxu0 0
        %1525 = vmatpush1.bf16.msra.mxu0 %v1494
        %1526 = vmatprep.subr.bf16.mxu0 0
        %1527 = vmatpush2.bf16.msra.mxu0 0
        %1528 = vmatprep.subr.bf16.mxu0 0
        %1529 = vmatpush2.bf16.msra.mxu0 0
        %1530 = vmatprep.subr.bf16.mxu0 0
        %1531 = vmatpush2.bf16.msra.mxu0 0
        %1532 = vmatprep.subr.bf16.mxu0 0
        %1533 = vmatpush2.bf16.msra.mxu0 0
        %1534 = vmatprep.subr.bf16.mxu0 0
        %1535 = vmatpush2.bf16.msra.mxu0 0
        %1536 = vmatprep.subr.bf16.mxu0 0
        %1537 = vmatpush2.bf16.msra.mxu0 0
        %1538 = vmatprep.subr.bf16.mxu0 0
        %1539 = vmatpush2.bf16.msra.mxu0 0
        %1540 = vmatprep.subr.bf16.mxu0 0
        %1541 = vmatpush2.bf16.msra.mxu0 0
        %1542 = vmatprep.mubr.bf16.mxu0 0
        %1543 = vmatmul.mubr.bf16.gmra.mxu0 %v1438
        %v1544 = vpop.f32.mrf.mxu0
        %v1545 = vadd.f32 %v1460, %v1544
        %v1546 = vpop.f32.mrf.mxu0
        %v1547 = vpop.f32.mrf.mxu0
        %v1548 = vpop.f32.mrf.mxu0
        %1549 = vdwg.mxu0
        %v1550 = vadd.f32 %v1332, %v1545
        %1551 = vst.msk [vmem:[#allocation2] sm:$0xff] %vm694, %v1550
        %p1552 = scmp.eq.s32.totalorder %s33, 2
        // Predicated region
        $region81: #{tpu_custom_call.1} parent=75 // pred_check
          %p1553 = pneg %p1552
        $region82: #{tpu_custom_call.1} parent=75 // pred_check_branch
          %1555 = sbr.rel (%p1553) target = $region84
        $region83: #{tpu_custom_call.1} parent=75 // pred_region
          %v1556 = vsel %vm694, %v1550, 0.0
          %v1557 = vrot.slane %v1556, 4
          %v1558 = vadd.f32 %v1556, %v1557
          %v1559 = vrot.slane %v1558, 2
          %v1560 = vadd.f32 %v1558, %v1559
          %v1561 = vrot.slane %v1560, 1
          %v1562 = vadd.f32 %v1560, %v1561
          %v1563 = vrcp.pop 8.0
          %v1564 = vmul.f32 %v1562, %v1563
          %vm1565 = vcmask 253952
          %1566 = vst.msk [vmem:[%s628] sm:$0x1] %vm1565, %v1564
        $region84: #{tpu_custom_call.1} parent=75 // pred_fallthru
          _
        %s1567 = sand.u32 %s412, 1
        %s1568 = scalar_lea.sflag [#allocation4], %s1567
        %s1569 = sand.u32 %s412, 1
        %s1570 = scalar_lea.vmem [#allocation3], %s1569
        // Predicated region
        $region85: #{tpu_custom_call.1} parent=75 // pred_check
          %p1571 = pneg %p422
        $region86: #{tpu_custom_call.1} parent=75 // pred_check_branch
          %1573 = sbr.rel (%p1571) target = $region88
        $region87: #{tpu_custom_call.1} parent=75 // pred_region
          %s1575 = ssub.s32 16, 16
          %1576 = vsyncadd %s1568, %s1575
          %s1577 = smul.addr %s32, 16
          %s1578 = scalar_lea.hbm %s14, %s1577
          %s1580 = sshll.u32 %s1570, 4
          %s1581 = int_to_ptr.vmem [resolvable:$true] %s1580
          %1583 = dma.vmem_to_hbm [thread:$0]  %s1581, 16, %s1578, %s1568
        $region88: #{tpu_custom_call.1} parent=75 // pred_fallthru
          _
      $region76: #{tpu_custom_call.1} parent=5 // pred_fallthru
        _
      %p1584 = scmp.le.s32.totalorder 2, %s23
      // Predicated region
      $region89: #{tpu_custom_call.1} parent=5 // pred_check
        %p1585 = pneg %p1584
      $region90: #{tpu_custom_call.1} parent=5 // pred_check_branch
        %1587 = sbr.rel (%p1585) target = $region92
      $region91: #{tpu_custom_call.1} parent=5 // pred_region
        %s1588 = ssub.s32 %s23, 2
        // Predicated region
        $region93: #{tpu_custom_call.1} parent=91 // pred_check
          %p1589 = pneg %p428
        $region94: #{tpu_custom_call.1} parent=91 // pred_check_branch
          %1591 = sbr.rel (%p1589) target = $region96
        $region95: #{tpu_custom_call.1} parent=91 // pred_region
          %s1592 = sand.u32 %s413, 1
          %s1593 = scalar_lea.sflag [#allocation4], %s1592
          %s1594 = sand.u32 %s413, 1
          %s1595 = scalar_lea.vmem [#allocation3], %s1594
          %1596 = dma.done %s1593, 16
        $region96: #{tpu_custom_call.1} parent=91 // pred_fallthru
          _
      $region92: #{tpu_custom_call.1} parent=5 // pred_fallthru
        _
    $region6: #{tpu_custom_call.1} parent=1 // loop_footer
      %s27 = sadd.s32 1, %s23
    $region7: #{tpu_custom_call.1} parent=1 // loop_footer_branch
      %22 = sbr.rel target = $region3
    $region8: #{tpu_custom_call.1} parent=1 // loop_exit
      _
    %1597 = vsyncpa [#allocation4], 1
    %s1598 = scalar_lea.sflag [#allocation4], 1
    %1599 = vsyncpa %s1598, 1

</llo_original>
